<compile_context>
chip_gen: v7x
topology: tpu7x:2x2x1
jax: 0.10.0
libtpu: 0.0.40
codegen_flags: <defaults>
</compile_context>

<pallas_src>
import jax
import jax.numpy as jnp
from jax.experimental import pallas as pl
from jax.experimental.pallas import tpu as pltpu


def mode_model_kernel(gx_ref, whh_ref, wn_ref, bn_ref, wm_ref, bm_ref,
                      h0_ref, c0_ref,
                      next_ref, mode_ref, h_out_ref, c_out_ref,
                      h_scr, c_scr, hs_scr):
    """Full LSTM recurrence + both linear heads, everything VMEM-resident.

    gx_ref : [T, B, 4H]  precomputed input projection (x @ W_ih^T + b), time-major
    whh_ref: [H, 4H]     transposed PyTorch weight_hh_l0
    wn_ref : [H, V], bn_ref: [1, V]   next-token head
    wm_ref : [H, M], bm_ref: [1, M]   mode head
    h0_ref, c0_ref: [B, H] initial LSTM state
    next_ref: [T*B, V]   time-major-flattened next-token logits
    mode_ref: [B, M]
    h_out_ref, c_out_ref: [B, H] final LSTM state
    h_scr, c_scr: [B, H] VMEM scratch; hs_scr: [T*B, H] VMEM scratch
    """
    T = gx_ref.shape[0]
    B = gx_ref.shape[1]
    H = whh_ref.shape[0]

    whh = whh_ref[...]                      # keep the recurrent weight resident

    h_scr[...] = h0_ref[...]
    c_scr[...] = c0_ref[...]

    def step(t, carry):
        h = h_scr[...]                      # [B, H]
        # Only sequential work: one small matmul + precomputed input gates.
        gates = (jnp.dot(h, whh, preferred_element_type=jnp.float32)
                 + gx_ref[t])               # [B, 4H], PyTorch gate order i,f,g,o

        # Full-vreg transcendentals (4H == 128 lanes), then slice the gates.
        sig = jax.nn.sigmoid(gates)
        tnh = jnp.tanh(gates)
        i_g = sig[:, 0 * H:1 * H]
        f_g = sig[:, 1 * H:2 * H]
        g_g = tnh[:, 2 * H:3 * H]
        o_g = sig[:, 3 * H:4 * H]

        c_new = f_g * c_scr[...] + i_g * g_g
        h_new = o_g * jnp.tanh(c_new)

        c_scr[...] = c_new
        h_scr[...] = h_new

        # Stream h_t into the flat [T*B, H] scratch (rows t*B .. t*B+B-1).
        row = pl.multiple_of(t * B, B)
        hs_scr[pl.ds(row, B), :] = h_new
        return carry

    jax.lax.fori_loop(0, T, step, 0, unroll=True)

    # Next-token head: ONE [T*B, H] x [H, V] matmul, one contiguous store.
    # (dropout == identity in eval mode)
    next_ref[...] = (jnp.dot(hs_scr[...], wn_ref[...],
                             preferred_element_type=jnp.float32)
                     + bn_ref[...]).astype(next_ref.dtype)

    # Mode head on the final hidden state (== mode_layer(lstm_out)[:, -1, :]).
    h_last = h_scr[...]
    mode_ref[...] = (jnp.dot(h_last, wm_ref[...],
                             preferred_element_type=jnp.float32)
                     + bm_ref[...]).astype(mode_ref.dtype)
    h_out_ref[...] = h_last
    c_out_ref[...] = c_scr[...]


def mode_model_forward(x_tokens, params, states=None):
    """x_tokens: int32 [B, T].  Returns (next_out [B,T,V], mode_out [B,M], (h, c))."""
    emb = params["embedding"]                 # [vocab, E]
    wih_t = params["w_ih_t"]                  # [E, 4H]
    whh_t = params["w_hh_t"]                  # [H, 4H]
    b = params["b_lstm"]                      # [1, 4H]  (b_ih + b_hh)
    wn_t = params["w_next_t"]                 # [H, V]
    bn = params["b_next"]                     # [1, V]
    wm_t = params["w_mode_t"]                 # [H, M]
    bm = params["b_mode"]                     # [1, M]

    B, T = x_tokens.shape
    H = whh_t.shape[0]
    V = wn_t.shape[1]
    M = wm_t.shape[1]

    # Embedding gather + input projection fused in plain XLA (hoisted out of the
    # serial recurrence).  NOTE: bf16 weights are an option on v6e/v7x; kept f32
    # here for v5e portability and exact reference checking.
    x_emb = jnp.take(emb, x_tokens, axis=0)                  # [B, T, E]
    gates_x = jnp.einsum("bte,eg->btg", x_emb, wih_t) + b    # [B, T, 4H]
    gx_tm = jnp.transpose(gates_x, (1, 0, 2))                # [T, B, 4H]

    if states is None:
        h0 = jnp.zeros((B, H), jnp.float32)
        c0 = jnp.zeros((B, H), jnp.float32)
    else:
        h0 = states[0][0].astype(jnp.float32)
        c0 = states[1][0].astype(jnp.float32)

    vmem = pl.BlockSpec(memory_space=pltpu.MemorySpace.VMEM)

    next_flat, mode_out, h_last, c_last = pl.pallas_call(
        mode_model_kernel,
        out_shape=(
            jax.ShapeDtypeStruct((T * B, V), jnp.float32),
            jax.ShapeDtypeStruct((B, M), jnp.float32),
            jax.ShapeDtypeStruct((B, H), jnp.float32),
            jax.ShapeDtypeStruct((B, H), jnp.float32),
        ),
        in_specs=[vmem] * 8,
        out_specs=(vmem, vmem, vmem, vmem),
        scratch_shapes=[
            pltpu.VMEM((B, H), jnp.float32),        # h
            pltpu.VMEM((B, H), jnp.float32),        # c
            pltpu.VMEM((T * B, H), jnp.float32),    # all hidden states (time-major)
        ],
        compiler_params=pltpu.CompilerParams(
            vmem_limit_bytes=32 * 1024 * 1024),     # fits v5e/v6e/v7x budgets
    )(gx_tm, whh_t, wn_t, bn, wm_t, bm, h0, c0)

    # TODO(synk): at scaled-up V/T, write hs batch-major in-kernel to avoid this
    # extra HBM pass over the largest tensor.
    next_out = jnp.transpose(next_flat.reshape(T, B, V), (1, 0, 2))  # [B, T, V]
    states_out = (h_last[None, :, :], c_last[None, :, :])            # ([1,B,H], [1,B,H])
    return next_out, mode_out, states_out


def _reference_forward(x_tokens, params):
    """Pure-JAX reference (same math) for a correctness check."""
    emb = params["embedding"]
    x_emb = jnp.take(emb, x_tokens, axis=0)             # [B, T, E]
    H = params["w_hh_t"].shape[0]
    B = x_tokens.shape[0]

    def step(carry, x_t):
        h, c = carry
        gates = x_t @ params["w_ih_t"] + h @ params["w_hh_t"] + params["b_lstm"]
        i_g = jax.nn.sigmoid(gates[:, 0 * H:1 * H])
        f_g = jax.nn.sigmoid(gates[:, 1 * H:2 * H])
        g_g = jnp.tanh(gates[:, 2 * H:3 * H])
        o_g = jax.nn.sigmoid(gates[:, 3 * H:4 * H])
        c_new = f_g * c + i_g * g_g
        h_new = o_g * jnp.tanh(c_new)
        return (h_new, c_new), h_new

    init = (jnp.zeros((B, H), jnp.float32), jnp.zeros((B, H), jnp.float32))
    (h_last, c_last), hs = jax.lax.scan(step, init, jnp.transpose(x_emb, (1, 0, 2)))
    hs = jnp.transpose(hs, (1, 0, 2))                    # [B, T, H]
    next_out = hs @ params["w_next_t"] + params["b_next"]
    mode_out = h_last @ params["w_mode_t"] + params["b_mode"]
    return next_out, mode_out, (h_last[None], c_last[None])


def init_params(key, vocab_size, embedding_dim, hidden, mode_num):
    ks = jax.random.split(key, 8)
    s = 1.0 / jnp.sqrt(hidden)
    return {
        "embedding": jax.random.normal(ks[0], (vocab_size, embedding_dim), jnp.float32),
        "w_ih_t": jax.random.uniform(ks[1], (embedding_dim, 4 * hidden), jnp.float32, -s, s),
        "w_hh_t": jax.random.uniform(ks[2], (hidden, 4 * hidden), jnp.float32, -s, s),
        "b_lstm": jax.random.uniform(ks[3], (1, 4 * hidden), jnp.float32, -s, s),
        "w_next_t": jax.random.uniform(ks[4], (hidden, vocab_size), jnp.float32, -s, s),
        "b_next": jax.random.uniform(ks[5], (1, vocab_size), jnp.float32, -s, s),
        "w_mode_t": jax.random.uniform(ks[6], (hidden, mode_num), jnp.float32, -s, s),
        "b_mode": jax.random.uniform(ks[7], (1, mode_num), jnp.float32, -s, s),
    }


if __name__ == "__main__":
    # Keep XLA-side matmuls in full f32 so the kernel/reference comparison is tight.
    jax.config.update("jax_default_matmul_precision", "highest")

    # Small shapes consistent with the module (target='both'); 4H == 128 lanes.
    batch_size = 2
    seq_length = 8
    vocab_size = 16
    mode_num = 4
    lstm_num_hidden = 32
    embedding_dim = 50

    key = jax.random.PRNGKey(0)
    k_params, k_tokens = jax.random.split(key)
    params = init_params(k_params, vocab_size, embedding_dim, lstm_num_hidden, mode_num)
    x_tokens = jax.random.randint(k_tokens, (batch_size, seq_length), 0, vocab_size,
                                  dtype=jnp.int32)

    next_out, mode_out, (h, c) = mode_model_forward(x_tokens, params)
    jax.block_until_ready((next_out, mode_out, h, c))

    # Sanity check against a pure-JAX reference.
    ref_next, ref_mode, (ref_h, ref_c) = _reference_forward(x_tokens, params)
    assert next_out.shape == (batch_size, seq_length, vocab_size)
    assert mode_out.shape == (batch_size, mode_num)
    assert h.shape == (1, batch_size, lstm_num_hidden)
    assert jnp.allclose(next_out, ref_next, atol=2e-3)
    assert jnp.allclose(mode_out, ref_mode, atol=2e-3)
    assert jnp.allclose(h, ref_h, atol=2e-3)
    assert jnp.allclose(c, ref_c, atol=2e-3)

    print("KERNEL_OK")
</pallas_src>

<mosaic_0001>
module attributes {stable_mosaic.version = 11 : i64} {
  func.func @mode_model_kernel(%arg0: memref<8x2x128xf32, #tpu.memory_space<vmem>>, %arg1: memref<32x128xf32, #tpu.memory_space<vmem>>, %arg2: memref<32x16xf32, #tpu.memory_space<vmem>>, %arg3: memref<1x16xf32, #tpu.memory_space<vmem>>, %arg4: memref<32x4xf32, #tpu.memory_space<vmem>>, %arg5: memref<1x4xf32, #tpu.memory_space<vmem>>, %arg6: memref<2x32xf32, #tpu.memory_space<vmem>>, %arg7: memref<2x32xf32, #tpu.memory_space<vmem>>, %arg8: memref<16x16xf32, #tpu.memory_space<vmem>>, %arg9: memref<2x4xf32, #tpu.memory_space<vmem>>, %arg10: memref<2x32xf32, #tpu.memory_space<vmem>>, %arg11: memref<2x32xf32, #tpu.memory_space<vmem>>, %arg12: memref<2x32xf32, #tpu.memory_space<vmem>>, %arg13: memref<2x32xf32, #tpu.memory_space<vmem>>, %arg14: memref<16x32xf32, #tpu.memory_space<vmem>>) attributes {dimension_semantics = [], scalar_prefetch = 0 : i64, scratch_operands = 3 : i64, tpu.core_type = #tpu.core_type<tc>} {
    %c0 = arith.constant 0 : index
    %c0_0 = arith.constant 0 : index
    %0 = vector.load %arg1[%c0, %c0_0] : memref<32x128xf32, #tpu.memory_space<vmem>>, vector<32x128xf32>
    %c0_1 = arith.constant 0 : index
    %c0_2 = arith.constant 0 : index
    %1 = vector.load %arg6[%c0_1, %c0_2] : memref<2x32xf32, #tpu.memory_space<vmem>>, vector<2x32xf32>
    %c0_3 = arith.constant 0 : index
    %c0_4 = arith.constant 0 : index
    %2 = vector.load %arg12[%c0_3, %c0_4] : memref<2x32xf32, #tpu.memory_space<vmem>>, vector<2x32xf32>
    tpu.vector_store %arg12[%c0_3, %c0_4], %1 {strides = array<i32>} : memref<2x32xf32, #tpu.memory_space<vmem>>, vector<2x32xf32>,
    %c0_5 = arith.constant 0 : index
    %c0_6 = arith.constant 0 : index
    %3 = vector.load %arg7[%c0_5, %c0_6] : memref<2x32xf32, #tpu.memory_space<vmem>>, vector<2x32xf32>
    %c0_7 = arith.constant 0 : index
    %c0_8 = arith.constant 0 : index
    %4 = vector.load %arg13[%c0_7, %c0_8] : memref<2x32xf32, #tpu.memory_space<vmem>>, vector<2x32xf32>
    tpu.vector_store %arg13[%c0_7, %c0_8], %3 {strides = array<i32>} : memref<2x32xf32, #tpu.memory_space<vmem>>, vector<2x32xf32>,
    %c0_i32 = arith.constant 0 : i32
    %c0_9 = arith.constant 0 : index
    %c0_10 = arith.constant 0 : index
    %5 = vector.load %arg12[%c0_9, %c0_10] : memref<2x32xf32, #tpu.memory_space<vmem>>, vector<2x32xf32>
    %cst = arith.constant dense<0.000000e+00> : vector<2x128xf32>
    %6 = tpu.matmul %5, %0, %cst {dimension_numbers = #tpu.dot_dimension_numbers<[1], [0], [0], [1], [0, 0, 1, 1], [], []>, precision = #tpu.contract_precision<fp32>} : vector<2x32xf32>, vector<32x128xf32>, vector<2x128xf32> -> vector<2x128xf32>
    %7 = arith.index_cast %c0_i32 : i32 to index
    %c0_11 = arith.constant 0 : index
    %c0_12 = arith.constant 0 : index
    %8 = vector.load %arg0[%7, %c0_11, %c0_12] : memref<8x2x128xf32, #tpu.memory_space<vmem>>, vector<1x2x128xf32>
    %9 = vector.shape_cast %8 : vector<1x2x128xf32> to vector<2x128xf32>
    %10 = arith.addf %6, %9 : vector<2x128xf32>
    %11 = arith.negf %10 : vector<2x128xf32>
    %12 = math.exp %11 : vector<2x128xf32>
    %cst_13 = arith.constant 1.000000e+00 : f32
    %13 = vector.broadcast %cst_13 : f32 to vector<2x128xf32>
    %14 = arith.addf %13, %12 : vector<2x128xf32>
    %15 = arith.divf %13, %14 : vector<2x128xf32>
    %16 = math.tanh %10 : vector<2x128xf32>
    %17 = vector.extract_strided_slice %15 {offsets = [0, 0], sizes = [2, 32], strides = [1, 1]} : vector<2x128xf32> to vector<2x32xf32>
    %18 = vector.extract_strided_slice %15 {offsets = [0, 32], sizes = [2, 32], strides = [1, 1]} : vector<2x128xf32> to vector<2x32xf32>
    %19 = vector.extract_strided_slice %16 {offsets = [0, 64], sizes = [2, 32], strides = [1, 1]} : vector<2x128xf32> to vector<2x32xf32>
    %20 = vector.extract_strided_slice %15 {offsets = [0, 96], sizes = [2, 32], strides = [1, 1]} : vector<2x128xf32> to vector<2x32xf32>
    %c0_14 = arith.constant 0 : index
    %c0_15 = arith.constant 0 : index
    %21 = vector.load %arg13[%c0_14, %c0_15] : memref<2x32xf32, #tpu.memory_space<vmem>>, vector<2x32xf32>
    %22 = arith.mulf %18, %21 : vector<2x32xf32>
    %23 = arith.mulf %17, %19 : vector<2x32xf32>
    %24 = arith.addf %22, %23 : vector<2x32xf32>
    %25 = math.tanh %24 : vector<2x32xf32>
    %26 = arith.mulf %20, %25 : vector<2x32xf32>
    %c0_16 = arith.constant 0 : index
    %c0_17 = arith.constant 0 : index
    %27 = vector.load %arg13[%c0_16, %c0_17] : memref<2x32xf32, #tpu.memory_space<vmem>>, vector<2x32xf32>
    tpu.vector_store %arg13[%c0_16, %c0_17], %24 {strides = array<i32>} : memref<2x32xf32, #tpu.memory_space<vmem>>, vector<2x32xf32>,
    %c0_18 = arith.constant 0 : index
    %c0_19 = arith.constant 0 : index
    %28 = vector.load %arg12[%c0_18, %c0_19] : memref<2x32xf32, #tpu.memory_space<vmem>>, vector<2x32xf32>
    tpu.vector_store %arg12[%c0_18, %c0_19], %26 {strides = array<i32>} : memref<2x32xf32, #tpu.memory_space<vmem>>, vector<2x32xf32>,
    %c2_i32 = arith.constant 2 : i32
    %29 = arith.muli %c0_i32, %c2_i32 : i32
    %30 = tpu.assume_multiple %29, 2 : i32
    %31 = arith.index_cast %30 : i32 to index
    %c0_20 = arith.constant 0 : index
    %32 = vector.load %arg14[%31, %c0_20] : memref<16x32xf32, #tpu.memory_space<vmem>>, vector<2x32xf32>
    tpu.vector_store %arg14[%31, %c0_20], %26 {strides = array<i32>} : memref<16x32xf32, #tpu.memory_space<vmem>>, vector<2x32xf32>,
    %c1_i32 = arith.constant 1 : i32
    %c0_21 = arith.constant 0 : index
    %c0_22 = arith.constant 0 : index
    %33 = vector.load %arg12[%c0_21, %c0_22] : memref<2x32xf32, #tpu.memory_space<vmem>>, vector<2x32xf32>
    %cst_23 = arith.constant dense<0.000000e+00> : vector<2x128xf32>
    %34 = tpu.matmul %33, %0, %cst_23 {dimension_numbers = #tpu.dot_dimension_numbers<[1], [0], [0], [1], [0, 0, 1, 1], [], []>, precision = #tpu.contract_precision<fp32>} : vector<2x32xf32>, vector<32x128xf32>, vector<2x128xf32> -> vector<2x128xf32>
    %35 = arith.index_cast %c1_i32 : i32 to index
    %c0_24 = arith.constant 0 : index
    %c0_25 = arith.constant 0 : index
    %36 = vector.load %arg0[%35, %c0_24, %c0_25] : memref<8x2x128xf32, #tpu.memory_space<vmem>>, vector<1x2x128xf32>
    %37 = vector.shape_cast %36 : vector<1x2x128xf32> to vector<2x128xf32>
    %38 = arith.addf %34, %37 : vector<2x128xf32>
    %39 = arith.negf %38 : vector<2x128xf32>
    %40 = math.exp %39 : vector<2x128xf32>
    %cst_26 = arith.constant 1.000000e+00 : f32
    %41 = vector.broadcast %cst_26 : f32 to vector<2x128xf32>
    %42 = arith.addf %41, %40 : vector<2x128xf32>
    %43 = arith.divf %41, %42 : vector<2x128xf32>
    %44 = math.tanh %38 : vector<2x128xf32>
    %45 = vector.extract_strided_slice %43 {offsets = [0, 0], sizes = [2, 32], strides = [1, 1]} : vector<2x128xf32> to vector<2x32xf32>
    %46 = vector.extract_strided_slice %43 {offsets = [0, 32], sizes = [2, 32], strides = [1, 1]} : vector<2x128xf32> to vector<2x32xf32>
    %47 = vector.extract_strided_slice %44 {offsets = [0, 64], sizes = [2, 32], strides = [1, 1]} : vector<2x128xf32> to vector<2x32xf32>
    %48 = vector.extract_strided_slice %43 {offsets = [0, 96], sizes = [2, 32], strides = [1, 1]} : vector<2x128xf32> to vector<2x32xf32>
    %c0_27 = arith.constant 0 : index
    %c0_28 = arith.constant 0 : index
    %49 = vector.load %arg13[%c0_27, %c0_28] : memref<2x32xf32, #tpu.memory_space<vmem>>, vector<2x32xf32>
    %50 = arith.mulf %46, %49 : vector<2x32xf32>
    %51 = arith.mulf %45, %47 : vector<2x32xf32>
    %52 = arith.addf %50, %51 : vector<2x32xf32>
    %53 = math.tanh %52 : vector<2x32xf32>
    %54 = arith.mulf %48, %53 : vector<2x32xf32>
    %c0_29 = arith.constant 0 : index
    %c0_30 = arith.constant 0 : index
    %55 = vector.load %arg13[%c0_29, %c0_30] : memref<2x32xf32, #tpu.memory_space<vmem>>, vector<2x32xf32>
    tpu.vector_store %arg13[%c0_29, %c0_30], %52 {strides = array<i32>} : memref<2x32xf32, #tpu.memory_space<vmem>>, vector<2x32xf32>,
    %c0_31 = arith.constant 0 : index
    %c0_32 = arith.constant 0 : index
    %56 = vector.load %arg12[%c0_31, %c0_32] : memref<2x32xf32, #tpu.memory_space<vmem>>, vector<2x32xf32>
    tpu.vector_store %arg12[%c0_31, %c0_32], %54 {strides = array<i32>} : memref<2x32xf32, #tpu.memory_space<vmem>>, vector<2x32xf32>,
    %c2_i32_33 = arith.constant 2 : i32
    %57 = arith.muli %c1_i32, %c2_i32_33 : i32
    %58 = tpu.assume_multiple %57, 2 : i32
    %59 = arith.index_cast %58 : i32 to index
    %c0_34 = arith.constant 0 : index
    %60 = vector.load %arg14[%59, %c0_34] : memref<16x32xf32, #tpu.memory_space<vmem>>, vector<2x32xf32>
    tpu.vector_store %arg14[%59, %c0_34], %54 {strides = array<i32>} : memref<16x32xf32, #tpu.memory_space<vmem>>, vector<2x32xf32>,
    %c2_i32_35 = arith.constant 2 : i32
    %c0_36 = arith.constant 0 : index
    %c0_37 = arith.constant 0 : index
    %61 = vector.load %arg12[%c0_36, %c0_37] : memref<2x32xf32, #tpu.memory_space<vmem>>, vector<2x32xf32>
    %cst_38 = arith.constant dense<0.000000e+00> : vector<2x128xf32>
    %62 = tpu.matmul %61, %0, %cst_38 {dimension_numbers = #tpu.dot_dimension_numbers<[1], [0], [0], [1], [0, 0, 1, 1], [], []>, precision = #tpu.contract_precision<fp32>} : vector<2x32xf32>, vector<32x128xf32>, vector<2x128xf32> -> vector<2x128xf32>
    %63 = arith.index_cast %c2_i32_35 : i32 to index
    %c0_39 = arith.constant 0 : index
    %c0_40 = arith.constant 0 : index
    %64 = vector.load %arg0[%63, %c0_39, %c0_40] : memref<8x2x128xf32, #tpu.memory_space<vmem>>, vector<1x2x128xf32>
    %65 = vector.shape_cast %64 : vector<1x2x128xf32> to vector<2x128xf32>
    %66 = arith.addf %62, %65 : vector<2x128xf32>
    %67 = arith.negf %66 : vector<2x128xf32>
    %68 = math.exp %67 : vector<2x128xf32>
    %cst_41 = arith.constant 1.000000e+00 : f32
    %69 = vector.broadcast %cst_41 : f32 to vector<2x128xf32>
    %70 = arith.addf %69, %68 : vector<2x128xf32>
    %71 = arith.divf %69, %70 : vector<2x128xf32>
    %72 = math.tanh %66 : vector<2x128xf32>
    %73 = vector.extract_strided_slice %71 {offsets = [0, 0], sizes = [2, 32], strides = [1, 1]} : vector<2x128xf32> to vector<2x32xf32>
    %74 = vector.extract_strided_slice %71 {offsets = [0, 32], sizes = [2, 32], strides = [1, 1]} : vector<2x128xf32> to vector<2x32xf32>
    %75 = vector.extract_strided_slice %72 {offsets = [0, 64], sizes = [2, 32], strides = [1, 1]} : vector<2x128xf32> to vector<2x32xf32>
    %76 = vector.extract_strided_slice %71 {offsets = [0, 96], sizes = [2, 32], strides = [1, 1]} : vector<2x128xf32> to vector<2x32xf32>
    %c0_42 = arith.constant 0 : index
    %c0_43 = arith.constant 0 : index
    %77 = vector.load %arg13[%c0_42, %c0_43] : memref<2x32xf32, #tpu.memory_space<vmem>>, vector<2x32xf32>
    %78 = arith.mulf %74, %77 : vector<2x32xf32>
    %79 = arith.mulf %73, %75 : vector<2x32xf32>
    %80 = arith.addf %78, %79 : vector<2x32xf32>
    %81 = math.tanh %80 : vector<2x32xf32>
    %82 = arith.mulf %76, %81 : vector<2x32xf32>
    %c0_44 = arith.constant 0 : index
    %c0_45 = arith.constant 0 : index
    %83 = vector.load %arg13[%c0_44, %c0_45] : memref<2x32xf32, #tpu.memory_space<vmem>>, vector<2x32xf32>
    tpu.vector_store %arg13[%c0_44, %c0_45], %80 {strides = array<i32>} : memref<2x32xf32, #tpu.memory_space<vmem>>, vector<2x32xf32>,
    %c0_46 = arith.constant 0 : index
    %c0_47 = arith.constant 0 : index
    %84 = vector.load %arg12[%c0_46, %c0_47] : memref<2x32xf32, #tpu.memory_space<vmem>>, vector<2x32xf32>
    tpu.vector_store %arg12[%c0_46, %c0_47], %82 {strides = array<i32>} : memref<2x32xf32, #tpu.memory_space<vmem>>, vector<2x32xf32>,
    %c2_i32_48 = arith.constant 2 : i32
    %85 = arith.muli %c2_i32_35, %c2_i32_48 : i32
    %86 = tpu.assume_multiple %85, 2 : i32
    %87 = arith.index_cast %86 : i32 to index
    %c0_49 = arith.constant 0 : index
    %88 = vector.load %arg14[%87, %c0_49] : memref<16x32xf32, #tpu.memory_space<vmem>>, vector<2x32xf32>
    tpu.vector_store %arg14[%87, %c0_49], %82 {strides = array<i32>} : memref<16x32xf32, #tpu.memory_space<vmem>>, vector<2x32xf32>,
    %c3_i32 = arith.constant 3 : i32
    %c0_50 = arith.constant 0 : index
    %c0_51 = arith.constant 0 : index
    %89 = vector.load %arg12[%c0_50, %c0_51] : memref<2x32xf32, #tpu.memory_space<vmem>>, vector<2x32xf32>
    %cst_52 = arith.constant dense<0.000000e+00> : vector<2x128xf32>
    %90 = tpu.matmul %89, %0, %cst_52 {dimension_numbers = #tpu.dot_dimension_numbers<[1], [0], [0], [1], [0, 0, 1, 1], [], []>, precision = #tpu.contract_precision<fp32>} : vector<2x32xf32>, vector<32x128xf32>, vector<2x128xf32> -> vector<2x128xf32>
    %91 = arith.index_cast %c3_i32 : i32 to index
    %c0_53 = arith.constant 0 : index
    %c0_54 = arith.constant 0 : index
    %92 = vector.load %arg0[%91, %c0_53, %c0_54] : memref<8x2x128xf32, #tpu.memory_space<vmem>>, vector<1x2x128xf32>
    %93 = vector.shape_cast %92 : vector<1x2x128xf32> to vector<2x128xf32>
    %94 = arith.addf %90, %93 : vector<2x128xf32>
    %95 = arith.negf %94 : vector<2x128xf32>
    %96 = math.exp %95 : vector<2x128xf32>
    %cst_55 = arith.constant 1.000000e+00 : f32
    %97 = vector.broadcast %cst_55 : f32 to vector<2x128xf32>
    %98 = arith.addf %97, %96 : vector<2x128xf32>
    %99 = arith.divf %97, %98 : vector<2x128xf32>
    %100 = math.tanh %94 : vector<2x128xf32>
    %101 = vector.extract_strided_slice %99 {offsets = [0, 0], sizes = [2, 32], strides = [1, 1]} : vector<2x128xf32> to vector<2x32xf32>
    %102 = vector.extract_strided_slice %99 {offsets = [0, 32], sizes = [2, 32], strides = [1, 1]} : vector<2x128xf32> to vector<2x32xf32>
    %103 = vector.extract_strided_slice %100 {offsets = [0, 64], sizes = [2, 32], strides = [1, 1]} : vector<2x128xf32> to vector<2x32xf32>
    %104 = vector.extract_strided_slice %99 {offsets = [0, 96], sizes = [2, 32], strides = [1, 1]} : vector<2x128xf32> to vector<2x32xf32>
    %c0_56 = arith.constant 0 : index
    %c0_57 = arith.constant 0 : index
    %105 = vector.load %arg13[%c0_56, %c0_57] : memref<2x32xf32, #tpu.memory_space<vmem>>, vector<2x32xf32>
    %106 = arith.mulf %102, %105 : vector<2x32xf32>
    %107 = arith.mulf %101, %103 : vector<2x32xf32>
    %108 = arith.addf %106, %107 : vector<2x32xf32>
    %109 = math.tanh %108 : vector<2x32xf32>
    %110 = arith.mulf %104, %109 : vector<2x32xf32>
    %c0_58 = arith.constant 0 : index
    %c0_59 = arith.constant 0 : index
    %111 = vector.load %arg13[%c0_58, %c0_59] : memref<2x32xf32, #tpu.memory_space<vmem>>, vector<2x32xf32>
    tpu.vector_store %arg13[%c0_58, %c0_59], %108 {strides = array<i32>} : memref<2x32xf32, #tpu.memory_space<vmem>>, vector<2x32xf32>,
    %c0_60 = arith.constant 0 : index
    %c0_61 = arith.constant 0 : index
    %112 = vector.load %arg12[%c0_60, %c0_61] : memref<2x32xf32, #tpu.memory_space<vmem>>, vector<2x32xf32>
    tpu.vector_store %arg12[%c0_60, %c0_61], %110 {strides = array<i32>} : memref<2x32xf32, #tpu.memory_space<vmem>>, vector<2x32xf32>,
    %c2_i32_62 = arith.constant 2 : i32
    %113 = arith.muli %c3_i32, %c2_i32_62 : i32
    %114 = tpu.assume_multiple %113, 2 : i32
    %115 = arith.index_cast %114 : i32 to index
    %c0_63 = arith.constant 0 : index
    %116 = vector.load %arg14[%115, %c0_63] : memref<16x32xf32, #tpu.memory_space<vmem>>, vector<2x32xf32>
    tpu.vector_store %arg14[%115, %c0_63], %110 {strides = array<i32>} : memref<16x32xf32, #tpu.memory_space<vmem>>, vector<2x32xf32>,
    %c4_i32 = arith.constant 4 : i32
    %c0_64 = arith.constant 0 : index
    %c0_65 = arith.constant 0 : index
    %117 = vector.load %arg12[%c0_64, %c0_65] : memref<2x32xf32, #tpu.memory_space<vmem>>, vector<2x32xf32>
    %cst_66 = arith.constant dense<0.000000e+00> : vector<2x128xf32>
    %118 = tpu.matmul %117, %0, %cst_66 {dimension_numbers = #tpu.dot_dimension_numbers<[1], [0], [0], [1], [0, 0, 1, 1], [], []>, precision = #tpu.contract_precision<fp32>} : vector<2x32xf32>, vector<32x128xf32>, vector<2x128xf32> -> vector<2x128xf32>
    %119 = arith.index_cast %c4_i32 : i32 to index
    %c0_67 = arith.constant 0 : index
    %c0_68 = arith.constant 0 : index
    %120 = vector.load %arg0[%119, %c0_67, %c0_68] : memref<8x2x128xf32, #tpu.memory_space<vmem>>, vector<1x2x128xf32>
    %121 = vector.shape_cast %120 : vector<1x2x128xf32> to vector<2x128xf32>
    %122 = arith.addf %118, %121 : vector<2x128xf32>
    %123 = arith.negf %122 : vector<2x128xf32>
    %124 = math.exp %123 : vector<2x128xf32>
    %cst_69 = arith.constant 1.000000e+00 : f32
    %125 = vector.broadcast %cst_69 : f32 to vector<2x128xf32>
    %126 = arith.addf %125, %124 : vector<2x128xf32>
    %127 = arith.divf %125, %126 : vector<2x128xf32>
    %128 = math.tanh %122 : vector<2x128xf32>
    %129 = vector.extract_strided_slice %127 {offsets = [0, 0], sizes = [2, 32], strides = [1, 1]} : vector<2x128xf32> to vector<2x32xf32>
    %130 = vector.extract_strided_slice %127 {offsets = [0, 32], sizes = [2, 32], strides = [1, 1]} : vector<2x128xf32> to vector<2x32xf32>
    %131 = vector.extract_strided_slice %128 {offsets = [0, 64], sizes = [2, 32], strides = [1, 1]} : vector<2x128xf32> to vector<2x32xf32>
    %132 = vector.extract_strided_slice %127 {offsets = [0, 96], sizes = [2, 32], strides = [1, 1]} : vector<2x128xf32> to vector<2x32xf32>
    %c0_70 = arith.constant 0 : index
    %c0_71 = arith.constant 0 : index
    %133 = vector.load %arg13[%c0_70, %c0_71] : memref<2x32xf32, #tpu.memory_space<vmem>>, vector<2x32xf32>
    %134 = arith.mulf %130, %133 : vector<2x32xf32>
    %135 = arith.mulf %129, %131 : vector<2x32xf32>
    %136 = arith.addf %134, %135 : vector<2x32xf32>
    %137 = math.tanh %136 : vector<2x32xf32>
    %138 = arith.mulf %132, %137 : vector<2x32xf32>
    %c0_72 = arith.constant 0 : index
    %c0_73 = arith.constant 0 : index
    %139 = vector.load %arg13[%c0_72, %c0_73] : memref<2x32xf32, #tpu.memory_space<vmem>>, vector<2x32xf32>
    tpu.vector_store %arg13[%c0_72, %c0_73], %136 {strides = array<i32>} : memref<2x32xf32, #tpu.memory_space<vmem>>, vector<2x32xf32>,
    %c0_74 = arith.constant 0 : index
    %c0_75 = arith.constant 0 : index
    %140 = vector.load %arg12[%c0_74, %c0_75] : memref<2x32xf32, #tpu.memory_space<vmem>>, vector<2x32xf32>
    tpu.vector_store %arg12[%c0_74, %c0_75], %138 {strides = array<i32>} : memref<2x32xf32, #tpu.memory_space<vmem>>, vector<2x32xf32>,
    %c2_i32_76 = arith.constant 2 : i32
    %141 = arith.muli %c4_i32, %c2_i32_76 : i32
    %142 = tpu.assume_multiple %141, 2 : i32
    %143 = arith.index_cast %142 : i32 to index
    %c0_77 = arith.constant 0 : index
    %144 = vector.load %arg14[%143, %c0_77] : memref<16x32xf32, #tpu.memory_space<vmem>>, vector<2x32xf32>
    tpu.vector_store %arg14[%143, %c0_77], %138 {strides = array<i32>} : memref<16x32xf32, #tpu.memory_space<vmem>>, vector<2x32xf32>,
    %c5_i32 = arith.constant 5 : i32
    %c0_78 = arith.constant 0 : index
    %c0_79 = arith.constant 0 : index
    %145 = vector.load %arg12[%c0_78, %c0_79] : memref<2x32xf32, #tpu.memory_space<vmem>>, vector<2x32xf32>
    %cst_80 = arith.constant dense<0.000000e+00> : vector<2x128xf32>
    %146 = tpu.matmul %145, %0, %cst_80 {dimension_numbers = #tpu.dot_dimension_numbers<[1], [0], [0], [1], [0, 0, 1, 1], [], []>, precision = #tpu.contract_precision<fp32>} : vector<2x32xf32>, vector<32x128xf32>, vector<2x128xf32> -> vector<2x128xf32>
    %147 = arith.index_cast %c5_i32 : i32 to index
    %c0_81 = arith.constant 0 : index
    %c0_82 = arith.constant 0 : index
    %148 = vector.load %arg0[%147, %c0_81, %c0_82] : memref<8x2x128xf32, #tpu.memory_space<vmem>>, vector<1x2x128xf32>
    %149 = vector.shape_cast %148 : vector<1x2x128xf32> to vector<2x128xf32>
    %150 = arith.addf %146, %149 : vector<2x128xf32>
    %151 = arith.negf %150 : vector<2x128xf32>
    %152 = math.exp %151 : vector<2x128xf32>
    %cst_83 = arith.constant 1.000000e+00 : f32
    %153 = vector.broadcast %cst_83 : f32 to vector<2x128xf32>
    %154 = arith.addf %153, %152 : vector<2x128xf32>
    %155 = arith.divf %153, %154 : vector<2x128xf32>
    %156 = math.tanh %150 : vector<2x128xf32>
    %157 = vector.extract_strided_slice %155 {offsets = [0, 0], sizes = [2, 32], strides = [1, 1]} : vector<2x128xf32> to vector<2x32xf32>
    %158 = vector.extract_strided_slice %155 {offsets = [0, 32], sizes = [2, 32], strides = [1, 1]} : vector<2x128xf32> to vector<2x32xf32>
    %159 = vector.extract_strided_slice %156 {offsets = [0, 64], sizes = [2, 32], strides = [1, 1]} : vector<2x128xf32> to vector<2x32xf32>
    %160 = vector.extract_strided_slice %155 {offsets = [0, 96], sizes = [2, 32], strides = [1, 1]} : vector<2x128xf32> to vector<2x32xf32>
    %c0_84 = arith.constant 0 : index
    %c0_85 = arith.constant 0 : index
    %161 = vector.load %arg13[%c0_84, %c0_85] : memref<2x32xf32, #tpu.memory_space<vmem>>, vector<2x32xf32>
    %162 = arith.mulf %158, %161 : vector<2x32xf32>
    %163 = arith.mulf %157, %159 : vector<2x32xf32>
    %164 = arith.addf %162, %163 : vector<2x32xf32>
    %165 = math.tanh %164 : vector<2x32xf32>
    %166 = arith.mulf %160, %165 : vector<2x32xf32>
    %c0_86 = arith.constant 0 : index
    %c0_87 = arith.constant 0 : index
    %167 = vector.load %arg13[%c0_86, %c0_87] : memref<2x32xf32, #tpu.memory_space<vmem>>, vector<2x32xf32>
    tpu.vector_store %arg13[%c0_86, %c0_87], %164 {strides = array<i32>} : memref<2x32xf32, #tpu.memory_space<vmem>>, vector<2x32xf32>,
    %c0_88 = arith.constant 0 : index
    %c0_89 = arith.constant 0 : index
    %168 = vector.load %arg12[%c0_88, %c0_89] : memref<2x32xf32, #tpu.memory_space<vmem>>, vector<2x32xf32>
    tpu.vector_store %arg12[%c0_88, %c0_89], %166 {strides = array<i32>} : memref<2x32xf32, #tpu.memory_space<vmem>>, vector<2x32xf32>,
    %c2_i32_90 = arith.constant 2 : i32
    %169 = arith.muli %c5_i32, %c2_i32_90 : i32
    %170 = tpu.assume_multiple %169, 2 : i32
    %171 = arith.index_cast %170 : i32 to index
    %c0_91 = arith.constant 0 : index
    %172 = vector.load %arg14[%171, %c0_91] : memref<16x32xf32, #tpu.memory_space<vmem>>, vector<2x32xf32>
    tpu.vector_store %arg14[%171, %c0_91], %166 {strides = array<i32>} : memref<16x32xf32, #tpu.memory_space<vmem>>, vector<2x32xf32>,
    %c6_i32 = arith.constant 6 : i32
    %c0_92 = arith.constant 0 : index
    %c0_93 = arith.constant 0 : index
    %173 = vector.load %arg12[%c0_92, %c0_93] : memref<2x32xf32, #tpu.memory_space<vmem>>, vector<2x32xf32>
    %cst_94 = arith.constant dense<0.000000e+00> : vector<2x128xf32>
    %174 = tpu.matmul %173, %0, %cst_94 {dimension_numbers = #tpu.dot_dimension_numbers<[1], [0], [0], [1], [0, 0, 1, 1], [], []>, precision = #tpu.contract_precision<fp32>} : vector<2x32xf32>, vector<32x128xf32>, vector<2x128xf32> -> vector<2x128xf32>
    %175 = arith.index_cast %c6_i32 : i32 to index
    %c0_95 = arith.constant 0 : index
    %c0_96 = arith.constant 0 : index
    %176 = vector.load %arg0[%175, %c0_95, %c0_96] : memref<8x2x128xf32, #tpu.memory_space<vmem>>, vector<1x2x128xf32>
    %177 = vector.shape_cast %176 : vector<1x2x128xf32> to vector<2x128xf32>
    %178 = arith.addf %174, %177 : vector<2x128xf32>
    %179 = arith.negf %178 : vector<2x128xf32>
    %180 = math.exp %179 : vector<2x128xf32>
    %cst_97 = arith.constant 1.000000e+00 : f32
    %181 = vector.broadcast %cst_97 : f32 to vector<2x128xf32>
    %182 = arith.addf %181, %180 : vector<2x128xf32>
    %183 = arith.divf %181, %182 : vector<2x128xf32>
    %184 = math.tanh %178 : vector<2x128xf32>
    %185 = vector.extract_strided_slice %183 {offsets = [0, 0], sizes = [2, 32], strides = [1, 1]} : vector<2x128xf32> to vector<2x32xf32>
    %186 = vector.extract_strided_slice %183 {offsets = [0, 32], sizes = [2, 32], strides = [1, 1]} : vector<2x128xf32> to vector<2x32xf32>
    %187 = vector.extract_strided_slice %184 {offsets = [0, 64], sizes = [2, 32], strides = [1, 1]} : vector<2x128xf32> to vector<2x32xf32>
    %188 = vector.extract_strided_slice %183 {offsets = [0, 96], sizes = [2, 32], strides = [1, 1]} : vector<2x128xf32> to vector<2x32xf32>
    %c0_98 = arith.constant 0 : index
    %c0_99 = arith.constant 0 : index
    %189 = vector.load %arg13[%c0_98, %c0_99] : memref<2x32xf32, #tpu.memory_space<vmem>>, vector<2x32xf32>
    %190 = arith.mulf %186, %189 : vector<2x32xf32>
    %191 = arith.mulf %185, %187 : vector<2x32xf32>
    %192 = arith.addf %190, %191 : vector<2x32xf32>
    %193 = math.tanh %192 : vector<2x32xf32>
    %194 = arith.mulf %188, %193 : vector<2x32xf32>
    %c0_100 = arith.constant 0 : index
    %c0_101 = arith.constant 0 : index
    %195 = vector.load %arg13[%c0_100, %c0_101] : memref<2x32xf32, #tpu.memory_space<vmem>>, vector<2x32xf32>
    tpu.vector_store %arg13[%c0_100, %c0_101], %192 {strides = array<i32>} : memref<2x32xf32, #tpu.memory_space<vmem>>, vector<2x32xf32>,
    %c0_102 = arith.constant 0 : index
    %c0_103 = arith.constant 0 : index
    %196 = vector.load %arg12[%c0_102, %c0_103] : memref<2x32xf32, #tpu.memory_space<vmem>>, vector<2x32xf32>
    tpu.vector_store %arg12[%c0_102, %c0_103], %194 {strides = array<i32>} : memref<2x32xf32, #tpu.memory_space<vmem>>, vector<2x32xf32>,
    %c2_i32_104 = arith.constant 2 : i32
    %197 = arith.muli %c6_i32, %c2_i32_104 : i32
    %198 = tpu.assume_multiple %197, 2 : i32
    %199 = arith.index_cast %198 : i32 to index
    %c0_105 = arith.constant 0 : index
    %200 = vector.load %arg14[%199, %c0_105] : memref<16x32xf32, #tpu.memory_space<vmem>>, vector<2x32xf32>
    tpu.vector_store %arg14[%199, %c0_105], %194 {strides = array<i32>} : memref<16x32xf32, #tpu.memory_space<vmem>>, vector<2x32xf32>,
    %c7_i32 = arith.constant 7 : i32
    %c0_106 = arith.constant 0 : index
    %c0_107 = arith.constant 0 : index
    %201 = vector.load %arg12[%c0_106, %c0_107] : memref<2x32xf32, #tpu.memory_space<vmem>>, vector<2x32xf32>
    %cst_108 = arith.constant dense<0.000000e+00> : vector<2x128xf32>
    %202 = tpu.matmul %201, %0, %cst_108 {dimension_numbers = #tpu.dot_dimension_numbers<[1], [0], [0], [1], [0, 0, 1, 1], [], []>, precision = #tpu.contract_precision<fp32>} : vector<2x32xf32>, vector<32x128xf32>, vector<2x128xf32> -> vector<2x128xf32>
    %203 = arith.index_cast %c7_i32 : i32 to index
    %c0_109 = arith.constant 0 : index
    %c0_110 = arith.constant 0 : index
    %204 = vector.load %arg0[%203, %c0_109, %c0_110] : memref<8x2x128xf32, #tpu.memory_space<vmem>>, vector<1x2x128xf32>
    %205 = vector.shape_cast %204 : vector<1x2x128xf32> to vector<2x128xf32>
    %206 = arith.addf %202, %205 : vector<2x128xf32>
    %207 = arith.negf %206 : vector<2x128xf32>
    %208 = math.exp %207 : vector<2x128xf32>
    %cst_111 = arith.constant 1.000000e+00 : f32
    %209 = vector.broadcast %cst_111 : f32 to vector<2x128xf32>
    %210 = arith.addf %209, %208 : vector<2x128xf32>
    %211 = arith.divf %209, %210 : vector<2x128xf32>
    %212 = math.tanh %206 : vector<2x128xf32>
    %213 = vector.extract_strided_slice %211 {offsets = [0, 0], sizes = [2, 32], strides = [1, 1]} : vector<2x128xf32> to vector<2x32xf32>
    %214 = vector.extract_strided_slice %211 {offsets = [0, 32], sizes = [2, 32], strides = [1, 1]} : vector<2x128xf32> to vector<2x32xf32>
    %215 = vector.extract_strided_slice %212 {offsets = [0, 64], sizes = [2, 32], strides = [1, 1]} : vector<2x128xf32> to vector<2x32xf32>
    %216 = vector.extract_strided_slice %211 {offsets = [0, 96], sizes = [2, 32], strides = [1, 1]} : vector<2x128xf32> to vector<2x32xf32>
    %c0_112 = arith.constant 0 : index
    %c0_113 = arith.constant 0 : index
    %217 = vector.load %arg13[%c0_112, %c0_113] : memref<2x32xf32, #tpu.memory_space<vmem>>, vector<2x32xf32>
    %218 = arith.mulf %214, %217 : vector<2x32xf32>
    %219 = arith.mulf %213, %215 : vector<2x32xf32>
    %220 = arith.addf %218, %219 : vector<2x32xf32>
    %221 = math.tanh %220 : vector<2x32xf32>
    %222 = arith.mulf %216, %221 : vector<2x32xf32>
    %c0_114 = arith.constant 0 : index
    %c0_115 = arith.constant 0 : index
    %223 = vector.load %arg13[%c0_114, %c0_115] : memref<2x32xf32, #tpu.memory_space<vmem>>, vector<2x32xf32>
    tpu.vector_store %arg13[%c0_114, %c0_115], %220 {strides = array<i32>} : memref<2x32xf32, #tpu.memory_space<vmem>>, vector<2x32xf32>,
    %c0_116 = arith.constant 0 : index
    %c0_117 = arith.constant 0 : index
    %224 = vector.load %arg12[%c0_116, %c0_117] : memref<2x32xf32, #tpu.memory_space<vmem>>, vector<2x32xf32>
    tpu.vector_store %arg12[%c0_116, %c0_117], %222 {strides = array<i32>} : memref<2x32xf32, #tpu.memory_space<vmem>>, vector<2x32xf32>,
    %c2_i32_118 = arith.constant 2 : i32
    %225 = arith.muli %c7_i32, %c2_i32_118 : i32
    %226 = tpu.assume_multiple %225, 2 : i32
    %227 = arith.index_cast %226 : i32 to index
    %c0_119 = arith.constant 0 : index
    %228 = vector.load %arg14[%227, %c0_119] : memref<16x32xf32, #tpu.memory_space<vmem>>, vector<2x32xf32>
    tpu.vector_store %arg14[%227, %c0_119], %222 {strides = array<i32>} : memref<16x32xf32, #tpu.memory_space<vmem>>, vector<2x32xf32>,
    %c8_i32 = arith.constant 8 : i32
    %c0_120 = arith.constant 0 : index
    %c0_121 = arith.constant 0 : index
    %229 = vector.load %arg14[%c0_120, %c0_121] : memref<16x32xf32, #tpu.memory_space<vmem>>, vector<16x32xf32>
    %c0_122 = arith.constant 0 : index
    %c0_123 = arith.constant 0 : index
    %230 = vector.load %arg2[%c0_122, %c0_123] : memref<32x16xf32, #tpu.memory_space<vmem>>, vector<32x16xf32>
    %cst_124 = arith.constant dense<0.000000e+00> : vector<16x16xf32>
    %231 = tpu.matmul %229, %230, %cst_124 {dimension_numbers = #tpu.dot_dimension_numbers<[1], [0], [0], [1], [0, 0, 1, 1], [], []>, precision = #tpu.contract_precision<fp32>} : vector<16x32xf32>, vector<32x16xf32>, vector<16x16xf32> -> vector<16x16xf32>
    %c0_125 = arith.constant 0 : index
    %c0_126 = arith.constant 0 : index
    %232 = vector.load %arg3[%c0_125, %c0_126] : memref<1x16xf32, #tpu.memory_space<vmem>>, vector<1x16xf32>
    %233 = vector.broadcast %232 : vector<1x16xf32> to vector<16x16xf32>
    %234 = arith.addf %231, %233 : vector<16x16xf32>
    %c0_127 = arith.constant 0 : index
    %c0_128 = arith.constant 0 : index
    %235 = vector.load %arg8[%c0_127, %c0_128] : memref<16x16xf32, #tpu.memory_space<vmem>>, vector<16x16xf32>
    tpu.vector_store %arg8[%c0_127, %c0_128], %234 {strides = array<i32>} : memref<16x16xf32, #tpu.memory_space<vmem>>, vector<16x16xf32>,
    %c0_129 = arith.constant 0 : index
    %c0_130 = arith.constant 0 : index
    %236 = vector.load %arg12[%c0_129, %c0_130] : memref<2x32xf32, #tpu.memory_space<vmem>>, vector<2x32xf32>
    %c0_131 = arith.constant 0 : index
    %c0_132 = arith.constant 0 : index
    %237 = vector.load %arg4[%c0_131, %c0_132] : memref<32x4xf32, #tpu.memory_space<vmem>>, vector<32x4xf32>
    %cst_133 = arith.constant dense<0.000000e+00> : vector<2x4xf32>
    %238 = tpu.matmul %236, %237, %cst_133 {dimension_numbers = #tpu.dot_dimension_numbers<[1], [0], [0], [1], [0, 0, 1, 1], [], []>, precision = #tpu.contract_precision<fp32>} : vector<2x32xf32>, vector<32x4xf32>, vector<2x4xf32> -> vector<2x4xf32>
    %c0_134 = arith.constant 0 : index
    %c0_135 = arith.constant 0 : index
    %239 = vector.load %arg5[%c0_134, %c0_135] : memref<1x4xf32, #tpu.memory_space<vmem>>, vector<1x4xf32>
    %240 = vector.broadcast %239 : vector<1x4xf32> to vector<2x4xf32>
    %241 = arith.addf %238, %240 : vector<2x4xf32>
    %c0_136 = arith.constant 0 : index
    %c0_137 = arith.constant 0 : index
    %242 = vector.load %arg9[%c0_136, %c0_137] : memref<2x4xf32, #tpu.memory_space<vmem>>, vector<2x4xf32>
    tpu.vector_store %arg9[%c0_136, %c0_137], %241 {strides = array<i32>} : memref<2x4xf32, #tpu.memory_space<vmem>>, vector<2x4xf32>,
    %c0_138 = arith.constant 0 : index
    %c0_139 = arith.constant 0 : index
    %243 = vector.load %arg10[%c0_138, %c0_139] : memref<2x32xf32, #tpu.memory_space<vmem>>, vector<2x32xf32>
    tpu.vector_store %arg10[%c0_138, %c0_139], %236 {strides = array<i32>} : memref<2x32xf32, #tpu.memory_space<vmem>>, vector<2x32xf32>,
    %c0_140 = arith.constant 0 : index
    %c0_141 = arith.constant 0 : index
    %244 = vector.load %arg13[%c0_140, %c0_141] : memref<2x32xf32, #tpu.memory_space<vmem>>, vector<2x32xf32>
    %c0_142 = arith.constant 0 : index
    %c0_143 = arith.constant 0 : index
    %245 = vector.load %arg11[%c0_142, %c0_143] : memref<2x32xf32, #tpu.memory_space<vmem>>, vector<2x32xf32>
    tpu.vector_store %arg11[%c0_142, %c0_143], %244 {strides = array<i32>} : memref<2x32xf32, #tpu.memory_space<vmem>>, vector<2x32xf32>,
    return
  }
}

</mosaic_0001>

<llo_original>
// kernel: tpu_custom_call.1
$region0: #{tpu_custom_call.1}
  #allocation0 [shape = 'u32[]', space=smem, size = 0x4, offset = 0x4, fixed_abs, tag = 'smem constant byte address 0x4 - core index']
  #allocation1 [shape = 'u32[144,128]{1,0:T(1,128)}', space=vmem, size = 0x12000, scoped, tag = 'internal scratch']
  #allocation2 [shape = 'f32[2,32]{1,0:T(2,128)}', space=vmem, size = 0x400, scoped, tag = 'scratch operand']
  #allocation3 [shape = 'f32[2,32]{1,0:T(2,128)}', space=vmem, size = 0x400, scoped, tag = 'scratch operand']
  #allocation4 [shape = 'f32[16,32]{1,0:T(8,128)}', space=vmem, size = 0x2000, scoped, tag = 'scratch operand']
  %s0 = inlined_call_operand.vmem [shape: f32[8,2,128], index: 0, kind: input, shape index: {}]
  %s1 = inlined_call_operand.vmem [shape: f32[32,128], index: 1, kind: input, shape index: {}]
  %s2 = inlined_call_operand.vmem [shape: f32[32,16], index: 2, kind: input, shape index: {}]
  %s3 = inlined_call_operand.vmem [shape: f32[1,16], index: 3, kind: input, shape index: {}]
  %s4 = inlined_call_operand.vmem [shape: f32[32,4], index: 4, kind: input, shape index: {}]
  %s5 = inlined_call_operand.vmem [shape: f32[1,4], index: 5, kind: input, shape index: {}]
  %s6 = inlined_call_operand.vmem [shape: f32[2,32], index: 6, kind: input, shape index: {}]
  %s7 = inlined_call_operand.vmem [shape: f32[2,32], index: 7, kind: input, shape index: {}]
  %s8 = inlined_call_operand.hbm [shape: f32[16,16], index: 8, kind: output, shape index: {0}]
  %s9 = inlined_call_operand.hbm [shape: f32[2,4], index: 9, kind: output, shape index: {1}]
  %s10 = inlined_call_operand.hbm [shape: f32[2,32], index: 10, kind: output, shape index: {2}]
  %s11 = inlined_call_operand.hbm [shape: f32[2,32], index: 11, kind: output, shape index: {3}]
  %12 = xla_tuple %s8, %s9, %s10, %s11
  %s13 = sld [smem:[#allocation0]]
  $region66: #{tpu_custom_call.1} parent=0
    _
  %s15 = ssub.s32 1, %s13
  %s16 = scalar_select 0, %s15, %s13
  $region1: #{tpu_custom_call.1} parent=0
    #allocation5 [shape = 'u8[8192]{0}', space=vmem, size = 0x2000, scoped, tag = 'output window, operand 0, single buffered']
    #allocation6 [shape = 's32[1]{0}', space=sflag, size = 0x4, scoped, tag = 'scoped memory for tpu_custom_call.1']
    #allocation7 [shape = 'u8[1024]{0}', space=vmem, size = 0x400, scoped, tag = 'output window, operand 1, single buffered']
    #allocation8 [shape = 's32[1]{0}', space=sflag, size = 0x4, scoped, tag = 'scoped memory for tpu_custom_call.1']
    #allocation9 [shape = 'u8[1024]{0}', space=vmem, size = 0x400, scoped, tag = 'output window, operand 2, single buffered']
    #allocation10 [shape = 'u8[1024]{0}', space=vmem, size = 0x400, scoped, tag = 'output window, operand 3, single buffered']
    #allocation11 [shape = 's32[1]{0}', space=sflag, size = 0x4, scoped, tag = 'scoped memory for tpu_custom_call.1']
    %17 = vsyncpa [#allocation6], 0
    %18 = vsyncpa [#allocation8], 0
    %19 = vsyncpa [#allocation11], 0
    // Predicated region
    $region2: #{tpu_custom_call.1} parent=1 // pred_check
      _
    $region3: #{tpu_custom_call.1} parent=1 // pred_check_branch
      %21 = sbr.rel (0) target = $region5
    $region4: #{tpu_custom_call.1} parent=1 // pred_region
      _
    $region5: #{tpu_custom_call.1} parent=1 // pred_fallthru
      _
    // Predicated region
    $region6: #{tpu_custom_call.1} parent=1 // pred_check
      _
    $region7: #{tpu_custom_call.1} parent=1 // pred_check_branch
      %23 = sbr.rel (0) target = $region9
    $region8: #{tpu_custom_call.1} parent=1 // pred_region
      _
    $region9: #{tpu_custom_call.1} parent=1 // pred_fallthru
      _
    // Predicated region
    $region10: #{tpu_custom_call.1} parent=1 // pred_check
      _
    $region11: #{tpu_custom_call.1} parent=1 // pred_check_branch
      %25 = sbr.rel (0) target = $region13
    $region12: #{tpu_custom_call.1} parent=1 // pred_region
      _
    $region13: #{tpu_custom_call.1} parent=1 // pred_fallthru
      _
    // Predicated region
    $region14: #{tpu_custom_call.1} parent=1 // pred_check
      _
    $region15: #{tpu_custom_call.1} parent=1 // pred_check_branch
      %27 = sbr.rel (0) target = $region17
    $region16: #{tpu_custom_call.1} parent=1 // pred_region
      _
    $region17: #{tpu_custom_call.1} parent=1 // pred_fallthru
      _
    // Predicated region
    $region18: #{tpu_custom_call.1} parent=1 // pred_check
      _
    $region19: #{tpu_custom_call.1} parent=1 // pred_check_branch
      %29 = sbr.rel (0) target = $region21
    $region20: #{tpu_custom_call.1} parent=1 // pred_region
      _
    $region21: #{tpu_custom_call.1} parent=1 // pred_fallthru
      _
    // Predicated region
    $region22: #{tpu_custom_call.1} parent=1 // pred_check
      _
    $region23: #{tpu_custom_call.1} parent=1 // pred_check_branch
      %31 = sbr.rel (0) target = $region25
    $region24: #{tpu_custom_call.1} parent=1 // pred_region
      _
    $region25: #{tpu_custom_call.1} parent=1 // pred_fallthru
      _
    // Predicated region
    $region26: #{tpu_custom_call.1} parent=1 // pred_check
      _
    $region27: #{tpu_custom_call.1} parent=1 // pred_check_branch
      %33 = sbr.rel (0) target = $region29
    $region28: #{tpu_custom_call.1} parent=1 // pred_region
      _
    $region29: #{tpu_custom_call.1} parent=1 // pred_fallthru
      _
    // Predicated region
    $region30: #{tpu_custom_call.1} parent=1 // pred_check
      _
    $region31: #{tpu_custom_call.1} parent=1 // pred_check_branch
      %35 = sbr.rel (0) target = $region33
    $region32: #{tpu_custom_call.1} parent=1 // pred_region
      _
    $region33: #{tpu_custom_call.1} parent=1 // pred_fallthru
      _
    %v36 = vld [vmem:[%s1] sm:$0xff]
    %v37 = vld [vmem:[%s1 + $0x8] sm:$0xff]
    %v38 = vld [vmem:[%s1 + $0x10] sm:$0xff]
    %v39 = vld [vmem:[%s1 + $0x18] sm:$0xff]
    %v40 = vld [vmem:[%s6] sm:$0x3]
    %vm41 = vcmask 254976
    %42 = vst.msk [vmem:[#allocation2] sm:$0x3] %vm41, %v40
    %v43 = vld [vmem:[%s7] sm:$0x3]
    %44 = vst.msk [vmem:[#allocation3] sm:$0x3] %vm41, %v43
    %v45 = vld [vmem:[#allocation2] sm:$0x3]
    %v46 = vld [vmem:[%s0] sm:$0x3]
    %vm47 = vcmask 261120
    %v49 = vsel %vm47, %v45, 0
    %51 = vmatprep.subr.mxu0 0.0
    %v52 = vand.u32 %v36, 4294901760
    %53 = vmatpush1.msra.mxu0 %v52
    %54 = vmatprep.subr.mxu0 0.0
    %v55 = vand.u32 %v37, 4294901760
    %56 = vmatpush1.msra.mxu0 %v55
    %57 = vmatprep.subr.mxu0 0.0
    %v58 = vand.u32 %v38, 4294901760
    %59 = vmatpush1.msra.mxu0 %v58
    %60 = vmatprep.subr.mxu0 0.0
    %v61 = vand.u32 %v39, 4294901760
    %62 = vmatpush1.msra.mxu0 %v61
    %63 = vmatprep.subr.mxu0 0.0
    %64 = vmatpush1.msra.mxu0 0.0
    %65 = vmatprep.subr.mxu0 0.0
    %66 = vmatpush1.msra.mxu0 0.0
    %67 = vmatprep.subr.mxu0 0.0
    %68 = vmatpush1.msra.mxu0 0.0
    %69 = vmatprep.subr.mxu0 0.0
    %70 = vmatpush1.msra.mxu0 0.0
    %71 = vmatprep.subr.mxu0 0.0
    %72 = vmatpush1.msra.mxu0 0.0
    %73 = vmatprep.subr.mxu0 0.0
    %74 = vmatpush1.msra.mxu0 0.0
    %75 = vmatprep.subr.mxu0 0.0
    %76 = vmatpush1.msra.mxu0 0.0
    %77 = vmatprep.subr.mxu0 0.0
    %78 = vmatpush1.msra.mxu0 0.0
    %79 = vmatprep.subr.mxu0 0.0
    %80 = vmatpush1.msra.mxu0 0.0
    %81 = vmatprep.subr.mxu0 0.0
    %82 = vmatpush1.msra.mxu0 0.0
    %83 = vmatprep.subr.mxu0 0.0
    %84 = vmatpush1.msra.mxu0 0.0
    %85 = vmatprep.subr.mxu0 0.0
    %86 = vmatpush1.msra.mxu0 0.0
    %87 = vmatprep.subr.mxu0 0.0
    %88 = vmatpush1.msra.mxu0 0.0
    %89 = vmatprep.subr.mxu0 0.0
    %90 = vmatpush1.msra.mxu0 0.0
    %91 = vmatprep.subr.mxu0 0.0
    %92 = vmatpush1.msra.mxu0 0.0
    %93 = vmatprep.subr.mxu0 0.0
    %94 = vmatpush1.msra.mxu0 0.0
    %95 = vmatprep.subr.mxu0 0.0
    %96 = vmatpush1.msra.mxu0 0.0
    %97 = vmatprep.subr.mxu0 0.0
    %98 = vmatpush1.msra.mxu0 0.0
    %99 = vmatprep.subr.mxu0 0.0
    %100 = vmatpush1.msra.mxu0 0.0
    %101 = vmatprep.subr.mxu0 0.0
    %102 = vmatpush1.msra.mxu0 0.0
    %103 = vmatprep.subr.mxu0 0.0
    %104 = vmatpush1.msra.mxu0 0.0
    %105 = vmatprep.subr.mxu0 0.0
    %106 = vmatpush1.msra.mxu0 0.0
    %107 = vmatprep.subr.mxu0 0.0
    %108 = vmatpush1.msra.mxu0 0.0
    %109 = vmatprep.subr.mxu0 0.0
    %110 = vmatpush1.msra.mxu0 0.0
    %111 = vmatprep.subr.mxu0 0.0
    %112 = vmatpush1.msra.mxu0 0.0
    %113 = vmatprep.subr.mxu0 0.0
    %114 = vmatpush1.msra.mxu0 0.0
    %115 = vmatprep.subr.mxu0 0.0
    %116 = vmatpush1.msra.mxu0 0.0
    %117 = vmatprep.subr.mxu0 0.0
    %118 = vmatpush1.msra.mxu0 0.0
    %119 = vmatprep.mubr.f32.mxu0 0.0
    %v120 = vand.u32 %v49, 4294901760
    %v121 = vsub.f32 %v49, %v120
    %v122 = vand.u32 %v121, 4294901760
    %v123 = vsub.f32 %v121, %v122
    %v124 = vand.u32 %v123, 4294901760
    %125 = vmatmul.mubr.f32.gmra.mrb[0].mxu0 %v124
    %v126 = vpop.f32.mrb[0].mxu0
    %v127 = vadd.f32 %v46, %v126
    %v128 = vpop.f32.mrb[0].mxu0
    %129 = vdwg.mxu0
    %130 = vmatprep.subr.mxu0 0.0
    %v131 = vand.u32 %v36, 4294901760
    %v132 = vsub.f32 %v36, %v131
    %v133 = vand.u32 %v132, 4294901760
    %v134 = vsub.f32 %v132, %v133
    %v135 = vand.u32 %v134, 4294901760
    %136 = vmatpush1.msra.mxu0 %v135
    %137 = vmatprep.subr.mxu0 0.0
    %v138 = vand.u32 %v37, 4294901760
    %v139 = vsub.f32 %v37, %v138
    %v140 = vand.u32 %v139, 4294901760
    %v141 = vsub.f32 %v139, %v140
    %v142 = vand.u32 %v141, 4294901760
    %143 = vmatpush1.msra.mxu0 %v142
    %144 = vmatprep.subr.mxu0 0.0
    %v145 = vand.u32 %v38, 4294901760
    %v146 = vsub.f32 %v38, %v145
    %v147 = vand.u32 %v146, 4294901760
    %v148 = vsub.f32 %v146, %v147
    %v149 = vand.u32 %v148, 4294901760
    %150 = vmatpush1.msra.mxu0 %v149
    %151 = vmatprep.subr.mxu0 0.0
    %v152 = vand.u32 %v39, 4294901760
    %v153 = vsub.f32 %v39, %v152
    %v154 = vand.u32 %v153, 4294901760
    %v155 = vsub.f32 %v153, %v154
    %v156 = vand.u32 %v155, 4294901760
    %157 = vmatpush1.msra.mxu0 %v156
    %158 = vmatprep.subr.mxu0 0.0
    %159 = vmatpush1.msra.mxu0 0.0
    %160 = vmatprep.subr.mxu0 0.0
    %161 = vmatpush1.msra.mxu0 0.0
    %162 = vmatprep.subr.mxu0 0.0
    %163 = vmatpush1.msra.mxu0 0.0
    %164 = vmatprep.subr.mxu0 0.0
    %165 = vmatpush1.msra.mxu0 0.0
    %166 = vmatprep.subr.mxu0 0.0
    %167 = vmatpush1.msra.mxu0 0.0
    %168 = vmatprep.subr.mxu0 0.0
    %169 = vmatpush1.msra.mxu0 0.0
    %170 = vmatprep.subr.mxu0 0.0
    %171 = vmatpush1.msra.mxu0 0.0
    %172 = vmatprep.subr.mxu0 0.0
    %173 = vmatpush1.msra.mxu0 0.0
    %174 = vmatprep.subr.mxu0 0.0
    %175 = vmatpush1.msra.mxu0 0.0
    %176 = vmatprep.subr.mxu0 0.0
    %177 = vmatpush1.msra.mxu0 0.0
    %178 = vmatprep.subr.mxu0 0.0
    %179 = vmatpush1.msra.mxu0 0.0
    %180 = vmatprep.subr.mxu0 0.0
    %181 = vmatpush1.msra.mxu0 0.0
    %182 = vmatprep.subr.mxu0 0.0
    %183 = vmatpush1.msra.mxu0 0.0
    %184 = vmatprep.subr.mxu0 0.0
    %185 = vmatpush1.msra.mxu0 0.0
    %186 = vmatprep.subr.mxu0 0.0
    %187 = vmatpush1.msra.mxu0 0.0
    %188 = vmatprep.subr.mxu0 0.0
    %189 = vmatpush1.msra.mxu0 0.0
    %190 = vmatprep.subr.mxu0 0.0
    %191 = vmatpush1.msra.mxu0 0.0
    %192 = vmatprep.subr.mxu0 0.0
    %193 = vmatpush1.msra.mxu0 0.0
    %194 = vmatprep.subr.mxu0 0.0
    %195 = vmatpush1.msra.mxu0 0.0
    %196 = vmatprep.subr.mxu0 0.0
    %197 = vmatpush1.msra.mxu0 0.0
    %198 = vmatprep.subr.mxu0 0.0
    %199 = vmatpush1.msra.mxu0 0.0
    %200 = vmatprep.subr.mxu0 0.0
    %201 = vmatpush1.msra.mxu0 0.0
    %202 = vmatprep.subr.mxu0 0.0
    %203 = vmatpush1.msra.mxu0 0.0
    %204 = vmatprep.subr.mxu0 0.0
    %205 = vmatpush1.msra.mxu0 0.0
    %206 = vmatprep.subr.mxu0 0.0
    %207 = vmatpush1.msra.mxu0 0.0
    %208 = vmatprep.subr.mxu0 0.0
    %209 = vmatpush1.msra.mxu0 0.0
    %210 = vmatprep.subr.mxu0 0.0
    %211 = vmatpush1.msra.mxu0 0.0
    %212 = vmatprep.subr.mxu0 0.0
    %213 = vmatpush1.msra.mxu0 0.0
    %214 = vmatprep.mubr.f32.mxu0 0.0
    %v215 = vand.u32 %v49, 4294901760
    %216 = vmatmul.mubr.f32.gmra.mrb[0].mxu0 %v215
    %v217 = vpop.f32.mrb[0].mxu0
    %v218 = vadd.f32 %v127, %v217
    %v219 = vpop.f32.mrb[0].mxu0
    %220 = vdwg.mxu0
    %221 = vmatprep.subr.mxu0 0.0
    %v222 = vand.u32 %v36, 4294901760
    %v223 = vsub.f32 %v36, %v222
    %224 = vmatpush1.msra.mxu0 %v223
    %225 = vmatprep.subr.mxu0 0.0
    %v226 = vand.u32 %v37, 4294901760
    %v227 = vsub.f32 %v37, %v226
    %228 = vmatpush1.msra.mxu0 %v227
    %229 = vmatprep.subr.mxu0 0.0
    %v230 = vand.u32 %v38, 4294901760
    %v231 = vsub.f32 %v38, %v230
    %232 = vmatpush1.msra.mxu0 %v231
    %233 = vmatprep.subr.mxu0 0.0
    %v234 = vand.u32 %v39, 4294901760
    %v235 = vsub.f32 %v39, %v234
    %236 = vmatpush1.msra.mxu0 %v235
    %237 = vmatprep.subr.mxu0 0.0
    %238 = vmatpush1.msra.mxu0 0.0
    %239 = vmatprep.subr.mxu0 0.0
    %240 = vmatpush1.msra.mxu0 0.0
    %241 = vmatprep.subr.mxu0 0.0
    %242 = vmatpush1.msra.mxu0 0.0
    %243 = vmatprep.subr.mxu0 0.0
    %244 = vmatpush1.msra.mxu0 0.0
    %245 = vmatprep.subr.mxu0 0.0
    %246 = vmatpush1.msra.mxu0 0.0
    %247 = vmatprep.subr.mxu0 0.0
    %248 = vmatpush1.msra.mxu0 0.0
    %249 = vmatprep.subr.mxu0 0.0
    %250 = vmatpush1.msra.mxu0 0.0
    %251 = vmatprep.subr.mxu0 0.0
    %252 = vmatpush1.msra.mxu0 0.0
    %253 = vmatprep.subr.mxu0 0.0
    %254 = vmatpush1.msra.mxu0 0.0
    %255 = vmatprep.subr.mxu0 0.0
    %256 = vmatpush1.msra.mxu0 0.0
    %257 = vmatprep.subr.mxu0 0.0
    %258 = vmatpush1.msra.mxu0 0.0
    %259 = vmatprep.subr.mxu0 0.0
    %260 = vmatpush1.msra.mxu0 0.0
    %261 = vmatprep.subr.mxu0 0.0
    %262 = vmatpush1.msra.mxu0 0.0
    %263 = vmatprep.subr.mxu0 0.0
    %264 = vmatpush1.msra.mxu0 0.0
    %265 = vmatprep.subr.mxu0 0.0
    %266 = vmatpush1.msra.mxu0 0.0
    %267 = vmatprep.subr.mxu0 0.0
    %268 = vmatpush1.msra.mxu0 0.0
    %269 = vmatprep.subr.mxu0 0.0
    %270 = vmatpush1.msra.mxu0 0.0
    %271 = vmatprep.subr.mxu0 0.0
    %272 = vmatpush1.msra.mxu0 0.0
    %273 = vmatprep.subr.mxu0 0.0
    %274 = vmatpush1.msra.mxu0 0.0
    %275 = vmatprep.subr.mxu0 0.0
    %276 = vmatpush1.msra.mxu0 0.0
    %277 = vmatprep.subr.mxu0 0.0
    %278 = vmatpush1.msra.mxu0 0.0
    %279 = vmatprep.subr.mxu0 0.0
    %280 = vmatpush1.msra.mxu0 0.0
    %281 = vmatprep.subr.mxu0 0.0
    %282 = vmatpush1.msra.mxu0 0.0
    %283 = vmatprep.subr.mxu0 0.0
    %284 = vmatpush1.msra.mxu0 0.0
    %285 = vmatprep.subr.mxu0 0.0
    %286 = vmatpush1.msra.mxu0 0.0
    %287 = vmatprep.subr.mxu0 0.0
    %288 = vmatpush1.msra.mxu0 0.0
    %289 = vmatprep.subr.mxu0 0.0
    %290 = vmatpush1.msra.mxu0 0.0
    %291 = vmatprep.subr.mxu0 0.0
    %292 = vmatpush1.msra.mxu0 0.0
    %293 = vmatprep.mubr.f32.mxu0 0.0
    %v294 = vand.u32 %v49, 4294901760
    %v295 = vsub.f32 %v49, %v294
    %296 = vmatmul.mubr.f32.gmra.mrb[0].mxu0 %v295
    %v297 = vpop.f32.mrb[0].mxu0
    %v298 = vadd.f32 %v218, %v297
    %v299 = vpop.f32.mrb[0].mxu0
    %300 = vdwg.mxu0
    %301 = vmatprep.subr.mxu0 0.0
    %v302 = vand.u32 %v36, 4294901760
    %303 = vmatpush1.msra.mxu0 %v302
    %304 = vmatprep.subr.mxu0 0.0
    %v305 = vand.u32 %v37, 4294901760
    %306 = vmatpush1.msra.mxu0 %v305
    %307 = vmatprep.subr.mxu0 0.0
    %v308 = vand.u32 %v38, 4294901760
    %309 = vmatpush1.msra.mxu0 %v308
    %310 = vmatprep.subr.mxu0 0.0
    %v311 = vand.u32 %v39, 4294901760
    %312 = vmatpush1.msra.mxu0 %v311
    %313 = vmatprep.subr.mxu0 0.0
    %314 = vmatpush1.msra.mxu0 0.0
    %315 = vmatprep.subr.mxu0 0.0
    %316 = vmatpush1.msra.mxu0 0.0
    %317 = vmatprep.subr.mxu0 0.0
    %318 = vmatpush1.msra.mxu0 0.0
    %319 = vmatprep.subr.mxu0 0.0
    %320 = vmatpush1.msra.mxu0 0.0
    %321 = vmatprep.subr.mxu0 0.0
    %322 = vmatpush1.msra.mxu0 0.0
    %323 = vmatprep.subr.mxu0 0.0
    %324 = vmatpush1.msra.mxu0 0.0
    %325 = vmatprep.subr.mxu0 0.0
    %326 = vmatpush1.msra.mxu0 0.0
    %327 = vmatprep.subr.mxu0 0.0
    %328 = vmatpush1.msra.mxu0 0.0
    %329 = vmatprep.subr.mxu0 0.0
    %330 = vmatpush1.msra.mxu0 0.0
    %331 = vmatprep.subr.mxu0 0.0
    %332 = vmatpush1.msra.mxu0 0.0
    %333 = vmatprep.subr.mxu0 0.0
    %334 = vmatpush1.msra.mxu0 0.0
    %335 = vmatprep.subr.mxu0 0.0
    %336 = vmatpush1.msra.mxu0 0.0
    %337 = vmatprep.subr.mxu0 0.0
    %338 = vmatpush1.msra.mxu0 0.0
    %339 = vmatprep.subr.mxu0 0.0
    %340 = vmatpush1.msra.mxu0 0.0
    %341 = vmatprep.subr.mxu0 0.0
    %342 = vmatpush1.msra.mxu0 0.0
    %343 = vmatprep.subr.mxu0 0.0
    %344 = vmatpush1.msra.mxu0 0.0
    %345 = vmatprep.subr.mxu0 0.0
    %346 = vmatpush1.msra.mxu0 0.0
    %347 = vmatprep.subr.mxu0 0.0
    %348 = vmatpush1.msra.mxu0 0.0
    %349 = vmatprep.subr.mxu0 0.0
    %350 = vmatpush1.msra.mxu0 0.0
    %351 = vmatprep.subr.mxu0 0.0
    %352 = vmatpush1.msra.mxu0 0.0
    %353 = vmatprep.subr.mxu0 0.0
    %354 = vmatpush1.msra.mxu0 0.0
    %355 = vmatprep.subr.mxu0 0.0
    %356 = vmatpush1.msra.mxu0 0.0
    %357 = vmatprep.subr.mxu0 0.0
    %358 = vmatpush1.msra.mxu0 0.0
    %359 = vmatprep.subr.mxu0 0.0
    %360 = vmatpush1.msra.mxu0 0.0
    %361 = vmatprep.subr.mxu0 0.0
    %362 = vmatpush1.msra.mxu0 0.0
    %363 = vmatprep.subr.mxu0 0.0
    %364 = vmatpush1.msra.mxu0 0.0
    %365 = vmatprep.subr.mxu0 0.0
    %366 = vmatpush1.msra.mxu0 0.0
    %367 = vmatprep.subr.mxu0 0.0
    %368 = vmatpush1.msra.mxu0 0.0
    %369 = vmatprep.mubr.f32.mxu0 0.0
    %v370 = vand.u32 %v49, 4294901760
    %v371 = vsub.f32 %v49, %v370
    %v372 = vand.u32 %v371, 4294901760
    %373 = vmatmul.mubr.f32.gmra.mrb[0].mxu0 %v372
    %v374 = vpop.f32.mrb[0].mxu0
    %v375 = vadd.f32 %v298, %v374
    %v376 = vpop.f32.mrb[0].mxu0
    %377 = vdwg.mxu0
    %378 = vmatprep.subr.mxu0 0.0
    %v379 = vand.u32 %v36, 4294901760
    %v380 = vsub.f32 %v36, %v379
    %v381 = vand.u32 %v380, 4294901760
    %382 = vmatpush1.msra.mxu0 %v381
    %383 = vmatprep.subr.mxu0 0.0
    %v384 = vand.u32 %v37, 4294901760
    %v385 = vsub.f32 %v37, %v384
    %v386 = vand.u32 %v385, 4294901760
    %387 = vmatpush1.msra.mxu0 %v386
    %388 = vmatprep.subr.mxu0 0.0
    %v389 = vand.u32 %v38, 4294901760
    %v390 = vsub.f32 %v38, %v389
    %v391 = vand.u32 %v390, 4294901760
    %392 = vmatpush1.msra.mxu0 %v391
    %393 = vmatprep.subr.mxu0 0.0
    %v394 = vand.u32 %v39, 4294901760
    %v395 = vsub.f32 %v39, %v394
    %v396 = vand.u32 %v395, 4294901760
    %397 = vmatpush1.msra.mxu0 %v396
    %398 = vmatprep.subr.mxu0 0.0
    %399 = vmatpush1.msra.mxu0 0.0
    %400 = vmatprep.subr.mxu0 0.0
    %401 = vmatpush1.msra.mxu0 0.0
    %402 = vmatprep.subr.mxu0 0.0
    %403 = vmatpush1.msra.mxu0 0.0
    %404 = vmatprep.subr.mxu0 0.0
    %405 = vmatpush1.msra.mxu0 0.0
    %406 = vmatprep.subr.mxu0 0.0
    %407 = vmatpush1.msra.mxu0 0.0
    %408 = vmatprep.subr.mxu0 0.0
    %409 = vmatpush1.msra.mxu0 0.0
    %410 = vmatprep.subr.mxu0 0.0
    %411 = vmatpush1.msra.mxu0 0.0
    %412 = vmatprep.subr.mxu0 0.0
    %413 = vmatpush1.msra.mxu0 0.0
    %414 = vmatprep.subr.mxu0 0.0
    %415 = vmatpush1.msra.mxu0 0.0
    %416 = vmatprep.subr.mxu0 0.0
    %417 = vmatpush1.msra.mxu0 0.0
    %418 = vmatprep.subr.mxu0 0.0
    %419 = vmatpush1.msra.mxu0 0.0
    %420 = vmatprep.subr.mxu0 0.0
    %421 = vmatpush1.msra.mxu0 0.0
    %422 = vmatprep.subr.mxu0 0.0
    %423 = vmatpush1.msra.mxu0 0.0
    %424 = vmatprep.subr.mxu0 0.0
    %425 = vmatpush1.msra.mxu0 0.0
    %426 = vmatprep.subr.mxu0 0.0
    %427 = vmatpush1.msra.mxu0 0.0
    %428 = vmatprep.subr.mxu0 0.0
    %429 = vmatpush1.msra.mxu0 0.0
    %430 = vmatprep.subr.mxu0 0.0
    %431 = vmatpush1.msra.mxu0 0.0
    %432 = vmatprep.subr.mxu0 0.0
    %433 = vmatpush1.msra.mxu0 0.0
    %434 = vmatprep.subr.mxu0 0.0
    %435 = vmatpush1.msra.mxu0 0.0
    %436 = vmatprep.subr.mxu0 0.0
    %437 = vmatpush1.msra.mxu0 0.0
    %438 = vmatprep.subr.mxu0 0.0
    %439 = vmatpush1.msra.mxu0 0.0
    %440 = vmatprep.subr.mxu0 0.0
    %441 = vmatpush1.msra.mxu0 0.0
    %442 = vmatprep.subr.mxu0 0.0
    %443 = vmatpush1.msra.mxu0 0.0
    %444 = vmatprep.subr.mxu0 0.0
    %445 = vmatpush1.msra.mxu0 0.0
    %446 = vmatprep.subr.mxu0 0.0
    %447 = vmatpush1.msra.mxu0 0.0
    %448 = vmatprep.subr.mxu0 0.0
    %449 = vmatpush1.msra.mxu0 0.0
    %450 = vmatprep.subr.mxu0 0.0
    %451 = vmatpush1.msra.mxu0 0.0
    %452 = vmatprep.subr.mxu0 0.0
    %453 = vmatpush1.msra.mxu0 0.0
    %454 = vmatprep.mubr.f32.mxu0 0.0
    %v455 = vand.u32 %v49, 4294901760
    %456 = vmatmul.mubr.f32.gmra.mrb[0].mxu0 %v455
    %v457 = vpop.f32.mrb[0].mxu0
    %v458 = vadd.f32 %v375, %v457
    %v459 = vpop.f32.mrb[0].mxu0
    %460 = vdwg.mxu0
    %461 = vmatprep.subr.mxu0 0.0
    %v462 = vand.u32 %v36, 4294901760
    %463 = vmatpush1.msra.mxu0 %v462
    %464 = vmatprep.subr.mxu0 0.0
    %v465 = vand.u32 %v37, 4294901760
    %466 = vmatpush1.msra.mxu0 %v465
    %467 = vmatprep.subr.mxu0 0.0
    %v468 = vand.u32 %v38, 4294901760
    %469 = vmatpush1.msra.mxu0 %v468
    %470 = vmatprep.subr.mxu0 0.0
    %v471 = vand.u32 %v39, 4294901760
    %472 = vmatpush1.msra.mxu0 %v471
    %473 = vmatprep.subr.mxu0 0.0
    %474 = vmatpush1.msra.mxu0 0.0
    %475 = vmatprep.subr.mxu0 0.0
    %476 = vmatpush1.msra.mxu0 0.0
    %477 = vmatprep.subr.mxu0 0.0
    %478 = vmatpush1.msra.mxu0 0.0
    %479 = vmatprep.subr.mxu0 0.0
    %480 = vmatpush1.msra.mxu0 0.0
    %481 = vmatprep.subr.mxu0 0.0
    %482 = vmatpush1.msra.mxu0 0.0
    %483 = vmatprep.subr.mxu0 0.0
    %484 = vmatpush1.msra.mxu0 0.0
    %485 = vmatprep.subr.mxu0 0.0
    %486 = vmatpush1.msra.mxu0 0.0
    %487 = vmatprep.subr.mxu0 0.0
    %488 = vmatpush1.msra.mxu0 0.0
    %489 = vmatprep.subr.mxu0 0.0
    %490 = vmatpush1.msra.mxu0 0.0
    %491 = vmatprep.subr.mxu0 0.0
    %492 = vmatpush1.msra.mxu0 0.0
    %493 = vmatprep.subr.mxu0 0.0
    %494 = vmatpush1.msra.mxu0 0.0
    %495 = vmatprep.subr.mxu0 0.0
    %496 = vmatpush1.msra.mxu0 0.0
    %497 = vmatprep.subr.mxu0 0.0
    %498 = vmatpush1.msra.mxu0 0.0
    %499 = vmatprep.subr.mxu0 0.0
    %500 = vmatpush1.msra.mxu0 0.0
    %501 = vmatprep.subr.mxu0 0.0
    %502 = vmatpush1.msra.mxu0 0.0
    %503 = vmatprep.subr.mxu0 0.0
    %504 = vmatpush1.msra.mxu0 0.0
    %505 = vmatprep.subr.mxu0 0.0
    %506 = vmatpush1.msra.mxu0 0.0
    %507 = vmatprep.subr.mxu0 0.0
    %508 = vmatpush1.msra.mxu0 0.0
    %509 = vmatprep.subr.mxu0 0.0
    %510 = vmatpush1.msra.mxu0 0.0
    %511 = vmatprep.subr.mxu0 0.0
    %512 = vmatpush1.msra.mxu0 0.0
    %513 = vmatprep.subr.mxu0 0.0
    %514 = vmatpush1.msra.mxu0 0.0
    %515 = vmatprep.subr.mxu0 0.0
    %516 = vmatpush1.msra.mxu0 0.0
    %517 = vmatprep.subr.mxu0 0.0
    %518 = vmatpush1.msra.mxu0 0.0
    %519 = vmatprep.subr.mxu0 0.0
    %520 = vmatpush1.msra.mxu0 0.0
    %521 = vmatprep.subr.mxu0 0.0
    %522 = vmatpush1.msra.mxu0 0.0
    %523 = vmatprep.subr.mxu0 0.0
    %524 = vmatpush1.msra.mxu0 0.0
    %525 = vmatprep.subr.mxu0 0.0
    %526 = vmatpush1.msra.mxu0 0.0
    %527 = vmatprep.subr.mxu0 0.0
    %528 = vmatpush1.msra.mxu0 0.0
    %529 = vmatprep.mubr.f32.mxu0 0.0
    %v530 = vand.u32 %v49, 4294901760
    %531 = vmatmul.mubr.f32.gmra.mrb[0].mxu0 %v530
    %v532 = vpop.f32.mrb[0].mxu0
    %v533 = vadd.f32 %v458, %v532
    %v534 = vpop.f32.mrb[0].mxu0
    %535 = vdwg.mxu0
    %v536 = vxor.u32 %v533, 2147483648
    %v537 = vmul.f32 %v536, 1.442695
    %v538 = vpow.pop %v537
    %v539 = vadd.f32 %v538, 1.0
    %v540 = vrcp.pop %v539
    %v541 = vmul.f32 1.0, %v540
    %v542 = vtanh.pop %v533
    %v543 = vld [vmem:[#allocation3] sm:$0x3]
    %545 = vrot.lane.b32.xlu0 %v543, 32
    %v546 = vpop.permute.xlu0 %545
    %v548 = vmul.f32 %v541, %v546
    %550 = vrot.lane.b32.xlu0 %v542, 64
    %v551 = vpop.permute.xlu0 %550
    %v553 = vmul.f32 %v541, %v551
    %555 = vrot.lane.b32.xlu0 %v553, 32
    %v556 = vpop.permute.xlu0 %555
    %v558 = vadd.f32 %v548, %v556
    %v559 = vtanh.pop %v558
    %561 = vrot.lane.b32.xlu0 %v559, 64
    %v562 = vpop.permute.xlu0 %561
    %v564 = vmul.f32 %v541, %v562
    %566 = vrot.lane.b32.xlu0 %v558, 96
    %v567 = vpop.permute.xlu0 %566
    %569 = vst.msk [vmem:[#allocation3] sm:$0x3] %vm41, %v567
    %571 = vrot.lane.b32.xlu0 %v564, 32
    %v572 = vpop.permute.xlu0 %571
    %574 = vst.msk [vmem:[#allocation2] sm:$0x3] %vm41, %v572
    %575 = vst.msk [vmem:[#allocation4] sm:$0x3] %vm41, %v572
    %v576 = vld [vmem:[#allocation2] sm:$0x3]
    %s577 = scalar_lea.vmem %s0, 2
    %v578 = vld [vmem:[%s577] sm:$0x3]
    %v580 = vsel %vm47, %v576, 0
    %582 = vmatprep.subr.mxu0 0.0
    %v583 = vand.u32 %v36, 4294901760
    %584 = vmatpush1.msra.mxu0 %v583
    %585 = vmatprep.subr.mxu0 0.0
    %v586 = vand.u32 %v37, 4294901760
    %587 = vmatpush1.msra.mxu0 %v586
    %588 = vmatprep.subr.mxu0 0.0
    %v589 = vand.u32 %v38, 4294901760
    %590 = vmatpush1.msra.mxu0 %v589
    %591 = vmatprep.subr.mxu0 0.0
    %v592 = vand.u32 %v39, 4294901760
    %593 = vmatpush1.msra.mxu0 %v592
    %594 = vmatprep.subr.mxu0 0.0
    %595 = vmatpush1.msra.mxu0 0.0
    %596 = vmatprep.subr.mxu0 0.0
    %597 = vmatpush1.msra.mxu0 0.0
    %598 = vmatprep.subr.mxu0 0.0
    %599 = vmatpush1.msra.mxu0 0.0
    %600 = vmatprep.subr.mxu0 0.0
    %601 = vmatpush1.msra.mxu0 0.0
    %602 = vmatprep.subr.mxu0 0.0
    %603 = vmatpush1.msra.mxu0 0.0
    %604 = vmatprep.subr.mxu0 0.0
    %605 = vmatpush1.msra.mxu0 0.0
    %606 = vmatprep.subr.mxu0 0.0
    %607 = vmatpush1.msra.mxu0 0.0
    %608 = vmatprep.subr.mxu0 0.0
    %609 = vmatpush1.msra.mxu0 0.0
    %610 = vmatprep.subr.mxu0 0.0
    %611 = vmatpush1.msra.mxu0 0.0
    %612 = vmatprep.subr.mxu0 0.0
    %613 = vmatpush1.msra.mxu0 0.0
    %614 = vmatprep.subr.mxu0 0.0
    %615 = vmatpush1.msra.mxu0 0.0
    %616 = vmatprep.subr.mxu0 0.0
    %617 = vmatpush1.msra.mxu0 0.0
    %618 = vmatprep.subr.mxu0 0.0
    %619 = vmatpush1.msra.mxu0 0.0
    %620 = vmatprep.subr.mxu0 0.0
    %621 = vmatpush1.msra.mxu0 0.0
    %622 = vmatprep.subr.mxu0 0.0
    %623 = vmatpush1.msra.mxu0 0.0
    %624 = vmatprep.subr.mxu0 0.0
    %625 = vmatpush1.msra.mxu0 0.0
    %626 = vmatprep.subr.mxu0 0.0
    %627 = vmatpush1.msra.mxu0 0.0
    %628 = vmatprep.subr.mxu0 0.0
    %629 = vmatpush1.msra.mxu0 0.0
    %630 = vmatprep.subr.mxu0 0.0
    %631 = vmatpush1.msra.mxu0 0.0
    %632 = vmatprep.subr.mxu0 0.0
    %633 = vmatpush1.msra.mxu0 0.0
    %634 = vmatprep.subr.mxu0 0.0
    %635 = vmatpush1.msra.mxu0 0.0
    %636 = vmatprep.subr.mxu0 0.0
    %637 = vmatpush1.msra.mxu0 0.0
    %638 = vmatprep.subr.mxu0 0.0
    %639 = vmatpush1.msra.mxu0 0.0
    %640 = vmatprep.subr.mxu0 0.0
    %641 = vmatpush1.msra.mxu0 0.0
    %642 = vmatprep.subr.mxu0 0.0
    %643 = vmatpush1.msra.mxu0 0.0
    %644 = vmatprep.subr.mxu0 0.0
    %645 = vmatpush1.msra.mxu0 0.0
    %646 = vmatprep.subr.mxu0 0.0
    %647 = vmatpush1.msra.mxu0 0.0
    %648 = vmatprep.subr.mxu0 0.0
    %649 = vmatpush1.msra.mxu0 0.0
    %650 = vmatprep.mubr.f32.mxu0 0.0
    %v651 = vand.u32 %v580, 4294901760
    %v652 = vsub.f32 %v580, %v651
    %v653 = vand.u32 %v652, 4294901760
    %v654 = vsub.f32 %v652, %v653
    %v655 = vand.u32 %v654, 4294901760
    %656 = vmatmul.mubr.f32.gmra.mrb[0].mxu0 %v655
    %v657 = vpop.f32.mrb[0].mxu0
    %v658 = vadd.f32 %v578, %v657
    %v659 = vpop.f32.mrb[0].mxu0
    %660 = vdwg.mxu0
    %661 = vmatprep.subr.mxu0 0.0
    %v662 = vand.u32 %v36, 4294901760
    %v663 = vsub.f32 %v36, %v662
    %v664 = vand.u32 %v663, 4294901760
    %v665 = vsub.f32 %v663, %v664
    %v666 = vand.u32 %v665, 4294901760
    %667 = vmatpush1.msra.mxu0 %v666
    %668 = vmatprep.subr.mxu0 0.0
    %v669 = vand.u32 %v37, 4294901760
    %v670 = vsub.f32 %v37, %v669
    %v671 = vand.u32 %v670, 4294901760
    %v672 = vsub.f32 %v670, %v671
    %v673 = vand.u32 %v672, 4294901760
    %674 = vmatpush1.msra.mxu0 %v673
    %675 = vmatprep.subr.mxu0 0.0
    %v676 = vand.u32 %v38, 4294901760
    %v677 = vsub.f32 %v38, %v676
    %v678 = vand.u32 %v677, 4294901760
    %v679 = vsub.f32 %v677, %v678
    %v680 = vand.u32 %v679, 4294901760
    %681 = vmatpush1.msra.mxu0 %v680
    %682 = vmatprep.subr.mxu0 0.0
    %v683 = vand.u32 %v39, 4294901760
    %v684 = vsub.f32 %v39, %v683
    %v685 = vand.u32 %v684, 4294901760
    %v686 = vsub.f32 %v684, %v685
    %v687 = vand.u32 %v686, 4294901760
    %688 = vmatpush1.msra.mxu0 %v687
    %689 = vmatprep.subr.mxu0 0.0
    %690 = vmatpush1.msra.mxu0 0.0
    %691 = vmatprep.subr.mxu0 0.0
    %692 = vmatpush1.msra.mxu0 0.0
    %693 = vmatprep.subr.mxu0 0.0
    %694 = vmatpush1.msra.mxu0 0.0
    %695 = vmatprep.subr.mxu0 0.0
    %696 = vmatpush1.msra.mxu0 0.0
    %697 = vmatprep.subr.mxu0 0.0
    %698 = vmatpush1.msra.mxu0 0.0
    %699 = vmatprep.subr.mxu0 0.0
    %700 = vmatpush1.msra.mxu0 0.0
    %701 = vmatprep.subr.mxu0 0.0
    %702 = vmatpush1.msra.mxu0 0.0
    %703 = vmatprep.subr.mxu0 0.0
    %704 = vmatpush1.msra.mxu0 0.0
    %705 = vmatprep.subr.mxu0 0.0
    %706 = vmatpush1.msra.mxu0 0.0
    %707 = vmatprep.subr.mxu0 0.0
    %708 = vmatpush1.msra.mxu0 0.0
    %709 = vmatprep.subr.mxu0 0.0
    %710 = vmatpush1.msra.mxu0 0.0
    %711 = vmatprep.subr.mxu0 0.0
    %712 = vmatpush1.msra.mxu0 0.0
    %713 = vmatprep.subr.mxu0 0.0
    %714 = vmatpush1.msra.mxu0 0.0
    %715 = vmatprep.subr.mxu0 0.0
    %716 = vmatpush1.msra.mxu0 0.0
    %717 = vmatprep.subr.mxu0 0.0
    %718 = vmatpush1.msra.mxu0 0.0
    %719 = vmatprep.subr.mxu0 0.0
    %720 = vmatpush1.msra.mxu0 0.0
    %721 = vmatprep.subr.mxu0 0.0
    %722 = vmatpush1.msra.mxu0 0.0
    %723 = vmatprep.subr.mxu0 0.0
    %724 = vmatpush1.msra.mxu0 0.0
    %725 = vmatprep.subr.mxu0 0.0
    %726 = vmatpush1.msra.mxu0 0.0
    %727 = vmatprep.subr.mxu0 0.0
    %728 = vmatpush1.msra.mxu0 0.0
    %729 = vmatprep.subr.mxu0 0.0
    %730 = vmatpush1.msra.mxu0 0.0
    %731 = vmatprep.subr.mxu0 0.0
    %732 = vmatpush1.msra.mxu0 0.0
    %733 = vmatprep.subr.mxu0 0.0
    %734 = vmatpush1.msra.mxu0 0.0
    %735 = vmatprep.subr.mxu0 0.0
    %736 = vmatpush1.msra.mxu0 0.0
    %737 = vmatprep.subr.mxu0 0.0
    %738 = vmatpush1.msra.mxu0 0.0
    %739 = vmatprep.subr.mxu0 0.0
    %740 = vmatpush1.msra.mxu0 0.0
    %741 = vmatprep.subr.mxu0 0.0
    %742 = vmatpush1.msra.mxu0 0.0
    %743 = vmatprep.subr.mxu0 0.0
    %744 = vmatpush1.msra.mxu0 0.0
    %745 = vmatprep.mubr.f32.mxu0 0.0
    %v746 = vand.u32 %v580, 4294901760
    %747 = vmatmul.mubr.f32.gmra.mrb[0].mxu0 %v746
    %v748 = vpop.f32.mrb[0].mxu0
    %v749 = vadd.f32 %v658, %v748
    %v750 = vpop.f32.mrb[0].mxu0
    %751 = vdwg.mxu0
    %752 = vmatprep.subr.mxu0 0.0
    %v753 = vand.u32 %v36, 4294901760
    %v754 = vsub.f32 %v36, %v753
    %755 = vmatpush1.msra.mxu0 %v754
    %756 = vmatprep.subr.mxu0 0.0
    %v757 = vand.u32 %v37, 4294901760
    %v758 = vsub.f32 %v37, %v757
    %759 = vmatpush1.msra.mxu0 %v758
    %760 = vmatprep.subr.mxu0 0.0
    %v761 = vand.u32 %v38, 4294901760
    %v762 = vsub.f32 %v38, %v761
    %763 = vmatpush1.msra.mxu0 %v762
    %764 = vmatprep.subr.mxu0 0.0
    %v765 = vand.u32 %v39, 4294901760
    %v766 = vsub.f32 %v39, %v765
    %767 = vmatpush1.msra.mxu0 %v766
    %768 = vmatprep.subr.mxu0 0.0
    %769 = vmatpush1.msra.mxu0 0.0
    %770 = vmatprep.subr.mxu0 0.0
    %771 = vmatpush1.msra.mxu0 0.0
    %772 = vmatprep.subr.mxu0 0.0
    %773 = vmatpush1.msra.mxu0 0.0
    %774 = vmatprep.subr.mxu0 0.0
    %775 = vmatpush1.msra.mxu0 0.0
    %776 = vmatprep.subr.mxu0 0.0
    %777 = vmatpush1.msra.mxu0 0.0
    %778 = vmatprep.subr.mxu0 0.0
    %779 = vmatpush1.msra.mxu0 0.0
    %780 = vmatprep.subr.mxu0 0.0
    %781 = vmatpush1.msra.mxu0 0.0
    %782 = vmatprep.subr.mxu0 0.0
    %783 = vmatpush1.msra.mxu0 0.0
    %784 = vmatprep.subr.mxu0 0.0
    %785 = vmatpush1.msra.mxu0 0.0
    %786 = vmatprep.subr.mxu0 0.0
    %787 = vmatpush1.msra.mxu0 0.0
    %788 = vmatprep.subr.mxu0 0.0
    %789 = vmatpush1.msra.mxu0 0.0
    %790 = vmatprep.subr.mxu0 0.0
    %791 = vmatpush1.msra.mxu0 0.0
    %792 = vmatprep.subr.mxu0 0.0
    %793 = vmatpush1.msra.mxu0 0.0
    %794 = vmatprep.subr.mxu0 0.0
    %795 = vmatpush1.msra.mxu0 0.0
    %796 = vmatprep.subr.mxu0 0.0
    %797 = vmatpush1.msra.mxu0 0.0
    %798 = vmatprep.subr.mxu0 0.0
    %799 = vmatpush1.msra.mxu0 0.0
    %800 = vmatprep.subr.mxu0 0.0
    %801 = vmatpush1.msra.mxu0 0.0
    %802 = vmatprep.subr.mxu0 0.0
    %803 = vmatpush1.msra.mxu0 0.0
    %804 = vmatprep.subr.mxu0 0.0
    %805 = vmatpush1.msra.mxu0 0.0
    %806 = vmatprep.subr.mxu0 0.0
    %807 = vmatpush1.msra.mxu0 0.0
    %808 = vmatprep.subr.mxu0 0.0
    %809 = vmatpush1.msra.mxu0 0.0
    %810 = vmatprep.subr.mxu0 0.0
    %811 = vmatpush1.msra.mxu0 0.0
    %812 = vmatprep.subr.mxu0 0.0
    %813 = vmatpush1.msra.mxu0 0.0
    %814 = vmatprep.subr.mxu0 0.0
    %815 = vmatpush1.msra.mxu0 0.0
    %816 = vmatprep.subr.mxu0 0.0
    %817 = vmatpush1.msra.mxu0 0.0
    %818 = vmatprep.subr.mxu0 0.0
    %819 = vmatpush1.msra.mxu0 0.0
    %820 = vmatprep.subr.mxu0 0.0
    %821 = vmatpush1.msra.mxu0 0.0
    %822 = vmatprep.subr.mxu0 0.0
    %823 = vmatpush1.msra.mxu0 0.0
    %824 = vmatprep.mubr.f32.mxu0 0.0
    %v825 = vand.u32 %v580, 4294901760
    %v826 = vsub.f32 %v580, %v825
    %827 = vmatmul.mubr.f32.gmra.mrb[0].mxu0 %v826
    %v828 = vpop.f32.mrb[0].mxu0
    %v829 = vadd.f32 %v749, %v828
    %v830 = vpop.f32.mrb[0].mxu0
    %831 = vdwg.mxu0
    %832 = vmatprep.subr.mxu0 0.0
    %v833 = vand.u32 %v36, 4294901760
    %834 = vmatpush1.msra.mxu0 %v833
    %835 = vmatprep.subr.mxu0 0.0
    %v836 = vand.u32 %v37, 4294901760
    %837 = vmatpush1.msra.mxu0 %v836
    %838 = vmatprep.subr.mxu0 0.0
    %v839 = vand.u32 %v38, 4294901760
    %840 = vmatpush1.msra.mxu0 %v839
    %841 = vmatprep.subr.mxu0 0.0
    %v842 = vand.u32 %v39, 4294901760
    %843 = vmatpush1.msra.mxu0 %v842
    %844 = vmatprep.subr.mxu0 0.0
    %845 = vmatpush1.msra.mxu0 0.0
    %846 = vmatprep.subr.mxu0 0.0
    %847 = vmatpush1.msra.mxu0 0.0
    %848 = vmatprep.subr.mxu0 0.0
    %849 = vmatpush1.msra.mxu0 0.0
    %850 = vmatprep.subr.mxu0 0.0
    %851 = vmatpush1.msra.mxu0 0.0
    %852 = vmatprep.subr.mxu0 0.0
    %853 = vmatpush1.msra.mxu0 0.0
    %854 = vmatprep.subr.mxu0 0.0
    %855 = vmatpush1.msra.mxu0 0.0
    %856 = vmatprep.subr.mxu0 0.0
    %857 = vmatpush1.msra.mxu0 0.0
    %858 = vmatprep.subr.mxu0 0.0
    %859 = vmatpush1.msra.mxu0 0.0
    %860 = vmatprep.subr.mxu0 0.0
    %861 = vmatpush1.msra.mxu0 0.0
    %862 = vmatprep.subr.mxu0 0.0
    %863 = vmatpush1.msra.mxu0 0.0
    %864 = vmatprep.subr.mxu0 0.0
    %865 = vmatpush1.msra.mxu0 0.0
    %866 = vmatprep.subr.mxu0 0.0
    %867 = vmatpush1.msra.mxu0 0.0
    %868 = vmatprep.subr.mxu0 0.0
    %869 = vmatpush1.msra.mxu0 0.0
    %870 = vmatprep.subr.mxu0 0.0
    %871 = vmatpush1.msra.mxu0 0.0
    %872 = vmatprep.subr.mxu0 0.0
    %873 = vmatpush1.msra.mxu0 0.0
    %874 = vmatprep.subr.mxu0 0.0
    %875 = vmatpush1.msra.mxu0 0.0
    %876 = vmatprep.subr.mxu0 0.0
    %877 = vmatpush1.msra.mxu0 0.0
    %878 = vmatprep.subr.mxu0 0.0
    %879 = vmatpush1.msra.mxu0 0.0
    %880 = vmatprep.subr.mxu0 0.0
    %881 = vmatpush1.msra.mxu0 0.0
    %882 = vmatprep.subr.mxu0 0.0
    %883 = vmatpush1.msra.mxu0 0.0
    %884 = vmatprep.subr.mxu0 0.0
    %885 = vmatpush1.msra.mxu0 0.0
    %886 = vmatprep.subr.mxu0 0.0
    %887 = vmatpush1.msra.mxu0 0.0
    %888 = vmatprep.subr.mxu0 0.0
    %889 = vmatpush1.msra.mxu0 0.0
    %890 = vmatprep.subr.mxu0 0.0
    %891 = vmatpush1.msra.mxu0 0.0
    %892 = vmatprep.subr.mxu0 0.0
    %893 = vmatpush1.msra.mxu0 0.0
    %894 = vmatprep.subr.mxu0 0.0
    %895 = vmatpush1.msra.mxu0 0.0
    %896 = vmatprep.subr.mxu0 0.0
    %897 = vmatpush1.msra.mxu0 0.0
    %898 = vmatprep.subr.mxu0 0.0
    %899 = vmatpush1.msra.mxu0 0.0
    %900 = vmatprep.mubr.f32.mxu0 0.0
    %v901 = vand.u32 %v580, 4294901760
    %v902 = vsub.f32 %v580, %v901
    %v903 = vand.u32 %v902, 4294901760
    %904 = vmatmul.mubr.f32.gmra.mrb[0].mxu0 %v903
    %v905 = vpop.f32.mrb[0].mxu0
    %v906 = vadd.f32 %v829, %v905
    %v907 = vpop.f32.mrb[0].mxu0
    %908 = vdwg.mxu0
    %909 = vmatprep.subr.mxu0 0.0
    %v910 = vand.u32 %v36, 4294901760
    %v911 = vsub.f32 %v36, %v910
    %v912 = vand.u32 %v911, 4294901760
    %913 = vmatpush1.msra.mxu0 %v912
    %914 = vmatprep.subr.mxu0 0.0
    %v915 = vand.u32 %v37, 4294901760
    %v916 = vsub.f32 %v37, %v915
    %v917 = vand.u32 %v916, 4294901760
    %918 = vmatpush1.msra.mxu0 %v917
    %919 = vmatprep.subr.mxu0 0.0
    %v920 = vand.u32 %v38, 4294901760
    %v921 = vsub.f32 %v38, %v920
    %v922 = vand.u32 %v921, 4294901760
    %923 = vmatpush1.msra.mxu0 %v922
    %924 = vmatprep.subr.mxu0 0.0
    %v925 = vand.u32 %v39, 4294901760
    %v926 = vsub.f32 %v39, %v925
    %v927 = vand.u32 %v926, 4294901760
    %928 = vmatpush1.msra.mxu0 %v927
    %929 = vmatprep.subr.mxu0 0.0
    %930 = vmatpush1.msra.mxu0 0.0
    %931 = vmatprep.subr.mxu0 0.0
    %932 = vmatpush1.msra.mxu0 0.0
    %933 = vmatprep.subr.mxu0 0.0
    %934 = vmatpush1.msra.mxu0 0.0
    %935 = vmatprep.subr.mxu0 0.0
    %936 = vmatpush1.msra.mxu0 0.0
    %937 = vmatprep.subr.mxu0 0.0
    %938 = vmatpush1.msra.mxu0 0.0
    %939 = vmatprep.subr.mxu0 0.0
    %940 = vmatpush1.msra.mxu0 0.0
    %941 = vmatprep.subr.mxu0 0.0
    %942 = vmatpush1.msra.mxu0 0.0
    %943 = vmatprep.subr.mxu0 0.0
    %944 = vmatpush1.msra.mxu0 0.0
    %945 = vmatprep.subr.mxu0 0.0
    %946 = vmatpush1.msra.mxu0 0.0
    %947 = vmatprep.subr.mxu0 0.0
    %948 = vmatpush1.msra.mxu0 0.0
    %949 = vmatprep.subr.mxu0 0.0
    %950 = vmatpush1.msra.mxu0 0.0
    %951 = vmatprep.subr.mxu0 0.0
    %952 = vmatpush1.msra.mxu0 0.0
    %953 = vmatprep.subr.mxu0 0.0
    %954 = vmatpush1.msra.mxu0 0.0
    %955 = vmatprep.subr.mxu0 0.0
    %956 = vmatpush1.msra.mxu0 0.0
    %957 = vmatprep.subr.mxu0 0.0
    %958 = vmatpush1.msra.mxu0 0.0
    %959 = vmatprep.subr.mxu0 0.0
    %960 = vmatpush1.msra.mxu0 0.0
    %961 = vmatprep.subr.mxu0 0.0
    %962 = vmatpush1.msra.mxu0 0.0
    %963 = vmatprep.subr.mxu0 0.0
    %964 = vmatpush1.msra.mxu0 0.0
    %965 = vmatprep.subr.mxu0 0.0
    %966 = vmatpush1.msra.mxu0 0.0
    %967 = vmatprep.subr.mxu0 0.0
    %968 = vmatpush1.msra.mxu0 0.0
    %969 = vmatprep.subr.mxu0 0.0
    %970 = vmatpush1.msra.mxu0 0.0
    %971 = vmatprep.subr.mxu0 0.0
    %972 = vmatpush1.msra.mxu0 0.0
    %973 = vmatprep.subr.mxu0 0.0
    %974 = vmatpush1.msra.mxu0 0.0
    %975 = vmatprep.subr.mxu0 0.0
    %976 = vmatpush1.msra.mxu0 0.0
    %977 = vmatprep.subr.mxu0 0.0
    %978 = vmatpush1.msra.mxu0 0.0
    %979 = vmatprep.subr.mxu0 0.0
    %980 = vmatpush1.msra.mxu0 0.0
    %981 = vmatprep.subr.mxu0 0.0
    %982 = vmatpush1.msra.mxu0 0.0
    %983 = vmatprep.subr.mxu0 0.0
    %984 = vmatpush1.msra.mxu0 0.0
    %985 = vmatprep.mubr.f32.mxu0 0.0
    %v986 = vand.u32 %v580, 4294901760
    %987 = vmatmul.mubr.f32.gmra.mrb[0].mxu0 %v986
    %v988 = vpop.f32.mrb[0].mxu0
    %v989 = vadd.f32 %v906, %v988
    %v990 = vpop.f32.mrb[0].mxu0
    %991 = vdwg.mxu0
    %992 = vmatprep.subr.mxu0 0.0
    %v993 = vand.u32 %v36, 4294901760
    %994 = vmatpush1.msra.mxu0 %v993
    %995 = vmatprep.subr.mxu0 0.0
    %v996 = vand.u32 %v37, 4294901760
    %997 = vmatpush1.msra.mxu0 %v996
    %998 = vmatprep.subr.mxu0 0.0
    %v999 = vand.u32 %v38, 4294901760
    %1000 = vmatpush1.msra.mxu0 %v999
    %1001 = vmatprep.subr.mxu0 0.0
    %v1002 = vand.u32 %v39, 4294901760
    %1003 = vmatpush1.msra.mxu0 %v1002
    %1004 = vmatprep.subr.mxu0 0.0
    %1005 = vmatpush1.msra.mxu0 0.0
    %1006 = vmatprep.subr.mxu0 0.0
    %1007 = vmatpush1.msra.mxu0 0.0
    %1008 = vmatprep.subr.mxu0 0.0
    %1009 = vmatpush1.msra.mxu0 0.0
    %1010 = vmatprep.subr.mxu0 0.0
    %1011 = vmatpush1.msra.mxu0 0.0
    %1012 = vmatprep.subr.mxu0 0.0
    %1013 = vmatpush1.msra.mxu0 0.0
    %1014 = vmatprep.subr.mxu0 0.0
    %1015 = vmatpush1.msra.mxu0 0.0
    %1016 = vmatprep.subr.mxu0 0.0
    %1017 = vmatpush1.msra.mxu0 0.0
    %1018 = vmatprep.subr.mxu0 0.0
    %1019 = vmatpush1.msra.mxu0 0.0
    %1020 = vmatprep.subr.mxu0 0.0
    %1021 = vmatpush1.msra.mxu0 0.0
    %1022 = vmatprep.subr.mxu0 0.0
    %1023 = vmatpush1.msra.mxu0 0.0
    %1024 = vmatprep.subr.mxu0 0.0
    %1025 = vmatpush1.msra.mxu0 0.0
    %1026 = vmatprep.subr.mxu0 0.0
    %1027 = vmatpush1.msra.mxu0 0.0
    %1028 = vmatprep.subr.mxu0 0.0
    %1029 = vmatpush1.msra.mxu0 0.0
    %1030 = vmatprep.subr.mxu0 0.0
    %1031 = vmatpush1.msra.mxu0 0.0
    %1032 = vmatprep.subr.mxu0 0.0
    %1033 = vmatpush1.msra.mxu0 0.0
    %1034 = vmatprep.subr.mxu0 0.0
    %1035 = vmatpush1.msra.mxu0 0.0
    %1036 = vmatprep.subr.mxu0 0.0
    %1037 = vmatpush1.msra.mxu0 0.0
    %1038 = vmatprep.subr.mxu0 0.0
    %1039 = vmatpush1.msra.mxu0 0.0
    %1040 = vmatprep.subr.mxu0 0.0
    %1041 = vmatpush1.msra.mxu0 0.0
    %1042 = vmatprep.subr.mxu0 0.0
    %1043 = vmatpush1.msra.mxu0 0.0
    %1044 = vmatprep.subr.mxu0 0.0
    %1045 = vmatpush1.msra.mxu0 0.0
    %1046 = vmatprep.subr.mxu0 0.0
    %1047 = vmatpush1.msra.mxu0 0.0
    %1048 = vmatprep.subr.mxu0 0.0
    %1049 = vmatpush1.msra.mxu0 0.0
    %1050 = vmatprep.subr.mxu0 0.0
    %1051 = vmatpush1.msra.mxu0 0.0
    %1052 = vmatprep.subr.mxu0 0.0
    %1053 = vmatpush1.msra.mxu0 0.0
    %1054 = vmatprep.subr.mxu0 0.0
    %1055 = vmatpush1.msra.mxu0 0.0
    %1056 = vmatprep.subr.mxu0 0.0
    %1057 = vmatpush1.msra.mxu0 0.0
    %1058 = vmatprep.subr.mxu0 0.0
    %1059 = vmatpush1.msra.mxu0 0.0
    %1060 = vmatprep.mubr.f32.mxu0 0.0
    %v1061 = vand.u32 %v580, 4294901760
    %1062 = vmatmul.mubr.f32.gmra.mrb[0].mxu0 %v1061
    %v1063 = vpop.f32.mrb[0].mxu0
    %v1064 = vadd.f32 %v989, %v1063
    %v1065 = vpop.f32.mrb[0].mxu0
    %1066 = vdwg.mxu0
    %v1067 = vxor.u32 %v1064, 2147483648
    %v1068 = vmul.f32 %v1067, 1.442695
    %v1069 = vpow.pop %v1068
    %v1070 = vadd.f32 %v1069, 1.0
    %v1071 = vrcp.pop %v1070
    %v1072 = vmul.f32 1.0, %v1071
    %v1073 = vtanh.pop %v1064
    %v1074 = vld [vmem:[#allocation3] sm:$0x3]
    %1076 = vrot.lane.b32.xlu0 %v1074, 32
    %v1077 = vpop.permute.xlu0 %1076
    %v1079 = vmul.f32 %v1072, %v1077
    %1081 = vrot.lane.b32.xlu0 %v1073, 64
    %v1082 = vpop.permute.xlu0 %1081
    %v1084 = vmul.f32 %v1072, %v1082
    %1086 = vrot.lane.b32.xlu0 %v1084, 32
    %v1087 = vpop.permute.xlu0 %1086
    %v1089 = vadd.f32 %v1079, %v1087
    %v1090 = vtanh.pop %v1089
    %1092 = vrot.lane.b32.xlu0 %v1090, 64
    %v1093 = vpop.permute.xlu0 %1092
    %v1095 = vmul.f32 %v1072, %v1093
    %1097 = vrot.lane.b32.xlu0 %v1089, 96
    %v1098 = vpop.permute.xlu0 %1097
    %1100 = vst.msk [vmem:[#allocation3] sm:$0x3] %vm41, %v1098
    %1102 = vrot.lane.b32.xlu0 %v1095, 32
    %v1103 = vpop.permute.xlu0 %1102
    %1105 = vst.msk [vmem:[#allocation2] sm:$0x3] %vm41, %v1103
    %s1106 = scalar_lea.vmem [#allocation4], 2
    %1107 = vst.msk [vmem:[%s1106] sm:$0x3] %vm41, %v1103
    %v1108 = vld [vmem:[#allocation2] sm:$0x3]
    %s1109 = scalar_lea.vmem %s0, 4
    %v1110 = vld [vmem:[%s1109] sm:$0x3]
    %v1112 = vsel %vm47, %v1108, 0
    %1114 = vmatprep.subr.mxu0 0.0
    %v1115 = vand.u32 %v36, 4294901760
    %1116 = vmatpush1.msra.mxu0 %v1115
    %1117 = vmatprep.subr.mxu0 0.0
    %v1118 = vand.u32 %v37, 4294901760
    %1119 = vmatpush1.msra.mxu0 %v1118
    %1120 = vmatprep.subr.mxu0 0.0
    %v1121 = vand.u32 %v38, 4294901760
    %1122 = vmatpush1.msra.mxu0 %v1121
    %1123 = vmatprep.subr.mxu0 0.0
    %v1124 = vand.u32 %v39, 4294901760
    %1125 = vmatpush1.msra.mxu0 %v1124
    %1126 = vmatprep.subr.mxu0 0.0
    %1127 = vmatpush1.msra.mxu0 0.0
    %1128 = vmatprep.subr.mxu0 0.0
    %1129 = vmatpush1.msra.mxu0 0.0
    %1130 = vmatprep.subr.mxu0 0.0
    %1131 = vmatpush1.msra.mxu0 0.0
    %1132 = vmatprep.subr.mxu0 0.0
    %1133 = vmatpush1.msra.mxu0 0.0
    %1134 = vmatprep.subr.mxu0 0.0
    %1135 = vmatpush1.msra.mxu0 0.0
    %1136 = vmatprep.subr.mxu0 0.0
    %1137 = vmatpush1.msra.mxu0 0.0
    %1138 = vmatprep.subr.mxu0 0.0
    %1139 = vmatpush1.msra.mxu0 0.0
    %1140 = vmatprep.subr.mxu0 0.0
    %1141 = vmatpush1.msra.mxu0 0.0
    %1142 = vmatprep.subr.mxu0 0.0
    %1143 = vmatpush1.msra.mxu0 0.0
    %1144 = vmatprep.subr.mxu0 0.0
    %1145 = vmatpush1.msra.mxu0 0.0
    %1146 = vmatprep.subr.mxu0 0.0
    %1147 = vmatpush1.msra.mxu0 0.0
    %1148 = vmatprep.subr.mxu0 0.0
    %1149 = vmatpush1.msra.mxu0 0.0
    %1150 = vmatprep.subr.mxu0 0.0
    %1151 = vmatpush1.msra.mxu0 0.0
    %1152 = vmatprep.subr.mxu0 0.0
    %1153 = vmatpush1.msra.mxu0 0.0
    %1154 = vmatprep.subr.mxu0 0.0
    %1155 = vmatpush1.msra.mxu0 0.0
    %1156 = vmatprep.subr.mxu0 0.0
    %1157 = vmatpush1.msra.mxu0 0.0
    %1158 = vmatprep.subr.mxu0 0.0
    %1159 = vmatpush1.msra.mxu0 0.0
    %1160 = vmatprep.subr.mxu0 0.0
    %1161 = vmatpush1.msra.mxu0 0.0
    %1162 = vmatprep.subr.mxu0 0.0
    %1163 = vmatpush1.msra.mxu0 0.0
    %1164 = vmatprep.subr.mxu0 0.0
    %1165 = vmatpush1.msra.mxu0 0.0
    %1166 = vmatprep.subr.mxu0 0.0
    %1167 = vmatpush1.msra.mxu0 0.0
    %1168 = vmatprep.subr.mxu0 0.0
    %1169 = vmatpush1.msra.mxu0 0.0
    %1170 = vmatprep.subr.mxu0 0.0
    %1171 = vmatpush1.msra.mxu0 0.0
    %1172 = vmatprep.subr.mxu0 0.0
    %1173 = vmatpush1.msra.mxu0 0.0
    %1174 = vmatprep.subr.mxu0 0.0
    %1175 = vmatpush1.msra.mxu0 0.0
    %1176 = vmatprep.subr.mxu0 0.0
    %1177 = vmatpush1.msra.mxu0 0.0
    %1178 = vmatprep.subr.mxu0 0.0
    %1179 = vmatpush1.msra.mxu0 0.0
    %1180 = vmatprep.subr.mxu0 0.0
    %1181 = vmatpush1.msra.mxu0 0.0
    %1182 = vmatprep.mubr.f32.mxu0 0.0
    %v1183 = vand.u32 %v1112, 4294901760
    %v1184 = vsub.f32 %v1112, %v1183
    %v1185 = vand.u32 %v1184, 4294901760
    %v1186 = vsub.f32 %v1184, %v1185
    %v1187 = vand.u32 %v1186, 4294901760
    %1188 = vmatmul.mubr.f32.gmra.mrb[0].mxu0 %v1187
    %v1189 = vpop.f32.mrb[0].mxu0
    %v1190 = vadd.f32 %v1110, %v1189
    %v1191 = vpop.f32.mrb[0].mxu0
    %1192 = vdwg.mxu0
    %1193 = vmatprep.subr.mxu0 0.0
    %v1194 = vand.u32 %v36, 4294901760
    %v1195 = vsub.f32 %v36, %v1194
    %v1196 = vand.u32 %v1195, 4294901760
    %v1197 = vsub.f32 %v1195, %v1196
    %v1198 = vand.u32 %v1197, 4294901760
    %1199 = vmatpush1.msra.mxu0 %v1198
    %1200 = vmatprep.subr.mxu0 0.0
    %v1201 = vand.u32 %v37, 4294901760
    %v1202 = vsub.f32 %v37, %v1201
    %v1203 = vand.u32 %v1202, 4294901760
    %v1204 = vsub.f32 %v1202, %v1203
    %v1205 = vand.u32 %v1204, 4294901760
    %1206 = vmatpush1.msra.mxu0 %v1205
    %1207 = vmatprep.subr.mxu0 0.0
    %v1208 = vand.u32 %v38, 4294901760
    %v1209 = vsub.f32 %v38, %v1208
    %v1210 = vand.u32 %v1209, 4294901760
    %v1211 = vsub.f32 %v1209, %v1210
    %v1212 = vand.u32 %v1211, 4294901760
    %1213 = vmatpush1.msra.mxu0 %v1212
    %1214 = vmatprep.subr.mxu0 0.0
    %v1215 = vand.u32 %v39, 4294901760
    %v1216 = vsub.f32 %v39, %v1215
    %v1217 = vand.u32 %v1216, 4294901760
    %v1218 = vsub.f32 %v1216, %v1217
    %v1219 = vand.u32 %v1218, 4294901760
    %1220 = vmatpush1.msra.mxu0 %v1219
    %1221 = vmatprep.subr.mxu0 0.0
    %1222 = vmatpush1.msra.mxu0 0.0
    %1223 = vmatprep.subr.mxu0 0.0
    %1224 = vmatpush1.msra.mxu0 0.0
    %1225 = vmatprep.subr.mxu0 0.0
    %1226 = vmatpush1.msra.mxu0 0.0
    %1227 = vmatprep.subr.mxu0 0.0
    %1228 = vmatpush1.msra.mxu0 0.0
    %1229 = vmatprep.subr.mxu0 0.0
    %1230 = vmatpush1.msra.mxu0 0.0
    %1231 = vmatprep.subr.mxu0 0.0
    %1232 = vmatpush1.msra.mxu0 0.0
    %1233 = vmatprep.subr.mxu0 0.0
    %1234 = vmatpush1.msra.mxu0 0.0
    %1235 = vmatprep.subr.mxu0 0.0
    %1236 = vmatpush1.msra.mxu0 0.0
    %1237 = vmatprep.subr.mxu0 0.0
    %1238 = vmatpush1.msra.mxu0 0.0
    %1239 = vmatprep.subr.mxu0 0.0
    %1240 = vmatpush1.msra.mxu0 0.0
    %1241 = vmatprep.subr.mxu0 0.0
    %1242 = vmatpush1.msra.mxu0 0.0
    %1243 = vmatprep.subr.mxu0 0.0
    %1244 = vmatpush1.msra.mxu0 0.0
    %1245 = vmatprep.subr.mxu0 0.0
    %1246 = vmatpush1.msra.mxu0 0.0
    %1247 = vmatprep.subr.mxu0 0.0
    %1248 = vmatpush1.msra.mxu0 0.0
    %1249 = vmatprep.subr.mxu0 0.0
    %1250 = vmatpush1.msra.mxu0 0.0
    %1251 = vmatprep.subr.mxu0 0.0
    %1252 = vmatpush1.msra.mxu0 0.0
    %1253 = vmatprep.subr.mxu0 0.0
    %1254 = vmatpush1.msra.mxu0 0.0
    %1255 = vmatprep.subr.mxu0 0.0
    %1256 = vmatpush1.msra.mxu0 0.0
    %1257 = vmatprep.subr.mxu0 0.0
    %1258 = vmatpush1.msra.mxu0 0.0
    %1259 = vmatprep.subr.mxu0 0.0
    %1260 = vmatpush1.msra.mxu0 0.0
    %1261 = vmatprep.subr.mxu0 0.0
    %1262 = vmatpush1.msra.mxu0 0.0
    %1263 = vmatprep.subr.mxu0 0.0
    %1264 = vmatpush1.msra.mxu0 0.0
    %1265 = vmatprep.subr.mxu0 0.0
    %1266 = vmatpush1.msra.mxu0 0.0
    %1267 = vmatprep.subr.mxu0 0.0
    %1268 = vmatpush1.msra.mxu0 0.0
    %1269 = vmatprep.subr.mxu0 0.0
    %1270 = vmatpush1.msra.mxu0 0.0
    %1271 = vmatprep.subr.mxu0 0.0
    %1272 = vmatpush1.msra.mxu0 0.0
    %1273 = vmatprep.subr.mxu0 0.0
    %1274 = vmatpush1.msra.mxu0 0.0
    %1275 = vmatprep.subr.mxu0 0.0
    %1276 = vmatpush1.msra.mxu0 0.0
    %1277 = vmatprep.mubr.f32.mxu0 0.0
    %v1278 = vand.u32 %v1112, 4294901760
    %1279 = vmatmul.mubr.f32.gmra.mrb[0].mxu0 %v1278
    %v1280 = vpop.f32.mrb[0].mxu0
    %v1281 = vadd.f32 %v1190, %v1280
    %v1282 = vpop.f32.mrb[0].mxu0
    %1283 = vdwg.mxu0
    %1284 = vmatprep.subr.mxu0 0.0
    %v1285 = vand.u32 %v36, 4294901760
    %v1286 = vsub.f32 %v36, %v1285
    %1287 = vmatpush1.msra.mxu0 %v1286
    %1288 = vmatprep.subr.mxu0 0.0
    %v1289 = vand.u32 %v37, 4294901760
    %v1290 = vsub.f32 %v37, %v1289
    %1291 = vmatpush1.msra.mxu0 %v1290
    %1292 = vmatprep.subr.mxu0 0.0
    %v1293 = vand.u32 %v38, 4294901760
    %v1294 = vsub.f32 %v38, %v1293
    %1295 = vmatpush1.msra.mxu0 %v1294
    %1296 = vmatprep.subr.mxu0 0.0
    %v1297 = vand.u32 %v39, 4294901760
    %v1298 = vsub.f32 %v39, %v1297
    %1299 = vmatpush1.msra.mxu0 %v1298
    %1300 = vmatprep.subr.mxu0 0.0
    %1301 = vmatpush1.msra.mxu0 0.0
    %1302 = vmatprep.subr.mxu0 0.0
    %1303 = vmatpush1.msra.mxu0 0.0
    %1304 = vmatprep.subr.mxu0 0.0
    %1305 = vmatpush1.msra.mxu0 0.0
    %1306 = vmatprep.subr.mxu0 0.0
    %1307 = vmatpush1.msra.mxu0 0.0
    %1308 = vmatprep.subr.mxu0 0.0
    %1309 = vmatpush1.msra.mxu0 0.0
    %1310 = vmatprep.subr.mxu0 0.0
    %1311 = vmatpush1.msra.mxu0 0.0
    %1312 = vmatprep.subr.mxu0 0.0
    %1313 = vmatpush1.msra.mxu0 0.0
    %1314 = vmatprep.subr.mxu0 0.0
    %1315 = vmatpush1.msra.mxu0 0.0
    %1316 = vmatprep.subr.mxu0 0.0
    %1317 = vmatpush1.msra.mxu0 0.0
    %1318 = vmatprep.subr.mxu0 0.0
    %1319 = vmatpush1.msra.mxu0 0.0
    %1320 = vmatprep.subr.mxu0 0.0
    %1321 = vmatpush1.msra.mxu0 0.0
    %1322 = vmatprep.subr.mxu0 0.0
    %1323 = vmatpush1.msra.mxu0 0.0
    %1324 = vmatprep.subr.mxu0 0.0
    %1325 = vmatpush1.msra.mxu0 0.0
    %1326 = vmatprep.subr.mxu0 0.0
    %1327 = vmatpush1.msra.mxu0 0.0
    %1328 = vmatprep.subr.mxu0 0.0
    %1329 = vmatpush1.msra.mxu0 0.0
    %1330 = vmatprep.subr.mxu0 0.0
    %1331 = vmatpush1.msra.mxu0 0.0
    %1332 = vmatprep.subr.mxu0 0.0
    %1333 = vmatpush1.msra.mxu0 0.0
    %1334 = vmatprep.subr.mxu0 0.0
    %1335 = vmatpush1.msra.mxu0 0.0
    %1336 = vmatprep.subr.mxu0 0.0
    %1337 = vmatpush1.msra.mxu0 0.0
    %1338 = vmatprep.subr.mxu0 0.0
    %1339 = vmatpush1.msra.mxu0 0.0
    %1340 = vmatprep.subr.mxu0 0.0
    %1341 = vmatpush1.msra.mxu0 0.0
    %1342 = vmatprep.subr.mxu0 0.0
    %1343 = vmatpush1.msra.mxu0 0.0
    %1344 = vmatprep.subr.mxu0 0.0
    %1345 = vmatpush1.msra.mxu0 0.0
    %1346 = vmatprep.subr.mxu0 0.0
    %1347 = vmatpush1.msra.mxu0 0.0
    %1348 = vmatprep.subr.mxu0 0.0
    %1349 = vmatpush1.msra.mxu0 0.0
    %1350 = vmatprep.subr.mxu0 0.0
    %1351 = vmatpush1.msra.mxu0 0.0
    %1352 = vmatprep.subr.mxu0 0.0
    %1353 = vmatpush1.msra.mxu0 0.0
    %1354 = vmatprep.subr.mxu0 0.0
    %1355 = vmatpush1.msra.mxu0 0.0
    %1356 = vmatprep.mubr.f32.mxu0 0.0
    %v1357 = vand.u32 %v1112, 4294901760
    %v1358 = vsub.f32 %v1112, %v1357
    %1359 = vmatmul.mubr.f32.gmra.mrb[0].mxu0 %v1358
    %v1360 = vpop.f32.mrb[0].mxu0
    %v1361 = vadd.f32 %v1281, %v1360
    %v1362 = vpop.f32.mrb[0].mxu0
    %1363 = vdwg.mxu0
    %1364 = vmatprep.subr.mxu0 0.0
    %v1365 = vand.u32 %v36, 4294901760
    %1366 = vmatpush1.msra.mxu0 %v1365
    %1367 = vmatprep.subr.mxu0 0.0
    %v1368 = vand.u32 %v37, 4294901760
    %1369 = vmatpush1.msra.mxu0 %v1368
    %1370 = vmatprep.subr.mxu0 0.0
    %v1371 = vand.u32 %v38, 4294901760
    %1372 = vmatpush1.msra.mxu0 %v1371
    %1373 = vmatprep.subr.mxu0 0.0
    %v1374 = vand.u32 %v39, 4294901760
    %1375 = vmatpush1.msra.mxu0 %v1374
    %1376 = vmatprep.subr.mxu0 0.0
    %1377 = vmatpush1.msra.mxu0 0.0
    %1378 = vmatprep.subr.mxu0 0.0
    %1379 = vmatpush1.msra.mxu0 0.0
    %1380 = vmatprep.subr.mxu0 0.0
    %1381 = vmatpush1.msra.mxu0 0.0
    %1382 = vmatprep.subr.mxu0 0.0
    %1383 = vmatpush1.msra.mxu0 0.0
    %1384 = vmatprep.subr.mxu0 0.0
    %1385 = vmatpush1.msra.mxu0 0.0
    %1386 = vmatprep.subr.mxu0 0.0
    %1387 = vmatpush1.msra.mxu0 0.0
    %1388 = vmatprep.subr.mxu0 0.0
    %1389 = vmatpush1.msra.mxu0 0.0
    %1390 = vmatprep.subr.mxu0 0.0
    %1391 = vmatpush1.msra.mxu0 0.0
    %1392 = vmatprep.subr.mxu0 0.0
    %1393 = vmatpush1.msra.mxu0 0.0
    %1394 = vmatprep.subr.mxu0 0.0
    %1395 = vmatpush1.msra.mxu0 0.0
    %1396 = vmatprep.subr.mxu0 0.0
    %1397 = vmatpush1.msra.mxu0 0.0
    %1398 = vmatprep.subr.mxu0 0.0
    %1399 = vmatpush1.msra.mxu0 0.0
    %1400 = vmatprep.subr.mxu0 0.0
    %1401 = vmatpush1.msra.mxu0 0.0
    %1402 = vmatprep.subr.mxu0 0.0
    %1403 = vmatpush1.msra.mxu0 0.0
    %1404 = vmatprep.subr.mxu0 0.0
    %1405 = vmatpush1.msra.mxu0 0.0
    %1406 = vmatprep.subr.mxu0 0.0
    %1407 = vmatpush1.msra.mxu0 0.0
    %1408 = vmatprep.subr.mxu0 0.0
    %1409 = vmatpush1.msra.mxu0 0.0
    %1410 = vmatprep.subr.mxu0 0.0
    %1411 = vmatpush1.msra.mxu0 0.0
    %1412 = vmatprep.subr.mxu0 0.0
    %1413 = vmatpush1.msra.mxu0 0.0
    %1414 = vmatprep.subr.mxu0 0.0
    %1415 = vmatpush1.msra.mxu0 0.0
    %1416 = vmatprep.subr.mxu0 0.0
    %1417 = vmatpush1.msra.mxu0 0.0
    %1418 = vmatprep.subr.mxu0 0.0
    %1419 = vmatpush1.msra.mxu0 0.0
    %1420 = vmatprep.subr.mxu0 0.0
    %1421 = vmatpush1.msra.mxu0 0.0
    %1422 = vmatprep.subr.mxu0 0.0
    %1423 = vmatpush1.msra.mxu0 0.0
    %1424 = vmatprep.subr.mxu0 0.0
    %1425 = vmatpush1.msra.mxu0 0.0
    %1426 = vmatprep.subr.mxu0 0.0
    %1427 = vmatpush1.msra.mxu0 0.0
    %1428 = vmatprep.subr.mxu0 0.0
    %1429 = vmatpush1.msra.mxu0 0.0
    %1430 = vmatprep.subr.mxu0 0.0
    %1431 = vmatpush1.msra.mxu0 0.0
    %1432 = vmatprep.mubr.f32.mxu0 0.0
    %v1433 = vand.u32 %v1112, 4294901760
    %v1434 = vsub.f32 %v1112, %v1433
    %v1435 = vand.u32 %v1434, 4294901760
    %1436 = vmatmul.mubr.f32.gmra.mrb[0].mxu0 %v1435
    %v1437 = vpop.f32.mrb[0].mxu0
    %v1438 = vadd.f32 %v1361, %v1437
    %v1439 = vpop.f32.mrb[0].mxu0
    %1440 = vdwg.mxu0
    %1441 = vmatprep.subr.mxu0 0.0
    %v1442 = vand.u32 %v36, 4294901760
    %v1443 = vsub.f32 %v36, %v1442
    %v1444 = vand.u32 %v1443, 4294901760
    %1445 = vmatpush1.msra.mxu0 %v1444
    %1446 = vmatprep.subr.mxu0 0.0
    %v1447 = vand.u32 %v37, 4294901760
    %v1448 = vsub.f32 %v37, %v1447
    %v1449 = vand.u32 %v1448, 4294901760
    %1450 = vmatpush1.msra.mxu0 %v1449
    %1451 = vmatprep.subr.mxu0 0.0
    %v1452 = vand.u32 %v38, 4294901760
    %v1453 = vsub.f32 %v38, %v1452
    %v1454 = vand.u32 %v1453, 4294901760
    %1455 = vmatpush1.msra.mxu0 %v1454
    %1456 = vmatprep.subr.mxu0 0.0
    %v1457 = vand.u32 %v39, 4294901760
    %v1458 = vsub.f32 %v39, %v1457
    %v1459 = vand.u32 %v1458, 4294901760
    %1460 = vmatpush1.msra.mxu0 %v1459
    %1461 = vmatprep.subr.mxu0 0.0
    %1462 = vmatpush1.msra.mxu0 0.0
    %1463 = vmatprep.subr.mxu0 0.0
    %1464 = vmatpush1.msra.mxu0 0.0
    %1465 = vmatprep.subr.mxu0 0.0
    %1466 = vmatpush1.msra.mxu0 0.0
    %1467 = vmatprep.subr.mxu0 0.0
    %1468 = vmatpush1.msra.mxu0 0.0
    %1469 = vmatprep.subr.mxu0 0.0
    %1470 = vmatpush1.msra.mxu0 0.0
    %1471 = vmatprep.subr.mxu0 0.0
    %1472 = vmatpush1.msra.mxu0 0.0
    %1473 = vmatprep.subr.mxu0 0.0
    %1474 = vmatpush1.msra.mxu0 0.0
    %1475 = vmatprep.subr.mxu0 0.0
    %1476 = vmatpush1.msra.mxu0 0.0
    %1477 = vmatprep.subr.mxu0 0.0
    %1478 = vmatpush1.msra.mxu0 0.0
    %1479 = vmatprep.subr.mxu0 0.0
    %1480 = vmatpush1.msra.mxu0 0.0
    %1481 = vmatprep.subr.mxu0 0.0
    %1482 = vmatpush1.msra.mxu0 0.0
    %1483 = vmatprep.subr.mxu0 0.0
    %1484 = vmatpush1.msra.mxu0 0.0
    %1485 = vmatprep.subr.mxu0 0.0
    %1486 = vmatpush1.msra.mxu0 0.0
    %1487 = vmatprep.subr.mxu0 0.0
    %1488 = vmatpush1.msra.mxu0 0.0
    %1489 = vmatprep.subr.mxu0 0.0
    %1490 = vmatpush1.msra.mxu0 0.0
    %1491 = vmatprep.subr.mxu0 0.0
    %1492 = vmatpush1.msra.mxu0 0.0
    %1493 = vmatprep.subr.mxu0 0.0
    %1494 = vmatpush1.msra.mxu0 0.0
    %1495 = vmatprep.subr.mxu0 0.0
    %1496 = vmatpush1.msra.mxu0 0.0
    %1497 = vmatprep.subr.mxu0 0.0
    %1498 = vmatpush1.msra.mxu0 0.0
    %1499 = vmatprep.subr.mxu0 0.0
    %1500 = vmatpush1.msra.mxu0 0.0
    %1501 = vmatprep.subr.mxu0 0.0
    %1502 = vmatpush1.msra.mxu0 0.0
    %1503 = vmatprep.subr.mxu0 0.0
    %1504 = vmatpush1.msra.mxu0 0.0
    %1505 = vmatprep.subr.mxu0 0.0
    %1506 = vmatpush1.msra.mxu0 0.0
    %1507 = vmatprep.subr.mxu0 0.0
    %1508 = vmatpush1.msra.mxu0 0.0
    %1509 = vmatprep.subr.mxu0 0.0
    %1510 = vmatpush1.msra.mxu0 0.0
    %1511 = vmatprep.subr.mxu0 0.0
    %1512 = vmatpush1.msra.mxu0 0.0
    %1513 = vmatprep.subr.mxu0 0.0
    %1514 = vmatpush1.msra.mxu0 0.0
    %1515 = vmatprep.subr.mxu0 0.0
    %1516 = vmatpush1.msra.mxu0 0.0
    %1517 = vmatprep.mubr.f32.mxu0 0.0
    %v1518 = vand.u32 %v1112, 4294901760
    %1519 = vmatmul.mubr.f32.gmra.mrb[0].mxu0 %v1518
    %v1520 = vpop.f32.mrb[0].mxu0
    %v1521 = vadd.f32 %v1438, %v1520
    %v1522 = vpop.f32.mrb[0].mxu0
    %1523 = vdwg.mxu0
    %1524 = vmatprep.subr.mxu0 0.0
    %v1525 = vand.u32 %v36, 4294901760
    %1526 = vmatpush1.msra.mxu0 %v1525
    %1527 = vmatprep.subr.mxu0 0.0
    %v1528 = vand.u32 %v37, 4294901760
    %1529 = vmatpush1.msra.mxu0 %v1528
    %1530 = vmatprep.subr.mxu0 0.0
    %v1531 = vand.u32 %v38, 4294901760
    %1532 = vmatpush1.msra.mxu0 %v1531
    %1533 = vmatprep.subr.mxu0 0.0
    %v1534 = vand.u32 %v39, 4294901760
    %1535 = vmatpush1.msra.mxu0 %v1534
    %1536 = vmatprep.subr.mxu0 0.0
    %1537 = vmatpush1.msra.mxu0 0.0
    %1538 = vmatprep.subr.mxu0 0.0
    %1539 = vmatpush1.msra.mxu0 0.0
    %1540 = vmatprep.subr.mxu0 0.0
    %1541 = vmatpush1.msra.mxu0 0.0
    %1542 = vmatprep.subr.mxu0 0.0
    %1543 = vmatpush1.msra.mxu0 0.0
    %1544 = vmatprep.subr.mxu0 0.0
    %1545 = vmatpush1.msra.mxu0 0.0
    %1546 = vmatprep.subr.mxu0 0.0
    %1547 = vmatpush1.msra.mxu0 0.0
    %1548 = vmatprep.subr.mxu0 0.0
    %1549 = vmatpush1.msra.mxu0 0.0
    %1550 = vmatprep.subr.mxu0 0.0
    %1551 = vmatpush1.msra.mxu0 0.0
    %1552 = vmatprep.subr.mxu0 0.0
    %1553 = vmatpush1.msra.mxu0 0.0
    %1554 = vmatprep.subr.mxu0 0.0
    %1555 = vmatpush1.msra.mxu0 0.0
    %1556 = vmatprep.subr.mxu0 0.0
    %1557 = vmatpush1.msra.mxu0 0.0
    %1558 = vmatprep.subr.mxu0 0.0
    %1559 = vmatpush1.msra.mxu0 0.0
    %1560 = vmatprep.subr.mxu0 0.0
    %1561 = vmatpush1.msra.mxu0 0.0
    %1562 = vmatprep.subr.mxu0 0.0
    %1563 = vmatpush1.msra.mxu0 0.0
    %1564 = vmatprep.subr.mxu0 0.0
    %1565 = vmatpush1.msra.mxu0 0.0
    %1566 = vmatprep.subr.mxu0 0.0
    %1567 = vmatpush1.msra.mxu0 0.0
    %1568 = vmatprep.subr.mxu0 0.0
    %1569 = vmatpush1.msra.mxu0 0.0
    %1570 = vmatprep.subr.mxu0 0.0
    %1571 = vmatpush1.msra.mxu0 0.0
    %1572 = vmatprep.subr.mxu0 0.0
    %1573 = vmatpush1.msra.mxu0 0.0
    %1574 = vmatprep.subr.mxu0 0.0
    %1575 = vmatpush1.msra.mxu0 0.0
    %1576 = vmatprep.subr.mxu0 0.0
    %1577 = vmatpush1.msra.mxu0 0.0
    %1578 = vmatprep.subr.mxu0 0.0
    %1579 = vmatpush1.msra.mxu0 0.0
    %1580 = vmatprep.subr.mxu0 0.0
    %1581 = vmatpush1.msra.mxu0 0.0
    %1582 = vmatprep.subr.mxu0 0.0
    %1583 = vmatpush1.msra.mxu0 0.0
    %1584 = vmatprep.subr.mxu0 0.0
    %1585 = vmatpush1.msra.mxu0 0.0
    %1586 = vmatprep.subr.mxu0 0.0
    %1587 = vmatpush1.msra.mxu0 0.0
    %1588 = vmatprep.subr.mxu0 0.0
    %1589 = vmatpush1.msra.mxu0 0.0
    %1590 = vmatprep.subr.mxu0 0.0
    %1591 = vmatpush1.msra.mxu0 0.0
    %1592 = vmatprep.mubr.f32.mxu0 0.0
    %v1593 = vand.u32 %v1112, 4294901760
    %1594 = vmatmul.mubr.f32.gmra.mrb[0].mxu0 %v1593
    %v1595 = vpop.f32.mrb[0].mxu0
    %v1596 = vadd.f32 %v1521, %v1595
    %v1597 = vpop.f32.mrb[0].mxu0
    %1598 = vdwg.mxu0
    %v1599 = vxor.u32 %v1596, 2147483648
    %v1600 = vmul.f32 %v1599, 1.442695
    %v1601 = vpow.pop %v1600
    %v1602 = vadd.f32 %v1601, 1.0
    %v1603 = vrcp.pop %v1602
    %v1604 = vmul.f32 1.0, %v1603
    %v1605 = vtanh.pop %v1596
    %v1606 = vld [vmem:[#allocation3] sm:$0x3]
    %1608 = vrot.lane.b32.xlu0 %v1606, 32
    %v1609 = vpop.permute.xlu0 %1608
    %v1611 = vmul.f32 %v1604, %v1609
    %1613 = vrot.lane.b32.xlu0 %v1605, 64
    %v1614 = vpop.permute.xlu0 %1613
    %v1616 = vmul.f32 %v1604, %v1614
    %1618 = vrot.lane.b32.xlu0 %v1616, 32
    %v1619 = vpop.permute.xlu0 %1618
    %v1621 = vadd.f32 %v1611, %v1619
    %v1622 = vtanh.pop %v1621
    %1624 = vrot.lane.b32.xlu0 %v1622, 64
    %v1625 = vpop.permute.xlu0 %1624
    %v1627 = vmul.f32 %v1604, %v1625
    %1629 = vrot.lane.b32.xlu0 %v1621, 96
    %v1630 = vpop.permute.xlu0 %1629
    %1632 = vst.msk [vmem:[#allocation3] sm:$0x3] %vm41, %v1630
    %1634 = vrot.lane.b32.xlu0 %v1627, 32
    %v1635 = vpop.permute.xlu0 %1634
    %1637 = vst.msk [vmem:[#allocation2] sm:$0x3] %vm41, %v1635
    %s1638 = scalar_lea.vmem [#allocation4], 4
    %1639 = vst.msk [vmem:[%s1638] sm:$0x3] %vm41, %v1635
    %v1640 = vld [vmem:[#allocation2] sm:$0x3]
    %s1641 = scalar_lea.vmem %s0, 6
    %v1642 = vld [vmem:[%s1641] sm:$0x3]
    %v1644 = vsel %vm47, %v1640, 0
    %1646 = vmatprep.subr.mxu0 0.0
    %v1647 = vand.u32 %v36, 4294901760
    %1648 = vmatpush1.msra.mxu0 %v1647
    %1649 = vmatprep.subr.mxu0 0.0
    %v1650 = vand.u32 %v37, 4294901760
    %1651 = vmatpush1.msra.mxu0 %v1650
    %1652 = vmatprep.subr.mxu0 0.0
    %v1653 = vand.u32 %v38, 4294901760
    %1654 = vmatpush1.msra.mxu0 %v1653
    %1655 = vmatprep.subr.mxu0 0.0
    %v1656 = vand.u32 %v39, 4294901760
    %1657 = vmatpush1.msra.mxu0 %v1656
    %1658 = vmatprep.subr.mxu0 0.0
    %1659 = vmatpush1.msra.mxu0 0.0
    %1660 = vmatprep.subr.mxu0 0.0
    %1661 = vmatpush1.msra.mxu0 0.0
    %1662 = vmatprep.subr.mxu0 0.0
    %1663 = vmatpush1.msra.mxu0 0.0
    %1664 = vmatprep.subr.mxu0 0.0
    %1665 = vmatpush1.msra.mxu0 0.0
    %1666 = vmatprep.subr.mxu0 0.0
    %1667 = vmatpush1.msra.mxu0 0.0
    %1668 = vmatprep.subr.mxu0 0.0
    %1669 = vmatpush1.msra.mxu0 0.0
    %1670 = vmatprep.subr.mxu0 0.0
    %1671 = vmatpush1.msra.mxu0 0.0
    %1672 = vmatprep.subr.mxu0 0.0
    %1673 = vmatpush1.msra.mxu0 0.0
    %1674 = vmatprep.subr.mxu0 0.0
    %1675 = vmatpush1.msra.mxu0 0.0
    %1676 = vmatprep.subr.mxu0 0.0
    %1677 = vmatpush1.msra.mxu0 0.0
    %1678 = vmatprep.subr.mxu0 0.0
    %1679 = vmatpush1.msra.mxu0 0.0
    %1680 = vmatprep.subr.mxu0 0.0
    %1681 = vmatpush1.msra.mxu0 0.0
    %1682 = vmatprep.subr.mxu0 0.0
    %1683 = vmatpush1.msra.mxu0 0.0
    %1684 = vmatprep.subr.mxu0 0.0
    %1685 = vmatpush1.msra.mxu0 0.0
    %1686 = vmatprep.subr.mxu0 0.0
    %1687 = vmatpush1.msra.mxu0 0.0
    %1688 = vmatprep.subr.mxu0 0.0
    %1689 = vmatpush1.msra.mxu0 0.0
    %1690 = vmatprep.subr.mxu0 0.0
    %1691 = vmatpush1.msra.mxu0 0.0
    %1692 = vmatprep.subr.mxu0 0.0
    %1693 = vmatpush1.msra.mxu0 0.0
    %1694 = vmatprep.subr.mxu0 0.0
    %1695 = vmatpush1.msra.mxu0 0.0
    %1696 = vmatprep.subr.mxu0 0.0
    %1697 = vmatpush1.msra.mxu0 0.0
    %1698 = vmatprep.subr.mxu0 0.0
    %1699 = vmatpush1.msra.mxu0 0.0
    %1700 = vmatprep.subr.mxu0 0.0
    %1701 = vmatpush1.msra.mxu0 0.0
    %1702 = vmatprep.subr.mxu0 0.0
    %1703 = vmatpush1.msra.mxu0 0.0
    %1704 = vmatprep.subr.mxu0 0.0
    %1705 = vmatpush1.msra.mxu0 0.0
    %1706 = vmatprep.subr.mxu0 0.0
    %1707 = vmatpush1.msra.mxu0 0.0
    %1708 = vmatprep.subr.mxu0 0.0
    %1709 = vmatpush1.msra.mxu0 0.0
    %1710 = vmatprep.subr.mxu0 0.0
    %1711 = vmatpush1.msra.mxu0 0.0
    %1712 = vmatprep.subr.mxu0 0.0
    %1713 = vmatpush1.msra.mxu0 0.0
    %1714 = vmatprep.mubr.f32.mxu0 0.0
    %v1715 = vand.u32 %v1644, 4294901760
    %v1716 = vsub.f32 %v1644, %v1715
    %v1717 = vand.u32 %v1716, 4294901760
    %v1718 = vsub.f32 %v1716, %v1717
    %v1719 = vand.u32 %v1718, 4294901760
    %1720 = vmatmul.mubr.f32.gmra.mrb[0].mxu0 %v1719
    %v1721 = vpop.f32.mrb[0].mxu0
    %v1722 = vadd.f32 %v1642, %v1721
    %v1723 = vpop.f32.mrb[0].mxu0
    %1724 = vdwg.mxu0
    %1725 = vmatprep.subr.mxu0 0.0
    %v1726 = vand.u32 %v36, 4294901760
    %v1727 = vsub.f32 %v36, %v1726
    %v1728 = vand.u32 %v1727, 4294901760
    %v1729 = vsub.f32 %v1727, %v1728
    %v1730 = vand.u32 %v1729, 4294901760
    %1731 = vmatpush1.msra.mxu0 %v1730
    %1732 = vmatprep.subr.mxu0 0.0
    %v1733 = vand.u32 %v37, 4294901760
    %v1734 = vsub.f32 %v37, %v1733
    %v1735 = vand.u32 %v1734, 4294901760
    %v1736 = vsub.f32 %v1734, %v1735
    %v1737 = vand.u32 %v1736, 4294901760
    %1738 = vmatpush1.msra.mxu0 %v1737
    %1739 = vmatprep.subr.mxu0 0.0
    %v1740 = vand.u32 %v38, 4294901760
    %v1741 = vsub.f32 %v38, %v1740
    %v1742 = vand.u32 %v1741, 4294901760
    %v1743 = vsub.f32 %v1741, %v1742
    %v1744 = vand.u32 %v1743, 4294901760
    %1745 = vmatpush1.msra.mxu0 %v1744
    %1746 = vmatprep.subr.mxu0 0.0
    %v1747 = vand.u32 %v39, 4294901760
    %v1748 = vsub.f32 %v39, %v1747
    %v1749 = vand.u32 %v1748, 4294901760
    %v1750 = vsub.f32 %v1748, %v1749
    %v1751 = vand.u32 %v1750, 4294901760
    %1752 = vmatpush1.msra.mxu0 %v1751
    %1753 = vmatprep.subr.mxu0 0.0
    %1754 = vmatpush1.msra.mxu0 0.0
    %1755 = vmatprep.subr.mxu0 0.0
    %1756 = vmatpush1.msra.mxu0 0.0
    %1757 = vmatprep.subr.mxu0 0.0
    %1758 = vmatpush1.msra.mxu0 0.0
    %1759 = vmatprep.subr.mxu0 0.0
    %1760 = vmatpush1.msra.mxu0 0.0
    %1761 = vmatprep.subr.mxu0 0.0
    %1762 = vmatpush1.msra.mxu0 0.0
    %1763 = vmatprep.subr.mxu0 0.0
    %1764 = vmatpush1.msra.mxu0 0.0
    %1765 = vmatprep.subr.mxu0 0.0
    %1766 = vmatpush1.msra.mxu0 0.0
    %1767 = vmatprep.subr.mxu0 0.0
    %1768 = vmatpush1.msra.mxu0 0.0
    %1769 = vmatprep.subr.mxu0 0.0
    %1770 = vmatpush1.msra.mxu0 0.0
    %1771 = vmatprep.subr.mxu0 0.0
    %1772 = vmatpush1.msra.mxu0 0.0
    %1773 = vmatprep.subr.mxu0 0.0
    %1774 = vmatpush1.msra.mxu0 0.0
    %1775 = vmatprep.subr.mxu0 0.0
    %1776 = vmatpush1.msra.mxu0 0.0
    %1777 = vmatprep.subr.mxu0 0.0
    %1778 = vmatpush1.msra.mxu0 0.0
    %1779 = vmatprep.subr.mxu0 0.0
    %1780 = vmatpush1.msra.mxu0 0.0
    %1781 = vmatprep.subr.mxu0 0.0
    %1782 = vmatpush1.msra.mxu0 0.0
    %1783 = vmatprep.subr.mxu0 0.0
    %1784 = vmatpush1.msra.mxu0 0.0
    %1785 = vmatprep.subr.mxu0 0.0
    %1786 = vmatpush1.msra.mxu0 0.0
    %1787 = vmatprep.subr.mxu0 0.0
    %1788 = vmatpush1.msra.mxu0 0.0
    %1789 = vmatprep.subr.mxu0 0.0
    %1790 = vmatpush1.msra.mxu0 0.0
    %1791 = vmatprep.subr.mxu0 0.0
    %1792 = vmatpush1.msra.mxu0 0.0
    %1793 = vmatprep.subr.mxu0 0.0
    %1794 = vmatpush1.msra.mxu0 0.0
    %1795 = vmatprep.subr.mxu0 0.0
    %1796 = vmatpush1.msra.mxu0 0.0
    %1797 = vmatprep.subr.mxu0 0.0
    %1798 = vmatpush1.msra.mxu0 0.0
    %1799 = vmatprep.subr.mxu0 0.0
    %1800 = vmatpush1.msra.mxu0 0.0
    %1801 = vmatprep.subr.mxu0 0.0
    %1802 = vmatpush1.msra.mxu0 0.0
    %1803 = vmatprep.subr.mxu0 0.0
    %1804 = vmatpush1.msra.mxu0 0.0
    %1805 = vmatprep.subr.mxu0 0.0
    %1806 = vmatpush1.msra.mxu0 0.0
    %1807 = vmatprep.subr.mxu0 0.0
    %1808 = vmatpush1.msra.mxu0 0.0
    %1809 = vmatprep.mubr.f32.mxu0 0.0
    %v1810 = vand.u32 %v1644, 4294901760
    %1811 = vmatmul.mubr.f32.gmra.mrb[0].mxu0 %v1810
    %v1812 = vpop.f32.mrb[0].mxu0
    %v1813 = vadd.f32 %v1722, %v1812
    %v1814 = vpop.f32.mrb[0].mxu0
    %1815 = vdwg.mxu0
    %1816 = vmatprep.subr.mxu0 0.0
    %v1817 = vand.u32 %v36, 4294901760
    %v1818 = vsub.f32 %v36, %v1817
    %1819 = vmatpush1.msra.mxu0 %v1818
    %1820 = vmatprep.subr.mxu0 0.0
    %v1821 = vand.u32 %v37, 4294901760
    %v1822 = vsub.f32 %v37, %v1821
    %1823 = vmatpush1.msra.mxu0 %v1822
    %1824 = vmatprep.subr.mxu0 0.0
    %v1825 = vand.u32 %v38, 4294901760
    %v1826 = vsub.f32 %v38, %v1825
    %1827 = vmatpush1.msra.mxu0 %v1826
    %1828 = vmatprep.subr.mxu0 0.0
    %v1829 = vand.u32 %v39, 4294901760
    %v1830 = vsub.f32 %v39, %v1829
    %1831 = vmatpush1.msra.mxu0 %v1830
    %1832 = vmatprep.subr.mxu0 0.0
    %1833 = vmatpush1.msra.mxu0 0.0
    %1834 = vmatprep.subr.mxu0 0.0
    %1835 = vmatpush1.msra.mxu0 0.0
    %1836 = vmatprep.subr.mxu0 0.0
    %1837 = vmatpush1.msra.mxu0 0.0
    %1838 = vmatprep.subr.mxu0 0.0
    %1839 = vmatpush1.msra.mxu0 0.0
    %1840 = vmatprep.subr.mxu0 0.0
    %1841 = vmatpush1.msra.mxu0 0.0
    %1842 = vmatprep.subr.mxu0 0.0
    %1843 = vmatpush1.msra.mxu0 0.0
    %1844 = vmatprep.subr.mxu0 0.0
    %1845 = vmatpush1.msra.mxu0 0.0
    %1846 = vmatprep.subr.mxu0 0.0
    %1847 = vmatpush1.msra.mxu0 0.0
    %1848 = vmatprep.subr.mxu0 0.0
    %1849 = vmatpush1.msra.mxu0 0.0
    %1850 = vmatprep.subr.mxu0 0.0
    %1851 = vmatpush1.msra.mxu0 0.0
    %1852 = vmatprep.subr.mxu0 0.0
    %1853 = vmatpush1.msra.mxu0 0.0
    %1854 = vmatprep.subr.mxu0 0.0
    %1855 = vmatpush1.msra.mxu0 0.0
    %1856 = vmatprep.subr.mxu0 0.0
    %1857 = vmatpush1.msra.mxu0 0.0
    %1858 = vmatprep.subr.mxu0 0.0
    %1859 = vmatpush1.msra.mxu0 0.0
    %1860 = vmatprep.subr.mxu0 0.0
    %1861 = vmatpush1.msra.mxu0 0.0
    %1862 = vmatprep.subr.mxu0 0.0
    %1863 = vmatpush1.msra.mxu0 0.0
    %1864 = vmatprep.subr.mxu0 0.0
    %1865 = vmatpush1.msra.mxu0 0.0
    %1866 = vmatprep.subr.mxu0 0.0
    %1867 = vmatpush1.msra.mxu0 0.0
    %1868 = vmatprep.subr.mxu0 0.0
    %1869 = vmatpush1.msra.mxu0 0.0
    %1870 = vmatprep.subr.mxu0 0.0
    %1871 = vmatpush1.msra.mxu0 0.0
    %1872 = vmatprep.subr.mxu0 0.0
    %1873 = vmatpush1.msra.mxu0 0.0
    %1874 = vmatprep.subr.mxu0 0.0
    %1875 = vmatpush1.msra.mxu0 0.0
    %1876 = vmatprep.subr.mxu0 0.0
    %1877 = vmatpush1.msra.mxu0 0.0
    %1878 = vmatprep.subr.mxu0 0.0
    %1879 = vmatpush1.msra.mxu0 0.0
    %1880 = vmatprep.subr.mxu0 0.0
    %1881 = vmatpush1.msra.mxu0 0.0
    %1882 = vmatprep.subr.mxu0 0.0
    %1883 = vmatpush1.msra.mxu0 0.0
    %1884 = vmatprep.subr.mxu0 0.0
    %1885 = vmatpush1.msra.mxu0 0.0
    %1886 = vmatprep.subr.mxu0 0.0
    %1887 = vmatpush1.msra.mxu0 0.0
    %1888 = vmatprep.mubr.f32.mxu0 0.0
    %v1889 = vand.u32 %v1644, 4294901760
    %v1890 = vsub.f32 %v1644, %v1889
    %1891 = vmatmul.mubr.f32.gmra.mrb[0].mxu0 %v1890
    %v1892 = vpop.f32.mrb[0].mxu0
    %v1893 = vadd.f32 %v1813, %v1892
    %v1894 = vpop.f32.mrb[0].mxu0
    %1895 = vdwg.mxu0
    %1896 = vmatprep.subr.mxu0 0.0
    %v1897 = vand.u32 %v36, 4294901760
    %1898 = vmatpush1.msra.mxu0 %v1897
    %1899 = vmatprep.subr.mxu0 0.0
    %v1900 = vand.u32 %v37, 4294901760
    %1901 = vmatpush1.msra.mxu0 %v1900
    %1902 = vmatprep.subr.mxu0 0.0
    %v1903 = vand.u32 %v38, 4294901760
    %1904 = vmatpush1.msra.mxu0 %v1903
    %1905 = vmatprep.subr.mxu0 0.0
    %v1906 = vand.u32 %v39, 4294901760
    %1907 = vmatpush1.msra.mxu0 %v1906
    %1908 = vmatprep.subr.mxu0 0.0
    %1909 = vmatpush1.msra.mxu0 0.0
    %1910 = vmatprep.subr.mxu0 0.0
    %1911 = vmatpush1.msra.mxu0 0.0
    %1912 = vmatprep.subr.mxu0 0.0
    %1913 = vmatpush1.msra.mxu0 0.0
    %1914 = vmatprep.subr.mxu0 0.0
    %1915 = vmatpush1.msra.mxu0 0.0
    %1916 = vmatprep.subr.mxu0 0.0
    %1917 = vmatpush1.msra.mxu0 0.0
    %1918 = vmatprep.subr.mxu0 0.0
    %1919 = vmatpush1.msra.mxu0 0.0
    %1920 = vmatprep.subr.mxu0 0.0
    %1921 = vmatpush1.msra.mxu0 0.0
    %1922 = vmatprep.subr.mxu0 0.0
    %1923 = vmatpush1.msra.mxu0 0.0
    %1924 = vmatprep.subr.mxu0 0.0
    %1925 = vmatpush1.msra.mxu0 0.0
    %1926 = vmatprep.subr.mxu0 0.0
    %1927 = vmatpush1.msra.mxu0 0.0
    %1928 = vmatprep.subr.mxu0 0.0
    %1929 = vmatpush1.msra.mxu0 0.0
    %1930 = vmatprep.subr.mxu0 0.0
    %1931 = vmatpush1.msra.mxu0 0.0
    %1932 = vmatprep.subr.mxu0 0.0
    %1933 = vmatpush1.msra.mxu0 0.0
    %1934 = vmatprep.subr.mxu0 0.0
    %1935 = vmatpush1.msra.mxu0 0.0
    %1936 = vmatprep.subr.mxu0 0.0
    %1937 = vmatpush1.msra.mxu0 0.0
    %1938 = vmatprep.subr.mxu0 0.0
    %1939 = vmatpush1.msra.mxu0 0.0
    %1940 = vmatprep.subr.mxu0 0.0
    %1941 = vmatpush1.msra.mxu0 0.0
    %1942 = vmatprep.subr.mxu0 0.0
    %1943 = vmatpush1.msra.mxu0 0.0
    %1944 = vmatprep.subr.mxu0 0.0
    %1945 = vmatpush1.msra.mxu0 0.0
    %1946 = vmatprep.subr.mxu0 0.0
    %1947 = vmatpush1.msra.mxu0 0.0
    %1948 = vmatprep.subr.mxu0 0.0
    %1949 = vmatpush1.msra.mxu0 0.0
    %1950 = vmatprep.subr.mxu0 0.0
    %1951 = vmatpush1.msra.mxu0 0.0
    %1952 = vmatprep.subr.mxu0 0.0
    %1953 = vmatpush1.msra.mxu0 0.0
    %1954 = vmatprep.subr.mxu0 0.0
    %1955 = vmatpush1.msra.mxu0 0.0
    %1956 = vmatprep.subr.mxu0 0.0
    %1957 = vmatpush1.msra.mxu0 0.0
    %1958 = vmatprep.subr.mxu0 0.0
    %1959 = vmatpush1.msra.mxu0 0.0
    %1960 = vmatprep.subr.mxu0 0.0
    %1961 = vmatpush1.msra.mxu0 0.0
    %1962 = vmatprep.subr.mxu0 0.0
    %1963 = vmatpush1.msra.mxu0 0.0
    %1964 = vmatprep.mubr.f32.mxu0 0.0
    %v1965 = vand.u32 %v1644, 4294901760
    %v1966 = vsub.f32 %v1644, %v1965
    %v1967 = vand.u32 %v1966, 4294901760
    %1968 = vmatmul.mubr.f32.gmra.mrb[0].mxu0 %v1967
    %v1969 = vpop.f32.mrb[0].mxu0
    %v1970 = vadd.f32 %v1893, %v1969
    %v1971 = vpop.f32.mrb[0].mxu0
    %1972 = vdwg.mxu0
    %1973 = vmatprep.subr.mxu0 0.0
    %v1974 = vand.u32 %v36, 4294901760
    %v1975 = vsub.f32 %v36, %v1974
    %v1976 = vand.u32 %v1975, 4294901760
    %1977 = vmatpush1.msra.mxu0 %v1976
    %1978 = vmatprep.subr.mxu0 0.0
    %v1979 = vand.u32 %v37, 4294901760
    %v1980 = vsub.f32 %v37, %v1979
    %v1981 = vand.u32 %v1980, 4294901760
    %1982 = vmatpush1.msra.mxu0 %v1981
    %1983 = vmatprep.subr.mxu0 0.0
    %v1984 = vand.u32 %v38, 4294901760
    %v1985 = vsub.f32 %v38, %v1984
    %v1986 = vand.u32 %v1985, 4294901760
    %1987 = vmatpush1.msra.mxu0 %v1986
    %1988 = vmatprep.subr.mxu0 0.0
    %v1989 = vand.u32 %v39, 4294901760
    %v1990 = vsub.f32 %v39, %v1989
    %v1991 = vand.u32 %v1990, 4294901760
    %1992 = vmatpush1.msra.mxu0 %v1991
    %1993 = vmatprep.subr.mxu0 0.0
    %1994 = vmatpush1.msra.mxu0 0.0
    %1995 = vmatprep.subr.mxu0 0.0
    %1996 = vmatpush1.msra.mxu0 0.0
    %1997 = vmatprep.subr.mxu0 0.0
    %1998 = vmatpush1.msra.mxu0 0.0
    %1999 = vmatprep.subr.mxu0 0.0
    %2000 = vmatpush1.msra.mxu0 0.0
    %2001 = vmatprep.subr.mxu0 0.0
    %2002 = vmatpush1.msra.mxu0 0.0
    %2003 = vmatprep.subr.mxu0 0.0
    %2004 = vmatpush1.msra.mxu0 0.0
    %2005 = vmatprep.subr.mxu0 0.0
    %2006 = vmatpush1.msra.mxu0 0.0
    %2007 = vmatprep.subr.mxu0 0.0
    %2008 = vmatpush1.msra.mxu0 0.0
    %2009 = vmatprep.subr.mxu0 0.0
    %2010 = vmatpush1.msra.mxu0 0.0
    %2011 = vmatprep.subr.mxu0 0.0
    %2012 = vmatpush1.msra.mxu0 0.0
    %2013 = vmatprep.subr.mxu0 0.0
    %2014 = vmatpush1.msra.mxu0 0.0
    %2015 = vmatprep.subr.mxu0 0.0
    %2016 = vmatpush1.msra.mxu0 0.0
    %2017 = vmatprep.subr.mxu0 0.0
    %2018 = vmatpush1.msra.mxu0 0.0
    %2019 = vmatprep.subr.mxu0 0.0
    %2020 = vmatpush1.msra.mxu0 0.0
    %2021 = vmatprep.subr.mxu0 0.0
    %2022 = vmatpush1.msra.mxu0 0.0
    %2023 = vmatprep.subr.mxu0 0.0
    %2024 = vmatpush1.msra.mxu0 0.0
    %2025 = vmatprep.subr.mxu0 0.0
    %2026 = vmatpush1.msra.mxu0 0.0
    %2027 = vmatprep.subr.mxu0 0.0
    %2028 = vmatpush1.msra.mxu0 0.0
    %2029 = vmatprep.subr.mxu0 0.0
    %2030 = vmatpush1.msra.mxu0 0.0
    %2031 = vmatprep.subr.mxu0 0.0
    %2032 = vmatpush1.msra.mxu0 0.0
    %2033 = vmatprep.subr.mxu0 0.0
    %2034 = vmatpush1.msra.mxu0 0.0
    %2035 = vmatprep.subr.mxu0 0.0
    %2036 = vmatpush1.msra.mxu0 0.0
    %2037 = vmatprep.subr.mxu0 0.0
    %2038 = vmatpush1.msra.mxu0 0.0
    %2039 = vmatprep.subr.mxu0 0.0
    %2040 = vmatpush1.msra.mxu0 0.0
    %2041 = vmatprep.subr.mxu0 0.0
    %2042 = vmatpush1.msra.mxu0 0.0
    %2043 = vmatprep.subr.mxu0 0.0
    %2044 = vmatpush1.msra.mxu0 0.0
    %2045 = vmatprep.subr.mxu0 0.0
    %2046 = vmatpush1.msra.mxu0 0.0
    %2047 = vmatprep.subr.mxu0 0.0
    %2048 = vmatpush1.msra.mxu0 0.0
    %2049 = vmatprep.mubr.f32.mxu0 0.0
    %v2050 = vand.u32 %v1644, 4294901760
    %2051 = vmatmul.mubr.f32.gmra.mrb[0].mxu0 %v2050
    %v2052 = vpop.f32.mrb[0].mxu0
    %v2053 = vadd.f32 %v1970, %v2052
    %v2054 = vpop.f32.mrb[0].mxu0
    %2055 = vdwg.mxu0
    %2056 = vmatprep.subr.mxu0 0.0
    %v2057 = vand.u32 %v36, 4294901760
    %2058 = vmatpush1.msra.mxu0 %v2057
    %2059 = vmatprep.subr.mxu0 0.0
    %v2060 = vand.u32 %v37, 4294901760
    %2061 = vmatpush1.msra.mxu0 %v2060
    %2062 = vmatprep.subr.mxu0 0.0
    %v2063 = vand.u32 %v38, 4294901760
    %2064 = vmatpush1.msra.mxu0 %v2063
    %2065 = vmatprep.subr.mxu0 0.0
    %v2066 = vand.u32 %v39, 4294901760
    %2067 = vmatpush1.msra.mxu0 %v2066
    %2068 = vmatprep.subr.mxu0 0.0
    %2069 = vmatpush1.msra.mxu0 0.0
    %2070 = vmatprep.subr.mxu0 0.0
    %2071 = vmatpush1.msra.mxu0 0.0
    %2072 = vmatprep.subr.mxu0 0.0
    %2073 = vmatpush1.msra.mxu0 0.0
    %2074 = vmatprep.subr.mxu0 0.0
    %2075 = vmatpush1.msra.mxu0 0.0
    %2076 = vmatprep.subr.mxu0 0.0
    %2077 = vmatpush1.msra.mxu0 0.0
    %2078 = vmatprep.subr.mxu0 0.0
    %2079 = vmatpush1.msra.mxu0 0.0
    %2080 = vmatprep.subr.mxu0 0.0
    %2081 = vmatpush1.msra.mxu0 0.0
    %2082 = vmatprep.subr.mxu0 0.0
    %2083 = vmatpush1.msra.mxu0 0.0
    %2084 = vmatprep.subr.mxu0 0.0
    %2085 = vmatpush1.msra.mxu0 0.0
    %2086 = vmatprep.subr.mxu0 0.0
    %2087 = vmatpush1.msra.mxu0 0.0
    %2088 = vmatprep.subr.mxu0 0.0
    %2089 = vmatpush1.msra.mxu0 0.0
    %2090 = vmatprep.subr.mxu0 0.0
    %2091 = vmatpush1.msra.mxu0 0.0
    %2092 = vmatprep.subr.mxu0 0.0
    %2093 = vmatpush1.msra.mxu0 0.0
    %2094 = vmatprep.subr.mxu0 0.0
    %2095 = vmatpush1.msra.mxu0 0.0
    %2096 = vmatprep.subr.mxu0 0.0
    %2097 = vmatpush1.msra.mxu0 0.0
    %2098 = vmatprep.subr.mxu0 0.0
    %2099 = vmatpush1.msra.mxu0 0.0
    %2100 = vmatprep.subr.mxu0 0.0
    %2101 = vmatpush1.msra.mxu0 0.0
    %2102 = vmatprep.subr.mxu0 0.0
    %2103 = vmatpush1.msra.mxu0 0.0
    %2104 = vmatprep.subr.mxu0 0.0
    %2105 = vmatpush1.msra.mxu0 0.0
    %2106 = vmatprep.subr.mxu0 0.0
    %2107 = vmatpush1.msra.mxu0 0.0
    %2108 = vmatprep.subr.mxu0 0.0
    %2109 = vmatpush1.msra.mxu0 0.0
    %2110 = vmatprep.subr.mxu0 0.0
    %2111 = vmatpush1.msra.mxu0 0.0
    %2112 = vmatprep.subr.mxu0 0.0
    %2113 = vmatpush1.msra.mxu0 0.0
    %2114 = vmatprep.subr.mxu0 0.0
    %2115 = vmatpush1.msra.mxu0 0.0
    %2116 = vmatprep.subr.mxu0 0.0
    %2117 = vmatpush1.msra.mxu0 0.0
    %2118 = vmatprep.subr.mxu0 0.0
    %2119 = vmatpush1.msra.mxu0 0.0
    %2120 = vmatprep.subr.mxu0 0.0
    %2121 = vmatpush1.msra.mxu0 0.0
    %2122 = vmatprep.subr.mxu0 0.0
    %2123 = vmatpush1.msra.mxu0 0.0
    %2124 = vmatprep.mubr.f32.mxu0 0.0
    %v2125 = vand.u32 %v1644, 4294901760
    %2126 = vmatmul.mubr.f32.gmra.mrb[0].mxu0 %v2125
    %v2127 = vpop.f32.mrb[0].mxu0
    %v2128 = vadd.f32 %v2053, %v2127
    %v2129 = vpop.f32.mrb[0].mxu0
    %2130 = vdwg.mxu0
    %v2131 = vxor.u32 %v2128, 2147483648
    %v2132 = vmul.f32 %v2131, 1.442695
    %v2133 = vpow.pop %v2132
    %v2134 = vadd.f32 %v2133, 1.0
    %v2135 = vrcp.pop %v2134
    %v2136 = vmul.f32 1.0, %v2135
    %v2137 = vtanh.pop %v2128
    %v2138 = vld [vmem:[#allocation3] sm:$0x3]
    %2140 = vrot.lane.b32.xlu0 %v2138, 32
    %v2141 = vpop.permute.xlu0 %2140
    %v2143 = vmul.f32 %v2136, %v2141
    %2145 = vrot.lane.b32.xlu0 %v2137, 64
    %v2146 = vpop.permute.xlu0 %2145
    %v2148 = vmul.f32 %v2136, %v2146
    %2150 = vrot.lane.b32.xlu0 %v2148, 32
    %v2151 = vpop.permute.xlu0 %2150
    %v2153 = vadd.f32 %v2143, %v2151
    %v2154 = vtanh.pop %v2153
    %2156 = vrot.lane.b32.xlu0 %v2154, 64
    %v2157 = vpop.permute.xlu0 %2156
    %v2159 = vmul.f32 %v2136, %v2157
    %2161 = vrot.lane.b32.xlu0 %v2153, 96
    %v2162 = vpop.permute.xlu0 %2161
    %2164 = vst.msk [vmem:[#allocation3] sm:$0x3] %vm41, %v2162
    %2166 = vrot.lane.b32.xlu0 %v2159, 32
    %v2167 = vpop.permute.xlu0 %2166
    %2169 = vst.msk [vmem:[#allocation2] sm:$0x3] %vm41, %v2167
    %s2170 = scalar_lea.vmem [#allocation4], 6
    %2171 = vst.msk [vmem:[%s2170] sm:$0x3] %vm41, %v2167
    %v2172 = vld [vmem:[#allocation2] sm:$0x3]
    %s2173 = scalar_lea.vmem %s0, 8
    %v2174 = vld [vmem:[%s2173] sm:$0x3]
    %v2176 = vsel %vm47, %v2172, 0
    %2178 = vmatprep.subr.mxu0 0.0
    %v2179 = vand.u32 %v36, 4294901760
    %2180 = vmatpush1.msra.mxu0 %v2179
    %2181 = vmatprep.subr.mxu0 0.0
    %v2182 = vand.u32 %v37, 4294901760
    %2183 = vmatpush1.msra.mxu0 %v2182
    %2184 = vmatprep.subr.mxu0 0.0
    %v2185 = vand.u32 %v38, 4294901760
    %2186 = vmatpush1.msra.mxu0 %v2185
    %2187 = vmatprep.subr.mxu0 0.0
    %v2188 = vand.u32 %v39, 4294901760
    %2189 = vmatpush1.msra.mxu0 %v2188
    %2190 = vmatprep.subr.mxu0 0.0
    %2191 = vmatpush1.msra.mxu0 0.0
    %2192 = vmatprep.subr.mxu0 0.0
    %2193 = vmatpush1.msra.mxu0 0.0
    %2194 = vmatprep.subr.mxu0 0.0
    %2195 = vmatpush1.msra.mxu0 0.0
    %2196 = vmatprep.subr.mxu0 0.0
    %2197 = vmatpush1.msra.mxu0 0.0
    %2198 = vmatprep.subr.mxu0 0.0
    %2199 = vmatpush1.msra.mxu0 0.0
    %2200 = vmatprep.subr.mxu0 0.0
    %2201 = vmatpush1.msra.mxu0 0.0
    %2202 = vmatprep.subr.mxu0 0.0
    %2203 = vmatpush1.msra.mxu0 0.0
    %2204 = vmatprep.subr.mxu0 0.0
    %2205 = vmatpush1.msra.mxu0 0.0
    %2206 = vmatprep.subr.mxu0 0.0
    %2207 = vmatpush1.msra.mxu0 0.0
    %2208 = vmatprep.subr.mxu0 0.0
    %2209 = vmatpush1.msra.mxu0 0.0
    %2210 = vmatprep.subr.mxu0 0.0
    %2211 = vmatpush1.msra.mxu0 0.0
    %2212 = vmatprep.subr.mxu0 0.0
    %2213 = vmatpush1.msra.mxu0 0.0
    %2214 = vmatprep.subr.mxu0 0.0
    %2215 = vmatpush1.msra.mxu0 0.0
    %2216 = vmatprep.subr.mxu0 0.0
    %2217 = vmatpush1.msra.mxu0 0.0
    %2218 = vmatprep.subr.mxu0 0.0
    %2219 = vmatpush1.msra.mxu0 0.0
    %2220 = vmatprep.subr.mxu0 0.0
    %2221 = vmatpush1.msra.mxu0 0.0
    %2222 = vmatprep.subr.mxu0 0.0
    %2223 = vmatpush1.msra.mxu0 0.0
    %2224 = vmatprep.subr.mxu0 0.0
    %2225 = vmatpush1.msra.mxu0 0.0
    %2226 = vmatprep.subr.mxu0 0.0
    %2227 = vmatpush1.msra.mxu0 0.0
    %2228 = vmatprep.subr.mxu0 0.0
    %2229 = vmatpush1.msra.mxu0 0.0
    %2230 = vmatprep.subr.mxu0 0.0
    %2231 = vmatpush1.msra.mxu0 0.0
    %2232 = vmatprep.subr.mxu0 0.0
    %2233 = vmatpush1.msra.mxu0 0.0
    %2234 = vmatprep.subr.mxu0 0.0
    %2235 = vmatpush1.msra.mxu0 0.0
    %2236 = vmatprep.subr.mxu0 0.0
    %2237 = vmatpush1.msra.mxu0 0.0
    %2238 = vmatprep.subr.mxu0 0.0
    %2239 = vmatpush1.msra.mxu0 0.0
    %2240 = vmatprep.subr.mxu0 0.0
    %2241 = vmatpush1.msra.mxu0 0.0
    %2242 = vmatprep.subr.mxu0 0.0
    %2243 = vmatpush1.msra.mxu0 0.0
    %2244 = vmatprep.subr.mxu0 0.0
    %2245 = vmatpush1.msra.mxu0 0.0
    %2246 = vmatprep.mubr.f32.mxu0 0.0
    %v2247 = vand.u32 %v2176, 4294901760
    %v2248 = vsub.f32 %v2176, %v2247
    %v2249 = vand.u32 %v2248, 4294901760
    %v2250 = vsub.f32 %v2248, %v2249
    %v2251 = vand.u32 %v2250, 4294901760
    %2252 = vmatmul.mubr.f32.gmra.mrb[0].mxu0 %v2251
    %v2253 = vpop.f32.mrb[0].mxu0
    %v2254 = vadd.f32 %v2174, %v2253
    %v2255 = vpop.f32.mrb[0].mxu0
    %2256 = vdwg.mxu0
    %2257 = vmatprep.subr.mxu0 0.0
    %v2258 = vand.u32 %v36, 4294901760
    %v2259 = vsub.f32 %v36, %v2258
    %v2260 = vand.u32 %v2259, 4294901760
    %v2261 = vsub.f32 %v2259, %v2260
    %v2262 = vand.u32 %v2261, 4294901760
    %2263 = vmatpush1.msra.mxu0 %v2262
    %2264 = vmatprep.subr.mxu0 0.0
    %v2265 = vand.u32 %v37, 4294901760
    %v2266 = vsub.f32 %v37, %v2265
    %v2267 = vand.u32 %v2266, 4294901760
    %v2268 = vsub.f32 %v2266, %v2267
    %v2269 = vand.u32 %v2268, 4294901760
    %2270 = vmatpush1.msra.mxu0 %v2269
    %2271 = vmatprep.subr.mxu0 0.0
    %v2272 = vand.u32 %v38, 4294901760
    %v2273 = vsub.f32 %v38, %v2272
    %v2274 = vand.u32 %v2273, 4294901760
    %v2275 = vsub.f32 %v2273, %v2274
    %v2276 = vand.u32 %v2275, 4294901760
    %2277 = vmatpush1.msra.mxu0 %v2276
    %2278 = vmatprep.subr.mxu0 0.0
    %v2279 = vand.u32 %v39, 4294901760
    %v2280 = vsub.f32 %v39, %v2279
    %v2281 = vand.u32 %v2280, 4294901760
    %v2282 = vsub.f32 %v2280, %v2281
    %v2283 = vand.u32 %v2282, 4294901760
    %2284 = vmatpush1.msra.mxu0 %v2283
    %2285 = vmatprep.subr.mxu0 0.0
    %2286 = vmatpush1.msra.mxu0 0.0
    %2287 = vmatprep.subr.mxu0 0.0
    %2288 = vmatpush1.msra.mxu0 0.0
    %2289 = vmatprep.subr.mxu0 0.0
    %2290 = vmatpush1.msra.mxu0 0.0
    %2291 = vmatprep.subr.mxu0 0.0
    %2292 = vmatpush1.msra.mxu0 0.0
    %2293 = vmatprep.subr.mxu0 0.0
    %2294 = vmatpush1.msra.mxu0 0.0
    %2295 = vmatprep.subr.mxu0 0.0
    %2296 = vmatpush1.msra.mxu0 0.0
    %2297 = vmatprep.subr.mxu0 0.0
    %2298 = vmatpush1.msra.mxu0 0.0
    %2299 = vmatprep.subr.mxu0 0.0
    %2300 = vmatpush1.msra.mxu0 0.0
    %2301 = vmatprep.subr.mxu0 0.0
    %2302 = vmatpush1.msra.mxu0 0.0
    %2303 = vmatprep.subr.mxu0 0.0
    %2304 = vmatpush1.msra.mxu0 0.0
    %2305 = vmatprep.subr.mxu0 0.0
    %2306 = vmatpush1.msra.mxu0 0.0
    %2307 = vmatprep.subr.mxu0 0.0
    %2308 = vmatpush1.msra.mxu0 0.0
    %2309 = vmatprep.subr.mxu0 0.0
    %2310 = vmatpush1.msra.mxu0 0.0
    %2311 = vmatprep.subr.mxu0 0.0
    %2312 = vmatpush1.msra.mxu0 0.0
    %2313 = vmatprep.subr.mxu0 0.0
    %2314 = vmatpush1.msra.mxu0 0.0
    %2315 = vmatprep.subr.mxu0 0.0
    %2316 = vmatpush1.msra.mxu0 0.0
    %2317 = vmatprep.subr.mxu0 0.0
    %2318 = vmatpush1.msra.mxu0 0.0
    %2319 = vmatprep.subr.mxu0 0.0
    %2320 = vmatpush1.msra.mxu0 0.0
    %2321 = vmatprep.subr.mxu0 0.0
    %2322 = vmatpush1.msra.mxu0 0.0
    %2323 = vmatprep.subr.mxu0 0.0
    %2324 = vmatpush1.msra.mxu0 0.0
    %2325 = vmatprep.subr.mxu0 0.0
    %2326 = vmatpush1.msra.mxu0 0.0
    %2327 = vmatprep.subr.mxu0 0.0
    %2328 = vmatpush1.msra.mxu0 0.0
    %2329 = vmatprep.subr.mxu0 0.0
    %2330 = vmatpush1.msra.mxu0 0.0
    %2331 = vmatprep.subr.mxu0 0.0
    %2332 = vmatpush1.msra.mxu0 0.0
    %2333 = vmatprep.subr.mxu0 0.0
    %2334 = vmatpush1.msra.mxu0 0.0
    %2335 = vmatprep.subr.mxu0 0.0
    %2336 = vmatpush1.msra.mxu0 0.0
    %2337 = vmatprep.subr.mxu0 0.0
    %2338 = vmatpush1.msra.mxu0 0.0
    %2339 = vmatprep.subr.mxu0 0.0
    %2340 = vmatpush1.msra.mxu0 0.0
    %2341 = vmatprep.mubr.f32.mxu0 0.0
    %v2342 = vand.u32 %v2176, 4294901760
    %2343 = vmatmul.mubr.f32.gmra.mrb[0].mxu0 %v2342
    %v2344 = vpop.f32.mrb[0].mxu0
    %v2345 = vadd.f32 %v2254, %v2344
    %v2346 = vpop.f32.mrb[0].mxu0
    %2347 = vdwg.mxu0
    %2348 = vmatprep.subr.mxu0 0.0
    %v2349 = vand.u32 %v36, 4294901760
    %v2350 = vsub.f32 %v36, %v2349
    %2351 = vmatpush1.msra.mxu0 %v2350
    %2352 = vmatprep.subr.mxu0 0.0
    %v2353 = vand.u32 %v37, 4294901760
    %v2354 = vsub.f32 %v37, %v2353
    %2355 = vmatpush1.msra.mxu0 %v2354
    %2356 = vmatprep.subr.mxu0 0.0
    %v2357 = vand.u32 %v38, 4294901760
    %v2358 = vsub.f32 %v38, %v2357
    %2359 = vmatpush1.msra.mxu0 %v2358
    %2360 = vmatprep.subr.mxu0 0.0
    %v2361 = vand.u32 %v39, 4294901760
    %v2362 = vsub.f32 %v39, %v2361
    %2363 = vmatpush1.msra.mxu0 %v2362
    %2364 = vmatprep.subr.mxu0 0.0
    %2365 = vmatpush1.msra.mxu0 0.0
    %2366 = vmatprep.subr.mxu0 0.0
    %2367 = vmatpush1.msra.mxu0 0.0
    %2368 = vmatprep.subr.mxu0 0.0
    %2369 = vmatpush1.msra.mxu0 0.0
    %2370 = vmatprep.subr.mxu0 0.0
    %2371 = vmatpush1.msra.mxu0 0.0
    %2372 = vmatprep.subr.mxu0 0.0
    %2373 = vmatpush1.msra.mxu0 0.0
    %2374 = vmatprep.subr.mxu0 0.0
    %2375 = vmatpush1.msra.mxu0 0.0
    %2376 = vmatprep.subr.mxu0 0.0
    %2377 = vmatpush1.msra.mxu0 0.0
    %2378 = vmatprep.subr.mxu0 0.0
    %2379 = vmatpush1.msra.mxu0 0.0
    %2380 = vmatprep.subr.mxu0 0.0
    %2381 = vmatpush1.msra.mxu0 0.0
    %2382 = vmatprep.subr.mxu0 0.0
    %2383 = vmatpush1.msra.mxu0 0.0
    %2384 = vmatprep.subr.mxu0 0.0
    %2385 = vmatpush1.msra.mxu0 0.0
    %2386 = vmatprep.subr.mxu0 0.0
    %2387 = vmatpush1.msra.mxu0 0.0
    %2388 = vmatprep.subr.mxu0 0.0
    %2389 = vmatpush1.msra.mxu0 0.0
    %2390 = vmatprep.subr.mxu0 0.0
    %2391 = vmatpush1.msra.mxu0 0.0
    %2392 = vmatprep.subr.mxu0 0.0
    %2393 = vmatpush1.msra.mxu0 0.0
    %2394 = vmatprep.subr.mxu0 0.0
    %2395 = vmatpush1.msra.mxu0 0.0
    %2396 = vmatprep.subr.mxu0 0.0
    %2397 = vmatpush1.msra.mxu0 0.0
    %2398 = vmatprep.subr.mxu0 0.0
    %2399 = vmatpush1.msra.mxu0 0.0
    %2400 = vmatprep.subr.mxu0 0.0
    %2401 = vmatpush1.msra.mxu0 0.0
    %2402 = vmatprep.subr.mxu0 0.0
    %2403 = vmatpush1.msra.mxu0 0.0
    %2404 = vmatprep.subr.mxu0 0.0
    %2405 = vmatpush1.msra.mxu0 0.0
    %2406 = vmatprep.subr.mxu0 0.0
    %2407 = vmatpush1.msra.mxu0 0.0
    %2408 = vmatprep.subr.mxu0 0.0
    %2409 = vmatpush1.msra.mxu0 0.0
    %2410 = vmatprep.subr.mxu0 0.0
    %2411 = vmatpush1.msra.mxu0 0.0
    %2412 = vmatprep.subr.mxu0 0.0
    %2413 = vmatpush1.msra.mxu0 0.0
    %2414 = vmatprep.subr.mxu0 0.0
    %2415 = vmatpush1.msra.mxu0 0.0
    %2416 = vmatprep.subr.mxu0 0.0
    %2417 = vmatpush1.msra.mxu0 0.0
    %2418 = vmatprep.subr.mxu0 0.0
    %2419 = vmatpush1.msra.mxu0 0.0
    %2420 = vmatprep.mubr.f32.mxu0 0.0
    %v2421 = vand.u32 %v2176, 4294901760
    %v2422 = vsub.f32 %v2176, %v2421
    %2423 = vmatmul.mubr.f32.gmra.mrb[0].mxu0 %v2422
    %v2424 = vpop.f32.mrb[0].mxu0
    %v2425 = vadd.f32 %v2345, %v2424
    %v2426 = vpop.f32.mrb[0].mxu0
    %2427 = vdwg.mxu0
    %2428 = vmatprep.subr.mxu0 0.0
    %v2429 = vand.u32 %v36, 4294901760
    %2430 = vmatpush1.msra.mxu0 %v2429
    %2431 = vmatprep.subr.mxu0 0.0
    %v2432 = vand.u32 %v37, 4294901760
    %2433 = vmatpush1.msra.mxu0 %v2432
    %2434 = vmatprep.subr.mxu0 0.0
    %v2435 = vand.u32 %v38, 4294901760
    %2436 = vmatpush1.msra.mxu0 %v2435
    %2437 = vmatprep.subr.mxu0 0.0
    %v2438 = vand.u32 %v39, 4294901760
    %2439 = vmatpush1.msra.mxu0 %v2438
    %2440 = vmatprep.subr.mxu0 0.0
    %2441 = vmatpush1.msra.mxu0 0.0
    %2442 = vmatprep.subr.mxu0 0.0
    %2443 = vmatpush1.msra.mxu0 0.0
    %2444 = vmatprep.subr.mxu0 0.0
    %2445 = vmatpush1.msra.mxu0 0.0
    %2446 = vmatprep.subr.mxu0 0.0
    %2447 = vmatpush1.msra.mxu0 0.0
    %2448 = vmatprep.subr.mxu0 0.0
    %2449 = vmatpush1.msra.mxu0 0.0
    %2450 = vmatprep.subr.mxu0 0.0
    %2451 = vmatpush1.msra.mxu0 0.0
    %2452 = vmatprep.subr.mxu0 0.0
    %2453 = vmatpush1.msra.mxu0 0.0
    %2454 = vmatprep.subr.mxu0 0.0
    %2455 = vmatpush1.msra.mxu0 0.0
    %2456 = vmatprep.subr.mxu0 0.0
    %2457 = vmatpush1.msra.mxu0 0.0
    %2458 = vmatprep.subr.mxu0 0.0
    %2459 = vmatpush1.msra.mxu0 0.0
    %2460 = vmatprep.subr.mxu0 0.0
    %2461 = vmatpush1.msra.mxu0 0.0
    %2462 = vmatprep.subr.mxu0 0.0
    %2463 = vmatpush1.msra.mxu0 0.0
    %2464 = vmatprep.subr.mxu0 0.0
    %2465 = vmatpush1.msra.mxu0 0.0
    %2466 = vmatprep.subr.mxu0 0.0
    %2467 = vmatpush1.msra.mxu0 0.0
    %2468 = vmatprep.subr.mxu0 0.0
    %2469 = vmatpush1.msra.mxu0 0.0
    %2470 = vmatprep.subr.mxu0 0.0
    %2471 = vmatpush1.msra.mxu0 0.0
    %2472 = vmatprep.subr.mxu0 0.0
    %2473 = vmatpush1.msra.mxu0 0.0
    %2474 = vmatprep.subr.mxu0 0.0
    %2475 = vmatpush1.msra.mxu0 0.0
    %2476 = vmatprep.subr.mxu0 0.0
    %2477 = vmatpush1.msra.mxu0 0.0
    %2478 = vmatprep.subr.mxu0 0.0
    %2479 = vmatpush1.msra.mxu0 0.0
    %2480 = vmatprep.subr.mxu0 0.0
    %2481 = vmatpush1.msra.mxu0 0.0
    %2482 = vmatprep.subr.mxu0 0.0
    %2483 = vmatpush1.msra.mxu0 0.0
    %2484 = vmatprep.subr.mxu0 0.0
    %2485 = vmatpush1.msra.mxu0 0.0
    %2486 = vmatprep.subr.mxu0 0.0
    %2487 = vmatpush1.msra.mxu0 0.0
    %2488 = vmatprep.subr.mxu0 0.0
    %2489 = vmatpush1.msra.mxu0 0.0
    %2490 = vmatprep.subr.mxu0 0.0
    %2491 = vmatpush1.msra.mxu0 0.0
    %2492 = vmatprep.subr.mxu0 0.0
    %2493 = vmatpush1.msra.mxu0 0.0
    %2494 = vmatprep.subr.mxu0 0.0
    %2495 = vmatpush1.msra.mxu0 0.0
    %2496 = vmatprep.mubr.f32.mxu0 0.0
    %v2497 = vand.u32 %v2176, 4294901760
    %v2498 = vsub.f32 %v2176, %v2497
    %v2499 = vand.u32 %v2498, 4294901760
    %2500 = vmatmul.mubr.f32.gmra.mrb[0].mxu0 %v2499
    %v2501 = vpop.f32.mrb[0].mxu0
    %v2502 = vadd.f32 %v2425, %v2501
    %v2503 = vpop.f32.mrb[0].mxu0
    %2504 = vdwg.mxu0
    %2505 = vmatprep.subr.mxu0 0.0
    %v2506 = vand.u32 %v36, 4294901760
    %v2507 = vsub.f32 %v36, %v2506
    %v2508 = vand.u32 %v2507, 4294901760
    %2509 = vmatpush1.msra.mxu0 %v2508
    %2510 = vmatprep.subr.mxu0 0.0
    %v2511 = vand.u32 %v37, 4294901760
    %v2512 = vsub.f32 %v37, %v2511
    %v2513 = vand.u32 %v2512, 4294901760
    %2514 = vmatpush1.msra.mxu0 %v2513
    %2515 = vmatprep.subr.mxu0 0.0
    %v2516 = vand.u32 %v38, 4294901760
    %v2517 = vsub.f32 %v38, %v2516
    %v2518 = vand.u32 %v2517, 4294901760
    %2519 = vmatpush1.msra.mxu0 %v2518
    %2520 = vmatprep.subr.mxu0 0.0
    %v2521 = vand.u32 %v39, 4294901760
    %v2522 = vsub.f32 %v39, %v2521
    %v2523 = vand.u32 %v2522, 4294901760
    %2524 = vmatpush1.msra.mxu0 %v2523
    %2525 = vmatprep.subr.mxu0 0.0
    %2526 = vmatpush1.msra.mxu0 0.0
    %2527 = vmatprep.subr.mxu0 0.0
    %2528 = vmatpush1.msra.mxu0 0.0
    %2529 = vmatprep.subr.mxu0 0.0
    %2530 = vmatpush1.msra.mxu0 0.0
    %2531 = vmatprep.subr.mxu0 0.0
    %2532 = vmatpush1.msra.mxu0 0.0
    %2533 = vmatprep.subr.mxu0 0.0
    %2534 = vmatpush1.msra.mxu0 0.0
    %2535 = vmatprep.subr.mxu0 0.0
    %2536 = vmatpush1.msra.mxu0 0.0
    %2537 = vmatprep.subr.mxu0 0.0
    %2538 = vmatpush1.msra.mxu0 0.0
    %2539 = vmatprep.subr.mxu0 0.0
    %2540 = vmatpush1.msra.mxu0 0.0
    %2541 = vmatprep.subr.mxu0 0.0
    %2542 = vmatpush1.msra.mxu0 0.0
    %2543 = vmatprep.subr.mxu0 0.0
    %2544 = vmatpush1.msra.mxu0 0.0
    %2545 = vmatprep.subr.mxu0 0.0
    %2546 = vmatpush1.msra.mxu0 0.0
    %2547 = vmatprep.subr.mxu0 0.0
    %2548 = vmatpush1.msra.mxu0 0.0
    %2549 = vmatprep.subr.mxu0 0.0
    %2550 = vmatpush1.msra.mxu0 0.0
    %2551 = vmatprep.subr.mxu0 0.0
    %2552 = vmatpush1.msra.mxu0 0.0
    %2553 = vmatprep.subr.mxu0 0.0
    %2554 = vmatpush1.msra.mxu0 0.0
    %2555 = vmatprep.subr.mxu0 0.0
    %2556 = vmatpush1.msra.mxu0 0.0
    %2557 = vmatprep.subr.mxu0 0.0
    %2558 = vmatpush1.msra.mxu0 0.0
    %2559 = vmatprep.subr.mxu0 0.0
    %2560 = vmatpush1.msra.mxu0 0.0
    %2561 = vmatprep.subr.mxu0 0.0
    %2562 = vmatpush1.msra.mxu0 0.0
    %2563 = vmatprep.subr.mxu0 0.0
    %2564 = vmatpush1.msra.mxu0 0.0
    %2565 = vmatprep.subr.mxu0 0.0
    %2566 = vmatpush1.msra.mxu0 0.0
    %2567 = vmatprep.subr.mxu0 0.0
    %2568 = vmatpush1.msra.mxu0 0.0
    %2569 = vmatprep.subr.mxu0 0.0
    %2570 = vmatpush1.msra.mxu0 0.0
    %2571 = vmatprep.subr.mxu0 0.0
    %2572 = vmatpush1.msra.mxu0 0.0
    %2573 = vmatprep.subr.mxu0 0.0
    %2574 = vmatpush1.msra.mxu0 0.0
    %2575 = vmatprep.subr.mxu0 0.0
    %2576 = vmatpush1.msra.mxu0 0.0
    %2577 = vmatprep.subr.mxu0 0.0
    %2578 = vmatpush1.msra.mxu0 0.0
    %2579 = vmatprep.subr.mxu0 0.0
    %2580 = vmatpush1.msra.mxu0 0.0
    %2581 = vmatprep.mubr.f32.mxu0 0.0
    %v2582 = vand.u32 %v2176, 4294901760
    %2583 = vmatmul.mubr.f32.gmra.mrb[0].mxu0 %v2582
    %v2584 = vpop.f32.mrb[0].mxu0
    %v2585 = vadd.f32 %v2502, %v2584
    %v2586 = vpop.f32.mrb[0].mxu0
    %2587 = vdwg.mxu0
    %2588 = vmatprep.subr.mxu0 0.0
    %v2589 = vand.u32 %v36, 4294901760
    %2590 = vmatpush1.msra.mxu0 %v2589
    %2591 = vmatprep.subr.mxu0 0.0
    %v2592 = vand.u32 %v37, 4294901760
    %2593 = vmatpush1.msra.mxu0 %v2592
    %2594 = vmatprep.subr.mxu0 0.0
    %v2595 = vand.u32 %v38, 4294901760
    %2596 = vmatpush1.msra.mxu0 %v2595
    %2597 = vmatprep.subr.mxu0 0.0
    %v2598 = vand.u32 %v39, 4294901760
    %2599 = vmatpush1.msra.mxu0 %v2598
    %2600 = vmatprep.subr.mxu0 0.0
    %2601 = vmatpush1.msra.mxu0 0.0
    %2602 = vmatprep.subr.mxu0 0.0
    %2603 = vmatpush1.msra.mxu0 0.0
    %2604 = vmatprep.subr.mxu0 0.0
    %2605 = vmatpush1.msra.mxu0 0.0
    %2606 = vmatprep.subr.mxu0 0.0
    %2607 = vmatpush1.msra.mxu0 0.0
    %2608 = vmatprep.subr.mxu0 0.0
    %2609 = vmatpush1.msra.mxu0 0.0
    %2610 = vmatprep.subr.mxu0 0.0
    %2611 = vmatpush1.msra.mxu0 0.0
    %2612 = vmatprep.subr.mxu0 0.0
    %2613 = vmatpush1.msra.mxu0 0.0
    %2614 = vmatprep.subr.mxu0 0.0
    %2615 = vmatpush1.msra.mxu0 0.0
    %2616 = vmatprep.subr.mxu0 0.0
    %2617 = vmatpush1.msra.mxu0 0.0
    %2618 = vmatprep.subr.mxu0 0.0
    %2619 = vmatpush1.msra.mxu0 0.0
    %2620 = vmatprep.subr.mxu0 0.0
    %2621 = vmatpush1.msra.mxu0 0.0
    %2622 = vmatprep.subr.mxu0 0.0
    %2623 = vmatpush1.msra.mxu0 0.0
    %2624 = vmatprep.subr.mxu0 0.0
    %2625 = vmatpush1.msra.mxu0 0.0
    %2626 = vmatprep.subr.mxu0 0.0
    %2627 = vmatpush1.msra.mxu0 0.0
    %2628 = vmatprep.subr.mxu0 0.0
    %2629 = vmatpush1.msra.mxu0 0.0
    %2630 = vmatprep.subr.mxu0 0.0
    %2631 = vmatpush1.msra.mxu0 0.0
    %2632 = vmatprep.subr.mxu0 0.0
    %2633 = vmatpush1.msra.mxu0 0.0
    %2634 = vmatprep.subr.mxu0 0.0
    %2635 = vmatpush1.msra.mxu0 0.0
    %2636 = vmatprep.subr.mxu0 0.0
    %2637 = vmatpush1.msra.mxu0 0.0
    %2638 = vmatprep.subr.mxu0 0.0
    %2639 = vmatpush1.msra.mxu0 0.0
    %2640 = vmatprep.subr.mxu0 0.0
    %2641 = vmatpush1.msra.mxu0 0.0
    %2642 = vmatprep.subr.mxu0 0.0
    %2643 = vmatpush1.msra.mxu0 0.0
    %2644 = vmatprep.subr.mxu0 0.0
    %2645 = vmatpush1.msra.mxu0 0.0
    %2646 = vmatprep.subr.mxu0 0.0
    %2647 = vmatpush1.msra.mxu0 0.0
    %2648 = vmatprep.subr.mxu0 0.0
    %2649 = vmatpush1.msra.mxu0 0.0
    %2650 = vmatprep.subr.mxu0 0.0
    %2651 = vmatpush1.msra.mxu0 0.0
    %2652 = vmatprep.subr.mxu0 0.0
    %2653 = vmatpush1.msra.mxu0 0.0
    %2654 = vmatprep.subr.mxu0 0.0
    %2655 = vmatpush1.msra.mxu0 0.0
    %2656 = vmatprep.mubr.f32.mxu0 0.0
    %v2657 = vand.u32 %v2176, 4294901760
    %2658 = vmatmul.mubr.f32.gmra.mrb[0].mxu0 %v2657
    %v2659 = vpop.f32.mrb[0].mxu0
    %v2660 = vadd.f32 %v2585, %v2659
    %v2661 = vpop.f32.mrb[0].mxu0
    %2662 = vdwg.mxu0
    %v2663 = vxor.u32 %v2660, 2147483648
    %v2664 = vmul.f32 %v2663, 1.442695
    %v2665 = vpow.pop %v2664
    %v2666 = vadd.f32 %v2665, 1.0
    %v2667 = vrcp.pop %v2666
    %v2668 = vmul.f32 1.0, %v2667
    %v2669 = vtanh.pop %v2660
    %v2670 = vld [vmem:[#allocation3] sm:$0x3]
    %2672 = vrot.lane.b32.xlu0 %v2670, 32
    %v2673 = vpop.permute.xlu0 %2672
    %v2675 = vmul.f32 %v2668, %v2673
    %2677 = vrot.lane.b32.xlu0 %v2669, 64
    %v2678 = vpop.permute.xlu0 %2677
    %v2680 = vmul.f32 %v2668, %v2678
    %2682 = vrot.lane.b32.xlu0 %v2680, 32
    %v2683 = vpop.permute.xlu0 %2682
    %v2685 = vadd.f32 %v2675, %v2683
    %v2686 = vtanh.pop %v2685
    %2688 = vrot.lane.b32.xlu0 %v2686, 64
    %v2689 = vpop.permute.xlu0 %2688
    %v2691 = vmul.f32 %v2668, %v2689
    %2693 = vrot.lane.b32.xlu0 %v2685, 96
    %v2694 = vpop.permute.xlu0 %2693
    %2696 = vst.msk [vmem:[#allocation3] sm:$0x3] %vm41, %v2694
    %2698 = vrot.lane.b32.xlu0 %v2691, 32
    %v2699 = vpop.permute.xlu0 %2698
    %2701 = vst.msk [vmem:[#allocation2] sm:$0x3] %vm41, %v2699
    %s2702 = scalar_lea.vmem [#allocation4], 8
    %2703 = vst.msk [vmem:[%s2702] sm:$0x3] %vm41, %v2699
    %v2704 = vld [vmem:[#allocation2] sm:$0x3]
    %s2705 = scalar_lea.vmem %s0, 10
    %v2706 = vld [vmem:[%s2705] sm:$0x3]
    %v2708 = vsel %vm47, %v2704, 0
    %2710 = vmatprep.subr.mxu0 0.0
    %v2711 = vand.u32 %v36, 4294901760
    %2712 = vmatpush1.msra.mxu0 %v2711
    %2713 = vmatprep.subr.mxu0 0.0
    %v2714 = vand.u32 %v37, 4294901760
    %2715 = vmatpush1.msra.mxu0 %v2714
    %2716 = vmatprep.subr.mxu0 0.0
    %v2717 = vand.u32 %v38, 4294901760
    %2718 = vmatpush1.msra.mxu0 %v2717
    %2719 = vmatprep.subr.mxu0 0.0
    %v2720 = vand.u32 %v39, 4294901760
    %2721 = vmatpush1.msra.mxu0 %v2720
    %2722 = vmatprep.subr.mxu0 0.0
    %2723 = vmatpush1.msra.mxu0 0.0
    %2724 = vmatprep.subr.mxu0 0.0
    %2725 = vmatpush1.msra.mxu0 0.0
    %2726 = vmatprep.subr.mxu0 0.0
    %2727 = vmatpush1.msra.mxu0 0.0
    %2728 = vmatprep.subr.mxu0 0.0
    %2729 = vmatpush1.msra.mxu0 0.0
    %2730 = vmatprep.subr.mxu0 0.0
    %2731 = vmatpush1.msra.mxu0 0.0
    %2732 = vmatprep.subr.mxu0 0.0
    %2733 = vmatpush1.msra.mxu0 0.0
    %2734 = vmatprep.subr.mxu0 0.0
    %2735 = vmatpush1.msra.mxu0 0.0
    %2736 = vmatprep.subr.mxu0 0.0
    %2737 = vmatpush1.msra.mxu0 0.0
    %2738 = vmatprep.subr.mxu0 0.0
    %2739 = vmatpush1.msra.mxu0 0.0
    %2740 = vmatprep.subr.mxu0 0.0
    %2741 = vmatpush1.msra.mxu0 0.0
    %2742 = vmatprep.subr.mxu0 0.0
    %2743 = vmatpush1.msra.mxu0 0.0
    %2744 = vmatprep.subr.mxu0 0.0
    %2745 = vmatpush1.msra.mxu0 0.0
    %2746 = vmatprep.subr.mxu0 0.0
    %2747 = vmatpush1.msra.mxu0 0.0
    %2748 = vmatprep.subr.mxu0 0.0
    %2749 = vmatpush1.msra.mxu0 0.0
    %2750 = vmatprep.subr.mxu0 0.0
    %2751 = vmatpush1.msra.mxu0 0.0
    %2752 = vmatprep.subr.mxu0 0.0
    %2753 = vmatpush1.msra.mxu0 0.0
    %2754 = vmatprep.subr.mxu0 0.0
    %2755 = vmatpush1.msra.mxu0 0.0
    %2756 = vmatprep.subr.mxu0 0.0
    %2757 = vmatpush1.msra.mxu0 0.0
    %2758 = vmatprep.subr.mxu0 0.0
    %2759 = vmatpush1.msra.mxu0 0.0
    %2760 = vmatprep.subr.mxu0 0.0
    %2761 = vmatpush1.msra.mxu0 0.0
    %2762 = vmatprep.subr.mxu0 0.0
    %2763 = vmatpush1.msra.mxu0 0.0
    %2764 = vmatprep.subr.mxu0 0.0
    %2765 = vmatpush1.msra.mxu0 0.0
    %2766 = vmatprep.subr.mxu0 0.0
    %2767 = vmatpush1.msra.mxu0 0.0
    %2768 = vmatprep.subr.mxu0 0.0
    %2769 = vmatpush1.msra.mxu0 0.0
    %2770 = vmatprep.subr.mxu0 0.0
    %2771 = vmatpush1.msra.mxu0 0.0
    %2772 = vmatprep.subr.mxu0 0.0
    %2773 = vmatpush1.msra.mxu0 0.0
    %2774 = vmatprep.subr.mxu0 0.0
    %2775 = vmatpush1.msra.mxu0 0.0
    %2776 = vmatprep.subr.mxu0 0.0
    %2777 = vmatpush1.msra.mxu0 0.0
    %2778 = vmatprep.mubr.f32.mxu0 0.0
    %v2779 = vand.u32 %v2708, 4294901760
    %v2780 = vsub.f32 %v2708, %v2779
    %v2781 = vand.u32 %v2780, 4294901760
    %v2782 = vsub.f32 %v2780, %v2781
    %v2783 = vand.u32 %v2782, 4294901760
    %2784 = vmatmul.mubr.f32.gmra.mrb[0].mxu0 %v2783
    %v2785 = vpop.f32.mrb[0].mxu0
    %v2786 = vadd.f32 %v2706, %v2785
    %v2787 = vpop.f32.mrb[0].mxu0
    %2788 = vdwg.mxu0
    %2789 = vmatprep.subr.mxu0 0.0
    %v2790 = vand.u32 %v36, 4294901760
    %v2791 = vsub.f32 %v36, %v2790
    %v2792 = vand.u32 %v2791, 4294901760
    %v2793 = vsub.f32 %v2791, %v2792
    %v2794 = vand.u32 %v2793, 4294901760
    %2795 = vmatpush1.msra.mxu0 %v2794
    %2796 = vmatprep.subr.mxu0 0.0
    %v2797 = vand.u32 %v37, 4294901760
    %v2798 = vsub.f32 %v37, %v2797
    %v2799 = vand.u32 %v2798, 4294901760
    %v2800 = vsub.f32 %v2798, %v2799
    %v2801 = vand.u32 %v2800, 4294901760
    %2802 = vmatpush1.msra.mxu0 %v2801
    %2803 = vmatprep.subr.mxu0 0.0
    %v2804 = vand.u32 %v38, 4294901760
    %v2805 = vsub.f32 %v38, %v2804
    %v2806 = vand.u32 %v2805, 4294901760
    %v2807 = vsub.f32 %v2805, %v2806
    %v2808 = vand.u32 %v2807, 4294901760
    %2809 = vmatpush1.msra.mxu0 %v2808
    %2810 = vmatprep.subr.mxu0 0.0
    %v2811 = vand.u32 %v39, 4294901760
    %v2812 = vsub.f32 %v39, %v2811
    %v2813 = vand.u32 %v2812, 4294901760
    %v2814 = vsub.f32 %v2812, %v2813
    %v2815 = vand.u32 %v2814, 4294901760
    %2816 = vmatpush1.msra.mxu0 %v2815
    %2817 = vmatprep.subr.mxu0 0.0
    %2818 = vmatpush1.msra.mxu0 0.0
    %2819 = vmatprep.subr.mxu0 0.0
    %2820 = vmatpush1.msra.mxu0 0.0
    %2821 = vmatprep.subr.mxu0 0.0
    %2822 = vmatpush1.msra.mxu0 0.0
    %2823 = vmatprep.subr.mxu0 0.0
    %2824 = vmatpush1.msra.mxu0 0.0
    %2825 = vmatprep.subr.mxu0 0.0
    %2826 = vmatpush1.msra.mxu0 0.0
    %2827 = vmatprep.subr.mxu0 0.0
    %2828 = vmatpush1.msra.mxu0 0.0
    %2829 = vmatprep.subr.mxu0 0.0
    %2830 = vmatpush1.msra.mxu0 0.0
    %2831 = vmatprep.subr.mxu0 0.0
    %2832 = vmatpush1.msra.mxu0 0.0
    %2833 = vmatprep.subr.mxu0 0.0
    %2834 = vmatpush1.msra.mxu0 0.0
    %2835 = vmatprep.subr.mxu0 0.0
    %2836 = vmatpush1.msra.mxu0 0.0
    %2837 = vmatprep.subr.mxu0 0.0
    %2838 = vmatpush1.msra.mxu0 0.0
    %2839 = vmatprep.subr.mxu0 0.0
    %2840 = vmatpush1.msra.mxu0 0.0
    %2841 = vmatprep.subr.mxu0 0.0
    %2842 = vmatpush1.msra.mxu0 0.0
    %2843 = vmatprep.subr.mxu0 0.0
    %2844 = vmatpush1.msra.mxu0 0.0
    %2845 = vmatprep.subr.mxu0 0.0
    %2846 = vmatpush1.msra.mxu0 0.0
    %2847 = vmatprep.subr.mxu0 0.0
    %2848 = vmatpush1.msra.mxu0 0.0
    %2849 = vmatprep.subr.mxu0 0.0
    %2850 = vmatpush1.msra.mxu0 0.0
    %2851 = vmatprep.subr.mxu0 0.0
    %2852 = vmatpush1.msra.mxu0 0.0
    %2853 = vmatprep.subr.mxu0 0.0
    %2854 = vmatpush1.msra.mxu0 0.0
    %2855 = vmatprep.subr.mxu0 0.0
    %2856 = vmatpush1.msra.mxu0 0.0
    %2857 = vmatprep.subr.mxu0 0.0
    %2858 = vmatpush1.msra.mxu0 0.0
    %2859 = vmatprep.subr.mxu0 0.0
    %2860 = vmatpush1.msra.mxu0 0.0
    %2861 = vmatprep.subr.mxu0 0.0
    %2862 = vmatpush1.msra.mxu0 0.0
    %2863 = vmatprep.subr.mxu0 0.0
    %2864 = vmatpush1.msra.mxu0 0.0
    %2865 = vmatprep.subr.mxu0 0.0
    %2866 = vmatpush1.msra.mxu0 0.0
    %2867 = vmatprep.subr.mxu0 0.0
    %2868 = vmatpush1.msra.mxu0 0.0
    %2869 = vmatprep.subr.mxu0 0.0
    %2870 = vmatpush1.msra.mxu0 0.0
    %2871 = vmatprep.subr.mxu0 0.0
    %2872 = vmatpush1.msra.mxu0 0.0
    %2873 = vmatprep.mubr.f32.mxu0 0.0
    %v2874 = vand.u32 %v2708, 4294901760
    %2875 = vmatmul.mubr.f32.gmra.mrb[0].mxu0 %v2874
    %v2876 = vpop.f32.mrb[0].mxu0
    %v2877 = vadd.f32 %v2786, %v2876
    %v2878 = vpop.f32.mrb[0].mxu0
    %2879 = vdwg.mxu0
    %2880 = vmatprep.subr.mxu0 0.0
    %v2881 = vand.u32 %v36, 4294901760
    %v2882 = vsub.f32 %v36, %v2881
    %2883 = vmatpush1.msra.mxu0 %v2882
    %2884 = vmatprep.subr.mxu0 0.0
    %v2885 = vand.u32 %v37, 4294901760
    %v2886 = vsub.f32 %v37, %v2885
    %2887 = vmatpush1.msra.mxu0 %v2886
    %2888 = vmatprep.subr.mxu0 0.0
    %v2889 = vand.u32 %v38, 4294901760
    %v2890 = vsub.f32 %v38, %v2889
    %2891 = vmatpush1.msra.mxu0 %v2890
    %2892 = vmatprep.subr.mxu0 0.0
    %v2893 = vand.u32 %v39, 4294901760
    %v2894 = vsub.f32 %v39, %v2893
    %2895 = vmatpush1.msra.mxu0 %v2894
    %2896 = vmatprep.subr.mxu0 0.0
    %2897 = vmatpush1.msra.mxu0 0.0
    %2898 = vmatprep.subr.mxu0 0.0
    %2899 = vmatpush1.msra.mxu0 0.0
    %2900 = vmatprep.subr.mxu0 0.0
    %2901 = vmatpush1.msra.mxu0 0.0
    %2902 = vmatprep.subr.mxu0 0.0
    %2903 = vmatpush1.msra.mxu0 0.0
    %2904 = vmatprep.subr.mxu0 0.0
    %2905 = vmatpush1.msra.mxu0 0.0
    %2906 = vmatprep.subr.mxu0 0.0
    %2907 = vmatpush1.msra.mxu0 0.0
    %2908 = vmatprep.subr.mxu0 0.0
    %2909 = vmatpush1.msra.mxu0 0.0
    %2910 = vmatprep.subr.mxu0 0.0
    %2911 = vmatpush1.msra.mxu0 0.0
    %2912 = vmatprep.subr.mxu0 0.0
    %2913 = vmatpush1.msra.mxu0 0.0
    %2914 = vmatprep.subr.mxu0 0.0
    %2915 = vmatpush1.msra.mxu0 0.0
    %2916 = vmatprep.subr.mxu0 0.0
    %2917 = vmatpush1.msra.mxu0 0.0
    %2918 = vmatprep.subr.mxu0 0.0
    %2919 = vmatpush1.msra.mxu0 0.0
    %2920 = vmatprep.subr.mxu0 0.0
    %2921 = vmatpush1.msra.mxu0 0.0
    %2922 = vmatprep.subr.mxu0 0.0
    %2923 = vmatpush1.msra.mxu0 0.0
    %2924 = vmatprep.subr.mxu0 0.0
    %2925 = vmatpush1.msra.mxu0 0.0
    %2926 = vmatprep.subr.mxu0 0.0
    %2927 = vmatpush1.msra.mxu0 0.0
    %2928 = vmatprep.subr.mxu0 0.0
    %2929 = vmatpush1.msra.mxu0 0.0
    %2930 = vmatprep.subr.mxu0 0.0
    %2931 = vmatpush1.msra.mxu0 0.0
    %2932 = vmatprep.subr.mxu0 0.0
    %2933 = vmatpush1.msra.mxu0 0.0
    %2934 = vmatprep.subr.mxu0 0.0
    %2935 = vmatpush1.msra.mxu0 0.0
    %2936 = vmatprep.subr.mxu0 0.0
    %2937 = vmatpush1.msra.mxu0 0.0
    %2938 = vmatprep.subr.mxu0 0.0
    %2939 = vmatpush1.msra.mxu0 0.0
    %2940 = vmatprep.subr.mxu0 0.0
    %2941 = vmatpush1.msra.mxu0 0.0
    %2942 = vmatprep.subr.mxu0 0.0
    %2943 = vmatpush1.msra.mxu0 0.0
    %2944 = vmatprep.subr.mxu0 0.0
    %2945 = vmatpush1.msra.mxu0 0.0
    %2946 = vmatprep.subr.mxu0 0.0
    %2947 = vmatpush1.msra.mxu0 0.0
    %2948 = vmatprep.subr.mxu0 0.0
    %2949 = vmatpush1.msra.mxu0 0.0
    %2950 = vmatprep.subr.mxu0 0.0
    %2951 = vmatpush1.msra.mxu0 0.0
    %2952 = vmatprep.mubr.f32.mxu0 0.0
    %v2953 = vand.u32 %v2708, 4294901760
    %v2954 = vsub.f32 %v2708, %v2953
    %2955 = vmatmul.mubr.f32.gmra.mrb[0].mxu0 %v2954
    %v2956 = vpop.f32.mrb[0].mxu0
    %v2957 = vadd.f32 %v2877, %v2956
    %v2958 = vpop.f32.mrb[0].mxu0
    %2959 = vdwg.mxu0
    %2960 = vmatprep.subr.mxu0 0.0
    %v2961 = vand.u32 %v36, 4294901760
    %2962 = vmatpush1.msra.mxu0 %v2961
    %2963 = vmatprep.subr.mxu0 0.0
    %v2964 = vand.u32 %v37, 4294901760
    %2965 = vmatpush1.msra.mxu0 %v2964
    %2966 = vmatprep.subr.mxu0 0.0
    %v2967 = vand.u32 %v38, 4294901760
    %2968 = vmatpush1.msra.mxu0 %v2967
    %2969 = vmatprep.subr.mxu0 0.0
    %v2970 = vand.u32 %v39, 4294901760
    %2971 = vmatpush1.msra.mxu0 %v2970
    %2972 = vmatprep.subr.mxu0 0.0
    %2973 = vmatpush1.msra.mxu0 0.0
    %2974 = vmatprep.subr.mxu0 0.0
    %2975 = vmatpush1.msra.mxu0 0.0
    %2976 = vmatprep.subr.mxu0 0.0
    %2977 = vmatpush1.msra.mxu0 0.0
    %2978 = vmatprep.subr.mxu0 0.0
    %2979 = vmatpush1.msra.mxu0 0.0
    %2980 = vmatprep.subr.mxu0 0.0
    %2981 = vmatpush1.msra.mxu0 0.0
    %2982 = vmatprep.subr.mxu0 0.0
    %2983 = vmatpush1.msra.mxu0 0.0
    %2984 = vmatprep.subr.mxu0 0.0
    %2985 = vmatpush1.msra.mxu0 0.0
    %2986 = vmatprep.subr.mxu0 0.0
    %2987 = vmatpush1.msra.mxu0 0.0
    %2988 = vmatprep.subr.mxu0 0.0
    %2989 = vmatpush1.msra.mxu0 0.0
    %2990 = vmatprep.subr.mxu0 0.0
    %2991 = vmatpush1.msra.mxu0 0.0
    %2992 = vmatprep.subr.mxu0 0.0
    %2993 = vmatpush1.msra.mxu0 0.0
    %2994 = vmatprep.subr.mxu0 0.0
    %2995 = vmatpush1.msra.mxu0 0.0
    %2996 = vmatprep.subr.mxu0 0.0
    %2997 = vmatpush1.msra.mxu0 0.0
    %2998 = vmatprep.subr.mxu0 0.0
    %2999 = vmatpush1.msra.mxu0 0.0
    %3000 = vmatprep.subr.mxu0 0.0
    %3001 = vmatpush1.msra.mxu0 0.0
    %3002 = vmatprep.subr.mxu0 0.0
    %3003 = vmatpush1.msra.mxu0 0.0
    %3004 = vmatprep.subr.mxu0 0.0
    %3005 = vmatpush1.msra.mxu0 0.0
    %3006 = vmatprep.subr.mxu0 0.0
    %3007 = vmatpush1.msra.mxu0 0.0
    %3008 = vmatprep.subr.mxu0 0.0
    %3009 = vmatpush1.msra.mxu0 0.0
    %3010 = vmatprep.subr.mxu0 0.0
    %3011 = vmatpush1.msra.mxu0 0.0
    %3012 = vmatprep.subr.mxu0 0.0
    %3013 = vmatpush1.msra.mxu0 0.0
    %3014 = vmatprep.subr.mxu0 0.0
    %3015 = vmatpush1.msra.mxu0 0.0
    %3016 = vmatprep.subr.mxu0 0.0
    %3017 = vmatpush1.msra.mxu0 0.0
    %3018 = vmatprep.subr.mxu0 0.0
    %3019 = vmatpush1.msra.mxu0 0.0
    %3020 = vmatprep.subr.mxu0 0.0
    %3021 = vmatpush1.msra.mxu0 0.0
    %3022 = vmatprep.subr.mxu0 0.0
    %3023 = vmatpush1.msra.mxu0 0.0
    %3024 = vmatprep.subr.mxu0 0.0
    %3025 = vmatpush1.msra.mxu0 0.0
    %3026 = vmatprep.subr.mxu0 0.0
    %3027 = vmatpush1.msra.mxu0 0.0
    %3028 = vmatprep.mubr.f32.mxu0 0.0
    %v3029 = vand.u32 %v2708, 4294901760
    %v3030 = vsub.f32 %v2708, %v3029
    %v3031 = vand.u32 %v3030, 4294901760
    %3032 = vmatmul.mubr.f32.gmra.mrb[0].mxu0 %v3031
    %v3033 = vpop.f32.mrb[0].mxu0
    %v3034 = vadd.f32 %v2957, %v3033
    %v3035 = vpop.f32.mrb[0].mxu0
    %3036 = vdwg.mxu0
    %3037 = vmatprep.subr.mxu0 0.0
    %v3038 = vand.u32 %v36, 4294901760
    %v3039 = vsub.f32 %v36, %v3038
    %v3040 = vand.u32 %v3039, 4294901760
    %3041 = vmatpush1.msra.mxu0 %v3040
    %3042 = vmatprep.subr.mxu0 0.0
    %v3043 = vand.u32 %v37, 4294901760
    %v3044 = vsub.f32 %v37, %v3043
    %v3045 = vand.u32 %v3044, 4294901760
    %3046 = vmatpush1.msra.mxu0 %v3045
    %3047 = vmatprep.subr.mxu0 0.0
    %v3048 = vand.u32 %v38, 4294901760
    %v3049 = vsub.f32 %v38, %v3048
    %v3050 = vand.u32 %v3049, 4294901760
    %3051 = vmatpush1.msra.mxu0 %v3050
    %3052 = vmatprep.subr.mxu0 0.0
    %v3053 = vand.u32 %v39, 4294901760
    %v3054 = vsub.f32 %v39, %v3053
    %v3055 = vand.u32 %v3054, 4294901760
    %3056 = vmatpush1.msra.mxu0 %v3055
    %3057 = vmatprep.subr.mxu0 0.0
    %3058 = vmatpush1.msra.mxu0 0.0
    %3059 = vmatprep.subr.mxu0 0.0
    %3060 = vmatpush1.msra.mxu0 0.0
    %3061 = vmatprep.subr.mxu0 0.0
    %3062 = vmatpush1.msra.mxu0 0.0
    %3063 = vmatprep.subr.mxu0 0.0
    %3064 = vmatpush1.msra.mxu0 0.0
    %3065 = vmatprep.subr.mxu0 0.0
    %3066 = vmatpush1.msra.mxu0 0.0
    %3067 = vmatprep.subr.mxu0 0.0
    %3068 = vmatpush1.msra.mxu0 0.0
    %3069 = vmatprep.subr.mxu0 0.0
    %3070 = vmatpush1.msra.mxu0 0.0
    %3071 = vmatprep.subr.mxu0 0.0
    %3072 = vmatpush1.msra.mxu0 0.0
    %3073 = vmatprep.subr.mxu0 0.0
    %3074 = vmatpush1.msra.mxu0 0.0
    %3075 = vmatprep.subr.mxu0 0.0
    %3076 = vmatpush1.msra.mxu0 0.0
    %3077 = vmatprep.subr.mxu0 0.0
    %3078 = vmatpush1.msra.mxu0 0.0
    %3079 = vmatprep.subr.mxu0 0.0
    %3080 = vmatpush1.msra.mxu0 0.0
    %3081 = vmatprep.subr.mxu0 0.0
    %3082 = vmatpush1.msra.mxu0 0.0
    %3083 = vmatprep.subr.mxu0 0.0
    %3084 = vmatpush1.msra.mxu0 0.0
    %3085 = vmatprep.subr.mxu0 0.0
    %3086 = vmatpush1.msra.mxu0 0.0
    %3087 = vmatprep.subr.mxu0 0.0
    %3088 = vmatpush1.msra.mxu0 0.0
    %3089 = vmatprep.subr.mxu0 0.0
    %3090 = vmatpush1.msra.mxu0 0.0
    %3091 = vmatprep.subr.mxu0 0.0
    %3092 = vmatpush1.msra.mxu0 0.0
    %3093 = vmatprep.subr.mxu0 0.0
    %3094 = vmatpush1.msra.mxu0 0.0
    %3095 = vmatprep.subr.mxu0 0.0
    %3096 = vmatpush1.msra.mxu0 0.0
    %3097 = vmatprep.subr.mxu0 0.0
    %3098 = vmatpush1.msra.mxu0 0.0
    %3099 = vmatprep.subr.mxu0 0.0
    %3100 = vmatpush1.msra.mxu0 0.0
    %3101 = vmatprep.subr.mxu0 0.0
    %3102 = vmatpush1.msra.mxu0 0.0
    %3103 = vmatprep.subr.mxu0 0.0
    %3104 = vmatpush1.msra.mxu0 0.0
    %3105 = vmatprep.subr.mxu0 0.0
    %3106 = vmatpush1.msra.mxu0 0.0
    %3107 = vmatprep.subr.mxu0 0.0
    %3108 = vmatpush1.msra.mxu0 0.0
    %3109 = vmatprep.subr.mxu0 0.0
    %3110 = vmatpush1.msra.mxu0 0.0
    %3111 = vmatprep.subr.mxu0 0.0
    %3112 = vmatpush1.msra.mxu0 0.0
    %3113 = vmatprep.mubr.f32.mxu0 0.0
    %v3114 = vand.u32 %v2708, 4294901760
    %3115 = vmatmul.mubr.f32.gmra.mrb[0].mxu0 %v3114
    %v3116 = vpop.f32.mrb[0].mxu0
    %v3117 = vadd.f32 %v3034, %v3116
    %v3118 = vpop.f32.mrb[0].mxu0
    %3119 = vdwg.mxu0
    %3120 = vmatprep.subr.mxu0 0.0
    %v3121 = vand.u32 %v36, 4294901760
    %3122 = vmatpush1.msra.mxu0 %v3121
    %3123 = vmatprep.subr.mxu0 0.0
    %v3124 = vand.u32 %v37, 4294901760
    %3125 = vmatpush1.msra.mxu0 %v3124
    %3126 = vmatprep.subr.mxu0 0.0
    %v3127 = vand.u32 %v38, 4294901760
    %3128 = vmatpush1.msra.mxu0 %v3127
    %3129 = vmatprep.subr.mxu0 0.0
    %v3130 = vand.u32 %v39, 4294901760
    %3131 = vmatpush1.msra.mxu0 %v3130
    %3132 = vmatprep.subr.mxu0 0.0
    %3133 = vmatpush1.msra.mxu0 0.0
    %3134 = vmatprep.subr.mxu0 0.0
    %3135 = vmatpush1.msra.mxu0 0.0
    %3136 = vmatprep.subr.mxu0 0.0
    %3137 = vmatpush1.msra.mxu0 0.0
    %3138 = vmatprep.subr.mxu0 0.0
    %3139 = vmatpush1.msra.mxu0 0.0
    %3140 = vmatprep.subr.mxu0 0.0
    %3141 = vmatpush1.msra.mxu0 0.0
    %3142 = vmatprep.subr.mxu0 0.0
    %3143 = vmatpush1.msra.mxu0 0.0
    %3144 = vmatprep.subr.mxu0 0.0
    %3145 = vmatpush1.msra.mxu0 0.0
    %3146 = vmatprep.subr.mxu0 0.0
    %3147 = vmatpush1.msra.mxu0 0.0
    %3148 = vmatprep.subr.mxu0 0.0
    %3149 = vmatpush1.msra.mxu0 0.0
    %3150 = vmatprep.subr.mxu0 0.0
    %3151 = vmatpush1.msra.mxu0 0.0
    %3152 = vmatprep.subr.mxu0 0.0
    %3153 = vmatpush1.msra.mxu0 0.0
    %3154 = vmatprep.subr.mxu0 0.0
    %3155 = vmatpush1.msra.mxu0 0.0
    %3156 = vmatprep.subr.mxu0 0.0
    %3157 = vmatpush1.msra.mxu0 0.0
    %3158 = vmatprep.subr.mxu0 0.0
    %3159 = vmatpush1.msra.mxu0 0.0
    %3160 = vmatprep.subr.mxu0 0.0
    %3161 = vmatpush1.msra.mxu0 0.0
    %3162 = vmatprep.subr.mxu0 0.0
    %3163 = vmatpush1.msra.mxu0 0.0
    %3164 = vmatprep.subr.mxu0 0.0
    %3165 = vmatpush1.msra.mxu0 0.0
    %3166 = vmatprep.subr.mxu0 0.0
    %3167 = vmatpush1.msra.mxu0 0.0
    %3168 = vmatprep.subr.mxu0 0.0
    %3169 = vmatpush1.msra.mxu0 0.0
    %3170 = vmatprep.subr.mxu0 0.0
    %3171 = vmatpush1.msra.mxu0 0.0
    %3172 = vmatprep.subr.mxu0 0.0
    %3173 = vmatpush1.msra.mxu0 0.0
    %3174 = vmatprep.subr.mxu0 0.0
    %3175 = vmatpush1.msra.mxu0 0.0
    %3176 = vmatprep.subr.mxu0 0.0
    %3177 = vmatpush1.msra.mxu0 0.0
    %3178 = vmatprep.subr.mxu0 0.0
    %3179 = vmatpush1.msra.mxu0 0.0
    %3180 = vmatprep.subr.mxu0 0.0
    %3181 = vmatpush1.msra.mxu0 0.0
    %3182 = vmatprep.subr.mxu0 0.0
    %3183 = vmatpush1.msra.mxu0 0.0
    %3184 = vmatprep.subr.mxu0 0.0
    %3185 = vmatpush1.msra.mxu0 0.0
    %3186 = vmatprep.subr.mxu0 0.0
    %3187 = vmatpush1.msra.mxu0 0.0
    %3188 = vmatprep.mubr.f32.mxu0 0.0
    %v3189 = vand.u32 %v2708, 4294901760
    %3190 = vmatmul.mubr.f32.gmra.mrb[0].mxu0 %v3189
    %v3191 = vpop.f32.mrb[0].mxu0
    %v3192 = vadd.f32 %v3117, %v3191
    %v3193 = vpop.f32.mrb[0].mxu0
    %3194 = vdwg.mxu0
    %v3195 = vxor.u32 %v3192, 2147483648
    %v3196 = vmul.f32 %v3195, 1.442695
    %v3197 = vpow.pop %v3196
    %v3198 = vadd.f32 %v3197, 1.0
    %v3199 = vrcp.pop %v3198
    %v3200 = vmul.f32 1.0, %v3199
    %v3201 = vtanh.pop %v3192
    %v3202 = vld [vmem:[#allocation3] sm:$0x3]
    %3204 = vrot.lane.b32.xlu0 %v3202, 32
    %v3205 = vpop.permute.xlu0 %3204
    %v3207 = vmul.f32 %v3200, %v3205
    %3209 = vrot.lane.b32.xlu0 %v3201, 64
    %v3210 = vpop.permute.xlu0 %3209
    %v3212 = vmul.f32 %v3200, %v3210
    %3214 = vrot.lane.b32.xlu0 %v3212, 32
    %v3215 = vpop.permute.xlu0 %3214
    %v3217 = vadd.f32 %v3207, %v3215
    %v3218 = vtanh.pop %v3217
    %3220 = vrot.lane.b32.xlu0 %v3218, 64
    %v3221 = vpop.permute.xlu0 %3220
    %v3223 = vmul.f32 %v3200, %v3221
    %3225 = vrot.lane.b32.xlu0 %v3217, 96
    %v3226 = vpop.permute.xlu0 %3225
    %3228 = vst.msk [vmem:[#allocation3] sm:$0x3] %vm41, %v3226
    %3230 = vrot.lane.b32.xlu0 %v3223, 32
    %v3231 = vpop.permute.xlu0 %3230
    %3233 = vst.msk [vmem:[#allocation2] sm:$0x3] %vm41, %v3231
    %s3234 = scalar_lea.vmem [#allocation4], 10
    %3235 = vst.msk [vmem:[%s3234] sm:$0x3] %vm41, %v3231
    %v3236 = vld [vmem:[#allocation2] sm:$0x3]
    %s3237 = scalar_lea.vmem %s0, 12
    %v3238 = vld [vmem:[%s3237] sm:$0x3]
    %v3240 = vsel %vm47, %v3236, 0
    %3242 = vmatprep.subr.mxu0 0.0
    %v3243 = vand.u32 %v36, 4294901760
    %3244 = vmatpush1.msra.mxu0 %v3243
    %3245 = vmatprep.subr.mxu0 0.0
    %v3246 = vand.u32 %v37, 4294901760
    %3247 = vmatpush1.msra.mxu0 %v3246
    %3248 = vmatprep.subr.mxu0 0.0
    %v3249 = vand.u32 %v38, 4294901760
    %3250 = vmatpush1.msra.mxu0 %v3249
    %3251 = vmatprep.subr.mxu0 0.0
    %v3252 = vand.u32 %v39, 4294901760
    %3253 = vmatpush1.msra.mxu0 %v3252
    %3254 = vmatprep.subr.mxu0 0.0
    %3255 = vmatpush1.msra.mxu0 0.0
    %3256 = vmatprep.subr.mxu0 0.0
    %3257 = vmatpush1.msra.mxu0 0.0
    %3258 = vmatprep.subr.mxu0 0.0
    %3259 = vmatpush1.msra.mxu0 0.0
    %3260 = vmatprep.subr.mxu0 0.0
    %3261 = vmatpush1.msra.mxu0 0.0
    %3262 = vmatprep.subr.mxu0 0.0
    %3263 = vmatpush1.msra.mxu0 0.0
    %3264 = vmatprep.subr.mxu0 0.0
    %3265 = vmatpush1.msra.mxu0 0.0
    %3266 = vmatprep.subr.mxu0 0.0
    %3267 = vmatpush1.msra.mxu0 0.0
    %3268 = vmatprep.subr.mxu0 0.0
    %3269 = vmatpush1.msra.mxu0 0.0
    %3270 = vmatprep.subr.mxu0 0.0
    %3271 = vmatpush1.msra.mxu0 0.0
    %3272 = vmatprep.subr.mxu0 0.0
    %3273 = vmatpush1.msra.mxu0 0.0
    %3274 = vmatprep.subr.mxu0 0.0
    %3275 = vmatpush1.msra.mxu0 0.0
    %3276 = vmatprep.subr.mxu0 0.0
    %3277 = vmatpush1.msra.mxu0 0.0
    %3278 = vmatprep.subr.mxu0 0.0
    %3279 = vmatpush1.msra.mxu0 0.0
    %3280 = vmatprep.subr.mxu0 0.0
    %3281 = vmatpush1.msra.mxu0 0.0
    %3282 = vmatprep.subr.mxu0 0.0
    %3283 = vmatpush1.msra.mxu0 0.0
    %3284 = vmatprep.subr.mxu0 0.0
    %3285 = vmatpush1.msra.mxu0 0.0
    %3286 = vmatprep.subr.mxu0 0.0
    %3287 = vmatpush1.msra.mxu0 0.0
    %3288 = vmatprep.subr.mxu0 0.0
    %3289 = vmatpush1.msra.mxu0 0.0
    %3290 = vmatprep.subr.mxu0 0.0
    %3291 = vmatpush1.msra.mxu0 0.0
    %3292 = vmatprep.subr.mxu0 0.0
    %3293 = vmatpush1.msra.mxu0 0.0
    %3294 = vmatprep.subr.mxu0 0.0
    %3295 = vmatpush1.msra.mxu0 0.0
    %3296 = vmatprep.subr.mxu0 0.0
    %3297 = vmatpush1.msra.mxu0 0.0
    %3298 = vmatprep.subr.mxu0 0.0
    %3299 = vmatpush1.msra.mxu0 0.0
    %3300 = vmatprep.subr.mxu0 0.0
    %3301 = vmatpush1.msra.mxu0 0.0
    %3302 = vmatprep.subr.mxu0 0.0
    %3303 = vmatpush1.msra.mxu0 0.0
    %3304 = vmatprep.subr.mxu0 0.0
    %3305 = vmatpush1.msra.mxu0 0.0
    %3306 = vmatprep.subr.mxu0 0.0
    %3307 = vmatpush1.msra.mxu0 0.0
    %3308 = vmatprep.subr.mxu0 0.0
    %3309 = vmatpush1.msra.mxu0 0.0
    %3310 = vmatprep.mubr.f32.mxu0 0.0
    %v3311 = vand.u32 %v3240, 4294901760
    %v3312 = vsub.f32 %v3240, %v3311
    %v3313 = vand.u32 %v3312, 4294901760
    %v3314 = vsub.f32 %v3312, %v3313
    %v3315 = vand.u32 %v3314, 4294901760
    %3316 = vmatmul.mubr.f32.gmra.mrb[0].mxu0 %v3315
    %v3317 = vpop.f32.mrb[0].mxu0
    %v3318 = vadd.f32 %v3238, %v3317
    %v3319 = vpop.f32.mrb[0].mxu0
    %3320 = vdwg.mxu0
    %3321 = vmatprep.subr.mxu0 0.0
    %v3322 = vand.u32 %v36, 4294901760
    %v3323 = vsub.f32 %v36, %v3322
    %v3324 = vand.u32 %v3323, 4294901760
    %v3325 = vsub.f32 %v3323, %v3324
    %v3326 = vand.u32 %v3325, 4294901760
    %3327 = vmatpush1.msra.mxu0 %v3326
    %3328 = vmatprep.subr.mxu0 0.0
    %v3329 = vand.u32 %v37, 4294901760
    %v3330 = vsub.f32 %v37, %v3329
    %v3331 = vand.u32 %v3330, 4294901760
    %v3332 = vsub.f32 %v3330, %v3331
    %v3333 = vand.u32 %v3332, 4294901760
    %3334 = vmatpush1.msra.mxu0 %v3333
    %3335 = vmatprep.subr.mxu0 0.0
    %v3336 = vand.u32 %v38, 4294901760
    %v3337 = vsub.f32 %v38, %v3336
    %v3338 = vand.u32 %v3337, 4294901760
    %v3339 = vsub.f32 %v3337, %v3338
    %v3340 = vand.u32 %v3339, 4294901760
    %3341 = vmatpush1.msra.mxu0 %v3340
    %3342 = vmatprep.subr.mxu0 0.0
    %v3343 = vand.u32 %v39, 4294901760
    %v3344 = vsub.f32 %v39, %v3343
    %v3345 = vand.u32 %v3344, 4294901760
    %v3346 = vsub.f32 %v3344, %v3345
    %v3347 = vand.u32 %v3346, 4294901760
    %3348 = vmatpush1.msra.mxu0 %v3347
    %3349 = vmatprep.subr.mxu0 0.0
    %3350 = vmatpush1.msra.mxu0 0.0
    %3351 = vmatprep.subr.mxu0 0.0
    %3352 = vmatpush1.msra.mxu0 0.0
    %3353 = vmatprep.subr.mxu0 0.0
    %3354 = vmatpush1.msra.mxu0 0.0
    %3355 = vmatprep.subr.mxu0 0.0
    %3356 = vmatpush1.msra.mxu0 0.0
    %3357 = vmatprep.subr.mxu0 0.0
    %3358 = vmatpush1.msra.mxu0 0.0
    %3359 = vmatprep.subr.mxu0 0.0
    %3360 = vmatpush1.msra.mxu0 0.0
    %3361 = vmatprep.subr.mxu0 0.0
    %3362 = vmatpush1.msra.mxu0 0.0
    %3363 = vmatprep.subr.mxu0 0.0
    %3364 = vmatpush1.msra.mxu0 0.0
    %3365 = vmatprep.subr.mxu0 0.0
    %3366 = vmatpush1.msra.mxu0 0.0
    %3367 = vmatprep.subr.mxu0 0.0
    %3368 = vmatpush1.msra.mxu0 0.0
    %3369 = vmatprep.subr.mxu0 0.0
    %3370 = vmatpush1.msra.mxu0 0.0
    %3371 = vmatprep.subr.mxu0 0.0
    %3372 = vmatpush1.msra.mxu0 0.0
    %3373 = vmatprep.subr.mxu0 0.0
    %3374 = vmatpush1.msra.mxu0 0.0
    %3375 = vmatprep.subr.mxu0 0.0
    %3376 = vmatpush1.msra.mxu0 0.0
    %3377 = vmatprep.subr.mxu0 0.0
    %3378 = vmatpush1.msra.mxu0 0.0
    %3379 = vmatprep.subr.mxu0 0.0
    %3380 = vmatpush1.msra.mxu0 0.0
    %3381 = vmatprep.subr.mxu0 0.0
    %3382 = vmatpush1.msra.mxu0 0.0
    %3383 = vmatprep.subr.mxu0 0.0
    %3384 = vmatpush1.msra.mxu0 0.0
    %3385 = vmatprep.subr.mxu0 0.0
    %3386 = vmatpush1.msra.mxu0 0.0
    %3387 = vmatprep.subr.mxu0 0.0
    %3388 = vmatpush1.msra.mxu0 0.0
    %3389 = vmatprep.subr.mxu0 0.0
    %3390 = vmatpush1.msra.mxu0 0.0
    %3391 = vmatprep.subr.mxu0 0.0
    %3392 = vmatpush1.msra.mxu0 0.0
    %3393 = vmatprep.subr.mxu0 0.0
    %3394 = vmatpush1.msra.mxu0 0.0
    %3395 = vmatprep.subr.mxu0 0.0
    %3396 = vmatpush1.msra.mxu0 0.0
    %3397 = vmatprep.subr.mxu0 0.0
    %3398 = vmatpush1.msra.mxu0 0.0
    %3399 = vmatprep.subr.mxu0 0.0
    %3400 = vmatpush1.msra.mxu0 0.0
    %3401 = vmatprep.subr.mxu0 0.0
    %3402 = vmatpush1.msra.mxu0 0.0
    %3403 = vmatprep.subr.mxu0 0.0
    %3404 = vmatpush1.msra.mxu0 0.0
    %3405 = vmatprep.mubr.f32.mxu0 0.0
    %v3406 = vand.u32 %v3240, 4294901760
    %3407 = vmatmul.mubr.f32.gmra.mrb[0].mxu0 %v3406
    %v3408 = vpop.f32.mrb[0].mxu0
    %v3409 = vadd.f32 %v3318, %v3408
    %v3410 = vpop.f32.mrb[0].mxu0
    %3411 = vdwg.mxu0
    %3412 = vmatprep.subr.mxu0 0.0
    %v3413 = vand.u32 %v36, 4294901760
    %v3414 = vsub.f32 %v36, %v3413
    %3415 = vmatpush1.msra.mxu0 %v3414
    %3416 = vmatprep.subr.mxu0 0.0
    %v3417 = vand.u32 %v37, 4294901760
    %v3418 = vsub.f32 %v37, %v3417
    %3419 = vmatpush1.msra.mxu0 %v3418
    %3420 = vmatprep.subr.mxu0 0.0
    %v3421 = vand.u32 %v38, 4294901760
    %v3422 = vsub.f32 %v38, %v3421
    %3423 = vmatpush1.msra.mxu0 %v3422
    %3424 = vmatprep.subr.mxu0 0.0
    %v3425 = vand.u32 %v39, 4294901760
    %v3426 = vsub.f32 %v39, %v3425
    %3427 = vmatpush1.msra.mxu0 %v3426
    %3428 = vmatprep.subr.mxu0 0.0
    %3429 = vmatpush1.msra.mxu0 0.0
    %3430 = vmatprep.subr.mxu0 0.0
    %3431 = vmatpush1.msra.mxu0 0.0
    %3432 = vmatprep.subr.mxu0 0.0
    %3433 = vmatpush1.msra.mxu0 0.0
    %3434 = vmatprep.subr.mxu0 0.0
    %3435 = vmatpush1.msra.mxu0 0.0
    %3436 = vmatprep.subr.mxu0 0.0
    %3437 = vmatpush1.msra.mxu0 0.0
    %3438 = vmatprep.subr.mxu0 0.0
    %3439 = vmatpush1.msra.mxu0 0.0
    %3440 = vmatprep.subr.mxu0 0.0
    %3441 = vmatpush1.msra.mxu0 0.0
    %3442 = vmatprep.subr.mxu0 0.0
    %3443 = vmatpush1.msra.mxu0 0.0
    %3444 = vmatprep.subr.mxu0 0.0
    %3445 = vmatpush1.msra.mxu0 0.0
    %3446 = vmatprep.subr.mxu0 0.0
    %3447 = vmatpush1.msra.mxu0 0.0
    %3448 = vmatprep.subr.mxu0 0.0
    %3449 = vmatpush1.msra.mxu0 0.0
    %3450 = vmatprep.subr.mxu0 0.0
    %3451 = vmatpush1.msra.mxu0 0.0
    %3452 = vmatprep.subr.mxu0 0.0
    %3453 = vmatpush1.msra.mxu0 0.0
    %3454 = vmatprep.subr.mxu0 0.0
    %3455 = vmatpush1.msra.mxu0 0.0
    %3456 = vmatprep.subr.mxu0 0.0
    %3457 = vmatpush1.msra.mxu0 0.0
    %3458 = vmatprep.subr.mxu0 0.0
    %3459 = vmatpush1.msra.mxu0 0.0
    %3460 = vmatprep.subr.mxu0 0.0
    %3461 = vmatpush1.msra.mxu0 0.0
    %3462 = vmatprep.subr.mxu0 0.0
    %3463 = vmatpush1.msra.mxu0 0.0
    %3464 = vmatprep.subr.mxu0 0.0
    %3465 = vmatpush1.msra.mxu0 0.0
    %3466 = vmatprep.subr.mxu0 0.0
    %3467 = vmatpush1.msra.mxu0 0.0
    %3468 = vmatprep.subr.mxu0 0.0
    %3469 = vmatpush1.msra.mxu0 0.0
    %3470 = vmatprep.subr.mxu0 0.0
    %3471 = vmatpush1.msra.mxu0 0.0
    %3472 = vmatprep.subr.mxu0 0.0
    %3473 = vmatpush1.msra.mxu0 0.0
    %3474 = vmatprep.subr.mxu0 0.0
    %3475 = vmatpush1.msra.mxu0 0.0
    %3476 = vmatprep.subr.mxu0 0.0
    %3477 = vmatpush1.msra.mxu0 0.0
    %3478 = vmatprep.subr.mxu0 0.0
    %3479 = vmatpush1.msra.mxu0 0.0
    %3480 = vmatprep.subr.mxu0 0.0
    %3481 = vmatpush1.msra.mxu0 0.0
    %3482 = vmatprep.subr.mxu0 0.0
    %3483 = vmatpush1.msra.mxu0 0.0
    %3484 = vmatprep.mubr.f32.mxu0 0.0
    %v3485 = vand.u32 %v3240, 4294901760
    %v3486 = vsub.f32 %v3240, %v3485
    %3487 = vmatmul.mubr.f32.gmra.mrb[0].mxu0 %v3486
    %v3488 = vpop.f32.mrb[0].mxu0
    %v3489 = vadd.f32 %v3409, %v3488
    %v3490 = vpop.f32.mrb[0].mxu0
    %3491 = vdwg.mxu0
    %3492 = vmatprep.subr.mxu0 0.0
    %v3493 = vand.u32 %v36, 4294901760
    %3494 = vmatpush1.msra.mxu0 %v3493
    %3495 = vmatprep.subr.mxu0 0.0
    %v3496 = vand.u32 %v37, 4294901760
    %3497 = vmatpush1.msra.mxu0 %v3496
    %3498 = vmatprep.subr.mxu0 0.0
    %v3499 = vand.u32 %v38, 4294901760
    %3500 = vmatpush1.msra.mxu0 %v3499
    %3501 = vmatprep.subr.mxu0 0.0
    %v3502 = vand.u32 %v39, 4294901760
    %3503 = vmatpush1.msra.mxu0 %v3502
    %3504 = vmatprep.subr.mxu0 0.0
    %3505 = vmatpush1.msra.mxu0 0.0
    %3506 = vmatprep.subr.mxu0 0.0
    %3507 = vmatpush1.msra.mxu0 0.0
    %3508 = vmatprep.subr.mxu0 0.0
    %3509 = vmatpush1.msra.mxu0 0.0
    %3510 = vmatprep.subr.mxu0 0.0
    %3511 = vmatpush1.msra.mxu0 0.0
    %3512 = vmatprep.subr.mxu0 0.0
    %3513 = vmatpush1.msra.mxu0 0.0
    %3514 = vmatprep.subr.mxu0 0.0
    %3515 = vmatpush1.msra.mxu0 0.0
    %3516 = vmatprep.subr.mxu0 0.0
    %3517 = vmatpush1.msra.mxu0 0.0
    %3518 = vmatprep.subr.mxu0 0.0
    %3519 = vmatpush1.msra.mxu0 0.0
    %3520 = vmatprep.subr.mxu0 0.0
    %3521 = vmatpush1.msra.mxu0 0.0
    %3522 = vmatprep.subr.mxu0 0.0
    %3523 = vmatpush1.msra.mxu0 0.0
    %3524 = vmatprep.subr.mxu0 0.0
    %3525 = vmatpush1.msra.mxu0 0.0
    %3526 = vmatprep.subr.mxu0 0.0
    %3527 = vmatpush1.msra.mxu0 0.0
    %3528 = vmatprep.subr.mxu0 0.0
    %3529 = vmatpush1.msra.mxu0 0.0
    %3530 = vmatprep.subr.mxu0 0.0
    %3531 = vmatpush1.msra.mxu0 0.0
    %3532 = vmatprep.subr.mxu0 0.0
    %3533 = vmatpush1.msra.mxu0 0.0
    %3534 = vmatprep.subr.mxu0 0.0
    %3535 = vmatpush1.msra.mxu0 0.0
    %3536 = vmatprep.subr.mxu0 0.0
    %3537 = vmatpush1.msra.mxu0 0.0
    %3538 = vmatprep.subr.mxu0 0.0
    %3539 = vmatpush1.msra.mxu0 0.0
    %3540 = vmatprep.subr.mxu0 0.0
    %3541 = vmatpush1.msra.mxu0 0.0
    %3542 = vmatprep.subr.mxu0 0.0
    %3543 = vmatpush1.msra.mxu0 0.0
    %3544 = vmatprep.subr.mxu0 0.0
    %3545 = vmatpush1.msra.mxu0 0.0
    %3546 = vmatprep.subr.mxu0 0.0
    %3547 = vmatpush1.msra.mxu0 0.0
    %3548 = vmatprep.subr.mxu0 0.0
    %3549 = vmatpush1.msra.mxu0 0.0
    %3550 = vmatprep.subr.mxu0 0.0
    %3551 = vmatpush1.msra.mxu0 0.0
    %3552 = vmatprep.subr.mxu0 0.0
    %3553 = vmatpush1.msra.mxu0 0.0
    %3554 = vmatprep.subr.mxu0 0.0
    %3555 = vmatpush1.msra.mxu0 0.0
    %3556 = vmatprep.subr.mxu0 0.0
    %3557 = vmatpush1.msra.mxu0 0.0
    %3558 = vmatprep.subr.mxu0 0.0
    %3559 = vmatpush1.msra.mxu0 0.0
    %3560 = vmatprep.mubr.f32.mxu0 0.0
    %v3561 = vand.u32 %v3240, 4294901760
    %v3562 = vsub.f32 %v3240, %v3561
    %v3563 = vand.u32 %v3562, 4294901760
    %3564 = vmatmul.mubr.f32.gmra.mrb[0].mxu0 %v3563
    %v3565 = vpop.f32.mrb[0].mxu0
    %v3566 = vadd.f32 %v3489, %v3565
    %v3567 = vpop.f32.mrb[0].mxu0
    %3568 = vdwg.mxu0
    %3569 = vmatprep.subr.mxu0 0.0
    %v3570 = vand.u32 %v36, 4294901760
    %v3571 = vsub.f32 %v36, %v3570
    %v3572 = vand.u32 %v3571, 4294901760
    %3573 = vmatpush1.msra.mxu0 %v3572
    %3574 = vmatprep.subr.mxu0 0.0
    %v3575 = vand.u32 %v37, 4294901760
    %v3576 = vsub.f32 %v37, %v3575
    %v3577 = vand.u32 %v3576, 4294901760
    %3578 = vmatpush1.msra.mxu0 %v3577
    %3579 = vmatprep.subr.mxu0 0.0
    %v3580 = vand.u32 %v38, 4294901760
    %v3581 = vsub.f32 %v38, %v3580
    %v3582 = vand.u32 %v3581, 4294901760
    %3583 = vmatpush1.msra.mxu0 %v3582
    %3584 = vmatprep.subr.mxu0 0.0
    %v3585 = vand.u32 %v39, 4294901760
    %v3586 = vsub.f32 %v39, %v3585
    %v3587 = vand.u32 %v3586, 4294901760
    %3588 = vmatpush1.msra.mxu0 %v3587
    %3589 = vmatprep.subr.mxu0 0.0
    %3590 = vmatpush1.msra.mxu0 0.0
    %3591 = vmatprep.subr.mxu0 0.0
    %3592 = vmatpush1.msra.mxu0 0.0
    %3593 = vmatprep.subr.mxu0 0.0
    %3594 = vmatpush1.msra.mxu0 0.0
    %3595 = vmatprep.subr.mxu0 0.0
    %3596 = vmatpush1.msra.mxu0 0.0
    %3597 = vmatprep.subr.mxu0 0.0
    %3598 = vmatpush1.msra.mxu0 0.0
    %3599 = vmatprep.subr.mxu0 0.0
    %3600 = vmatpush1.msra.mxu0 0.0
    %3601 = vmatprep.subr.mxu0 0.0
    %3602 = vmatpush1.msra.mxu0 0.0
    %3603 = vmatprep.subr.mxu0 0.0
    %3604 = vmatpush1.msra.mxu0 0.0
    %3605 = vmatprep.subr.mxu0 0.0
    %3606 = vmatpush1.msra.mxu0 0.0
    %3607 = vmatprep.subr.mxu0 0.0
    %3608 = vmatpush1.msra.mxu0 0.0
    %3609 = vmatprep.subr.mxu0 0.0
    %3610 = vmatpush1.msra.mxu0 0.0
    %3611 = vmatprep.subr.mxu0 0.0
    %3612 = vmatpush1.msra.mxu0 0.0
    %3613 = vmatprep.subr.mxu0 0.0
    %3614 = vmatpush1.msra.mxu0 0.0
    %3615 = vmatprep.subr.mxu0 0.0
    %3616 = vmatpush1.msra.mxu0 0.0
    %3617 = vmatprep.subr.mxu0 0.0
    %3618 = vmatpush1.msra.mxu0 0.0
    %3619 = vmatprep.subr.mxu0 0.0
    %3620 = vmatpush1.msra.mxu0 0.0
    %3621 = vmatprep.subr.mxu0 0.0
    %3622 = vmatpush1.msra.mxu0 0.0
    %3623 = vmatprep.subr.mxu0 0.0
    %3624 = vmatpush1.msra.mxu0 0.0
    %3625 = vmatprep.subr.mxu0 0.0
    %3626 = vmatpush1.msra.mxu0 0.0
    %3627 = vmatprep.subr.mxu0 0.0
    %3628 = vmatpush1.msra.mxu0 0.0
    %3629 = vmatprep.subr.mxu0 0.0
    %3630 = vmatpush1.msra.mxu0 0.0
    %3631 = vmatprep.subr.mxu0 0.0
    %3632 = vmatpush1.msra.mxu0 0.0
    %3633 = vmatprep.subr.mxu0 0.0
    %3634 = vmatpush1.msra.mxu0 0.0
    %3635 = vmatprep.subr.mxu0 0.0
    %3636 = vmatpush1.msra.mxu0 0.0
    %3637 = vmatprep.subr.mxu0 0.0
    %3638 = vmatpush1.msra.mxu0 0.0
    %3639 = vmatprep.subr.mxu0 0.0
    %3640 = vmatpush1.msra.mxu0 0.0
    %3641 = vmatprep.subr.mxu0 0.0
    %3642 = vmatpush1.msra.mxu0 0.0
    %3643 = vmatprep.subr.mxu0 0.0
    %3644 = vmatpush1.msra.mxu0 0.0
    %3645 = vmatprep.mubr.f32.mxu0 0.0
    %v3646 = vand.u32 %v3240, 4294901760
    %3647 = vmatmul.mubr.f32.gmra.mrb[0].mxu0 %v3646
    %v3648 = vpop.f32.mrb[0].mxu0
    %v3649 = vadd.f32 %v3566, %v3648
    %v3650 = vpop.f32.mrb[0].mxu0
    %3651 = vdwg.mxu0
    %3652 = vmatprep.subr.mxu0 0.0
    %v3653 = vand.u32 %v36, 4294901760
    %3654 = vmatpush1.msra.mxu0 %v3653
    %3655 = vmatprep.subr.mxu0 0.0
    %v3656 = vand.u32 %v37, 4294901760
    %3657 = vmatpush1.msra.mxu0 %v3656
    %3658 = vmatprep.subr.mxu0 0.0
    %v3659 = vand.u32 %v38, 4294901760
    %3660 = vmatpush1.msra.mxu0 %v3659
    %3661 = vmatprep.subr.mxu0 0.0
    %v3662 = vand.u32 %v39, 4294901760
    %3663 = vmatpush1.msra.mxu0 %v3662
    %3664 = vmatprep.subr.mxu0 0.0
    %3665 = vmatpush1.msra.mxu0 0.0
    %3666 = vmatprep.subr.mxu0 0.0
    %3667 = vmatpush1.msra.mxu0 0.0
    %3668 = vmatprep.subr.mxu0 0.0
    %3669 = vmatpush1.msra.mxu0 0.0
    %3670 = vmatprep.subr.mxu0 0.0
    %3671 = vmatpush1.msra.mxu0 0.0
    %3672 = vmatprep.subr.mxu0 0.0
    %3673 = vmatpush1.msra.mxu0 0.0
    %3674 = vmatprep.subr.mxu0 0.0
    %3675 = vmatpush1.msra.mxu0 0.0
    %3676 = vmatprep.subr.mxu0 0.0
    %3677 = vmatpush1.msra.mxu0 0.0
    %3678 = vmatprep.subr.mxu0 0.0
    %3679 = vmatpush1.msra.mxu0 0.0
    %3680 = vmatprep.subr.mxu0 0.0
    %3681 = vmatpush1.msra.mxu0 0.0
    %3682 = vmatprep.subr.mxu0 0.0
    %3683 = vmatpush1.msra.mxu0 0.0
    %3684 = vmatprep.subr.mxu0 0.0
    %3685 = vmatpush1.msra.mxu0 0.0
    %3686 = vmatprep.subr.mxu0 0.0
    %3687 = vmatpush1.msra.mxu0 0.0
    %3688 = vmatprep.subr.mxu0 0.0
    %3689 = vmatpush1.msra.mxu0 0.0
    %3690 = vmatprep.subr.mxu0 0.0
    %3691 = vmatpush1.msra.mxu0 0.0
    %3692 = vmatprep.subr.mxu0 0.0
    %3693 = vmatpush1.msra.mxu0 0.0
    %3694 = vmatprep.subr.mxu0 0.0
    %3695 = vmatpush1.msra.mxu0 0.0
    %3696 = vmatprep.subr.mxu0 0.0
    %3697 = vmatpush1.msra.mxu0 0.0
    %3698 = vmatprep.subr.mxu0 0.0
    %3699 = vmatpush1.msra.mxu0 0.0
    %3700 = vmatprep.subr.mxu0 0.0
    %3701 = vmatpush1.msra.mxu0 0.0
    %3702 = vmatprep.subr.mxu0 0.0
    %3703 = vmatpush1.msra.mxu0 0.0
    %3704 = vmatprep.subr.mxu0 0.0
    %3705 = vmatpush1.msra.mxu0 0.0
    %3706 = vmatprep.subr.mxu0 0.0
    %3707 = vmatpush1.msra.mxu0 0.0
    %3708 = vmatprep.subr.mxu0 0.0
    %3709 = vmatpush1.msra.mxu0 0.0
    %3710 = vmatprep.subr.mxu0 0.0
    %3711 = vmatpush1.msra.mxu0 0.0
    %3712 = vmatprep.subr.mxu0 0.0
    %3713 = vmatpush1.msra.mxu0 0.0
    %3714 = vmatprep.subr.mxu0 0.0
    %3715 = vmatpush1.msra.mxu0 0.0
    %3716 = vmatprep.subr.mxu0 0.0
    %3717 = vmatpush1.msra.mxu0 0.0
    %3718 = vmatprep.subr.mxu0 0.0
    %3719 = vmatpush1.msra.mxu0 0.0
    %3720 = vmatprep.mubr.f32.mxu0 0.0
    %v3721 = vand.u32 %v3240, 4294901760
    %3722 = vmatmul.mubr.f32.gmra.mrb[0].mxu0 %v3721
    %v3723 = vpop.f32.mrb[0].mxu0
    %v3724 = vadd.f32 %v3649, %v3723
    %v3725 = vpop.f32.mrb[0].mxu0
    %3726 = vdwg.mxu0
    %v3727 = vxor.u32 %v3724, 2147483648
    %v3728 = vmul.f32 %v3727, 1.442695
    %v3729 = vpow.pop %v3728
    %v3730 = vadd.f32 %v3729, 1.0
    %v3731 = vrcp.pop %v3730
    %v3732 = vmul.f32 1.0, %v3731
    %v3733 = vtanh.pop %v3724
    %v3734 = vld [vmem:[#allocation3] sm:$0x3]
    %3736 = vrot.lane.b32.xlu0 %v3734, 32
    %v3737 = vpop.permute.xlu0 %3736
    %v3739 = vmul.f32 %v3732, %v3737
    %3741 = vrot.lane.b32.xlu0 %v3733, 64
    %v3742 = vpop.permute.xlu0 %3741
    %v3744 = vmul.f32 %v3732, %v3742
    %3746 = vrot.lane.b32.xlu0 %v3744, 32
    %v3747 = vpop.permute.xlu0 %3746
    %v3749 = vadd.f32 %v3739, %v3747
    %v3750 = vtanh.pop %v3749
    %3752 = vrot.lane.b32.xlu0 %v3750, 64
    %v3753 = vpop.permute.xlu0 %3752
    %v3755 = vmul.f32 %v3732, %v3753
    %3757 = vrot.lane.b32.xlu0 %v3749, 96
    %v3758 = vpop.permute.xlu0 %3757
    %3760 = vst.msk [vmem:[#allocation3] sm:$0x3] %vm41, %v3758
    %3762 = vrot.lane.b32.xlu0 %v3755, 32
    %v3763 = vpop.permute.xlu0 %3762
    %3765 = vst.msk [vmem:[#allocation2] sm:$0x3] %vm41, %v3763
    %s3766 = scalar_lea.vmem [#allocation4], 12
    %3767 = vst.msk [vmem:[%s3766] sm:$0x3] %vm41, %v3763
    %v3768 = vld [vmem:[#allocation2] sm:$0x3]
    %s3769 = scalar_lea.vmem %s0, 14
    %v3770 = vld [vmem:[%s3769] sm:$0x3]
    %v3772 = vsel %vm47, %v3768, 0
    %3774 = vmatprep.subr.mxu0 0.0
    %v3775 = vand.u32 %v36, 4294901760
    %3776 = vmatpush1.msra.mxu0 %v3775
    %3777 = vmatprep.subr.mxu0 0.0
    %v3778 = vand.u32 %v37, 4294901760
    %3779 = vmatpush1.msra.mxu0 %v3778
    %3780 = vmatprep.subr.mxu0 0.0
    %v3781 = vand.u32 %v38, 4294901760
    %3782 = vmatpush1.msra.mxu0 %v3781
    %3783 = vmatprep.subr.mxu0 0.0
    %v3784 = vand.u32 %v39, 4294901760
    %3785 = vmatpush1.msra.mxu0 %v3784
    %3786 = vmatprep.subr.mxu0 0.0
    %3787 = vmatpush1.msra.mxu0 0.0
    %3788 = vmatprep.subr.mxu0 0.0
    %3789 = vmatpush1.msra.mxu0 0.0
    %3790 = vmatprep.subr.mxu0 0.0
    %3791 = vmatpush1.msra.mxu0 0.0
    %3792 = vmatprep.subr.mxu0 0.0
    %3793 = vmatpush1.msra.mxu0 0.0
    %3794 = vmatprep.subr.mxu0 0.0
    %3795 = vmatpush1.msra.mxu0 0.0
    %3796 = vmatprep.subr.mxu0 0.0
    %3797 = vmatpush1.msra.mxu0 0.0
    %3798 = vmatprep.subr.mxu0 0.0
    %3799 = vmatpush1.msra.mxu0 0.0
    %3800 = vmatprep.subr.mxu0 0.0
    %3801 = vmatpush1.msra.mxu0 0.0
    %3802 = vmatprep.subr.mxu0 0.0
    %3803 = vmatpush1.msra.mxu0 0.0
    %3804 = vmatprep.subr.mxu0 0.0
    %3805 = vmatpush1.msra.mxu0 0.0
    %3806 = vmatprep.subr.mxu0 0.0
    %3807 = vmatpush1.msra.mxu0 0.0
    %3808 = vmatprep.subr.mxu0 0.0
    %3809 = vmatpush1.msra.mxu0 0.0
    %3810 = vmatprep.subr.mxu0 0.0
    %3811 = vmatpush1.msra.mxu0 0.0
    %3812 = vmatprep.subr.mxu0 0.0
    %3813 = vmatpush1.msra.mxu0 0.0
    %3814 = vmatprep.subr.mxu0 0.0
    %3815 = vmatpush1.msra.mxu0 0.0
    %3816 = vmatprep.subr.mxu0 0.0
    %3817 = vmatpush1.msra.mxu0 0.0
    %3818 = vmatprep.subr.mxu0 0.0
    %3819 = vmatpush1.msra.mxu0 0.0
    %3820 = vmatprep.subr.mxu0 0.0
    %3821 = vmatpush1.msra.mxu0 0.0
    %3822 = vmatprep.subr.mxu0 0.0
    %3823 = vmatpush1.msra.mxu0 0.0
    %3824 = vmatprep.subr.mxu0 0.0
    %3825 = vmatpush1.msra.mxu0 0.0
    %3826 = vmatprep.subr.mxu0 0.0
    %3827 = vmatpush1.msra.mxu0 0.0
    %3828 = vmatprep.subr.mxu0 0.0
    %3829 = vmatpush1.msra.mxu0 0.0
    %3830 = vmatprep.subr.mxu0 0.0
    %3831 = vmatpush1.msra.mxu0 0.0
    %3832 = vmatprep.subr.mxu0 0.0
    %3833 = vmatpush1.msra.mxu0 0.0
    %3834 = vmatprep.subr.mxu0 0.0
    %3835 = vmatpush1.msra.mxu0 0.0
    %3836 = vmatprep.subr.mxu0 0.0
    %3837 = vmatpush1.msra.mxu0 0.0
    %3838 = vmatprep.subr.mxu0 0.0
    %3839 = vmatpush1.msra.mxu0 0.0
    %3840 = vmatprep.subr.mxu0 0.0
    %3841 = vmatpush1.msra.mxu0 0.0
    %3842 = vmatprep.mubr.f32.mxu0 0.0
    %v3843 = vand.u32 %v3772, 4294901760
    %v3844 = vsub.f32 %v3772, %v3843
    %v3845 = vand.u32 %v3844, 4294901760
    %v3846 = vsub.f32 %v3844, %v3845
    %v3847 = vand.u32 %v3846, 4294901760
    %3848 = vmatmul.mubr.f32.gmra.mrb[0].mxu0 %v3847
    %v3849 = vpop.f32.mrb[0].mxu0
    %v3850 = vadd.f32 %v3770, %v3849
    %v3851 = vpop.f32.mrb[0].mxu0
    %3852 = vdwg.mxu0
    %3853 = vmatprep.subr.mxu0 0.0
    %v3854 = vand.u32 %v36, 4294901760
    %v3855 = vsub.f32 %v36, %v3854
    %v3856 = vand.u32 %v3855, 4294901760
    %v3857 = vsub.f32 %v3855, %v3856
    %v3858 = vand.u32 %v3857, 4294901760
    %3859 = vmatpush1.msra.mxu0 %v3858
    %3860 = vmatprep.subr.mxu0 0.0
    %v3861 = vand.u32 %v37, 4294901760
    %v3862 = vsub.f32 %v37, %v3861
    %v3863 = vand.u32 %v3862, 4294901760
    %v3864 = vsub.f32 %v3862, %v3863
    %v3865 = vand.u32 %v3864, 4294901760
    %3866 = vmatpush1.msra.mxu0 %v3865
    %3867 = vmatprep.subr.mxu0 0.0
    %v3868 = vand.u32 %v38, 4294901760
    %v3869 = vsub.f32 %v38, %v3868
    %v3870 = vand.u32 %v3869, 4294901760
    %v3871 = vsub.f32 %v3869, %v3870
    %v3872 = vand.u32 %v3871, 4294901760
    %3873 = vmatpush1.msra.mxu0 %v3872
    %3874 = vmatprep.subr.mxu0 0.0
    %v3875 = vand.u32 %v39, 4294901760
    %v3876 = vsub.f32 %v39, %v3875
    %v3877 = vand.u32 %v3876, 4294901760
    %v3878 = vsub.f32 %v3876, %v3877
    %v3879 = vand.u32 %v3878, 4294901760
    %3880 = vmatpush1.msra.mxu0 %v3879
    %3881 = vmatprep.subr.mxu0 0.0
    %3882 = vmatpush1.msra.mxu0 0.0
    %3883 = vmatprep.subr.mxu0 0.0
    %3884 = vmatpush1.msra.mxu0 0.0
    %3885 = vmatprep.subr.mxu0 0.0
    %3886 = vmatpush1.msra.mxu0 0.0
    %3887 = vmatprep.subr.mxu0 0.0
    %3888 = vmatpush1.msra.mxu0 0.0
    %3889 = vmatprep.subr.mxu0 0.0
    %3890 = vmatpush1.msra.mxu0 0.0
    %3891 = vmatprep.subr.mxu0 0.0
    %3892 = vmatpush1.msra.mxu0 0.0
    %3893 = vmatprep.subr.mxu0 0.0
    %3894 = vmatpush1.msra.mxu0 0.0
    %3895 = vmatprep.subr.mxu0 0.0
    %3896 = vmatpush1.msra.mxu0 0.0
    %3897 = vmatprep.subr.mxu0 0.0
    %3898 = vmatpush1.msra.mxu0 0.0
    %3899 = vmatprep.subr.mxu0 0.0
    %3900 = vmatpush1.msra.mxu0 0.0
    %3901 = vmatprep.subr.mxu0 0.0
    %3902 = vmatpush1.msra.mxu0 0.0
    %3903 = vmatprep.subr.mxu0 0.0
    %3904 = vmatpush1.msra.mxu0 0.0
    %3905 = vmatprep.subr.mxu0 0.0
    %3906 = vmatpush1.msra.mxu0 0.0
    %3907 = vmatprep.subr.mxu0 0.0
    %3908 = vmatpush1.msra.mxu0 0.0
    %3909 = vmatprep.subr.mxu0 0.0
    %3910 = vmatpush1.msra.mxu0 0.0
    %3911 = vmatprep.subr.mxu0 0.0
    %3912 = vmatpush1.msra.mxu0 0.0
    %3913 = vmatprep.subr.mxu0 0.0
    %3914 = vmatpush1.msra.mxu0 0.0
    %3915 = vmatprep.subr.mxu0 0.0
    %3916 = vmatpush1.msra.mxu0 0.0
    %3917 = vmatprep.subr.mxu0 0.0
    %3918 = vmatpush1.msra.mxu0 0.0
    %3919 = vmatprep.subr.mxu0 0.0
    %3920 = vmatpush1.msra.mxu0 0.0
    %3921 = vmatprep.subr.mxu0 0.0
    %3922 = vmatpush1.msra.mxu0 0.0
    %3923 = vmatprep.subr.mxu0 0.0
    %3924 = vmatpush1.msra.mxu0 0.0
    %3925 = vmatprep.subr.mxu0 0.0
    %3926 = vmatpush1.msra.mxu0 0.0
    %3927 = vmatprep.subr.mxu0 0.0
    %3928 = vmatpush1.msra.mxu0 0.0
    %3929 = vmatprep.subr.mxu0 0.0
    %3930 = vmatpush1.msra.mxu0 0.0
    %3931 = vmatprep.subr.mxu0 0.0
    %3932 = vmatpush1.msra.mxu0 0.0
    %3933 = vmatprep.subr.mxu0 0.0
    %3934 = vmatpush1.msra.mxu0 0.0
    %3935 = vmatprep.subr.mxu0 0.0
    %3936 = vmatpush1.msra.mxu0 0.0
    %3937 = vmatprep.mubr.f32.mxu0 0.0
    %v3938 = vand.u32 %v3772, 4294901760
    %3939 = vmatmul.mubr.f32.gmra.mrb[0].mxu0 %v3938
    %v3940 = vpop.f32.mrb[0].mxu0
    %v3941 = vadd.f32 %v3850, %v3940
    %v3942 = vpop.f32.mrb[0].mxu0
    %3943 = vdwg.mxu0
    %3944 = vmatprep.subr.mxu0 0.0
    %v3945 = vand.u32 %v36, 4294901760
    %v3946 = vsub.f32 %v36, %v3945
    %3947 = vmatpush1.msra.mxu0 %v3946
    %3948 = vmatprep.subr.mxu0 0.0
    %v3949 = vand.u32 %v37, 4294901760
    %v3950 = vsub.f32 %v37, %v3949
    %3951 = vmatpush1.msra.mxu0 %v3950
    %3952 = vmatprep.subr.mxu0 0.0
    %v3953 = vand.u32 %v38, 4294901760
    %v3954 = vsub.f32 %v38, %v3953
    %3955 = vmatpush1.msra.mxu0 %v3954
    %3956 = vmatprep.subr.mxu0 0.0
    %v3957 = vand.u32 %v39, 4294901760
    %v3958 = vsub.f32 %v39, %v3957
    %3959 = vmatpush1.msra.mxu0 %v3958
    %3960 = vmatprep.subr.mxu0 0.0
    %3961 = vmatpush1.msra.mxu0 0.0
    %3962 = vmatprep.subr.mxu0 0.0
    %3963 = vmatpush1.msra.mxu0 0.0
    %3964 = vmatprep.subr.mxu0 0.0
    %3965 = vmatpush1.msra.mxu0 0.0
    %3966 = vmatprep.subr.mxu0 0.0
    %3967 = vmatpush1.msra.mxu0 0.0
    %3968 = vmatprep.subr.mxu0 0.0
    %3969 = vmatpush1.msra.mxu0 0.0
    %3970 = vmatprep.subr.mxu0 0.0
    %3971 = vmatpush1.msra.mxu0 0.0
    %3972 = vmatprep.subr.mxu0 0.0
    %3973 = vmatpush1.msra.mxu0 0.0
    %3974 = vmatprep.subr.mxu0 0.0
    %3975 = vmatpush1.msra.mxu0 0.0
    %3976 = vmatprep.subr.mxu0 0.0
    %3977 = vmatpush1.msra.mxu0 0.0
    %3978 = vmatprep.subr.mxu0 0.0
    %3979 = vmatpush1.msra.mxu0 0.0
    %3980 = vmatprep.subr.mxu0 0.0
    %3981 = vmatpush1.msra.mxu0 0.0
    %3982 = vmatprep.subr.mxu0 0.0
    %3983 = vmatpush1.msra.mxu0 0.0
    %3984 = vmatprep.subr.mxu0 0.0
    %3985 = vmatpush1.msra.mxu0 0.0
    %3986 = vmatprep.subr.mxu0 0.0
    %3987 = vmatpush1.msra.mxu0 0.0
    %3988 = vmatprep.subr.mxu0 0.0
    %3989 = vmatpush1.msra.mxu0 0.0
    %3990 = vmatprep.subr.mxu0 0.0
    %3991 = vmatpush1.msra.mxu0 0.0
    %3992 = vmatprep.subr.mxu0 0.0
    %3993 = vmatpush1.msra.mxu0 0.0
    %3994 = vmatprep.subr.mxu0 0.0
    %3995 = vmatpush1.msra.mxu0 0.0
    %3996 = vmatprep.subr.mxu0 0.0
    %3997 = vmatpush1.msra.mxu0 0.0
    %3998 = vmatprep.subr.mxu0 0.0
    %3999 = vmatpush1.msra.mxu0 0.0
    %4000 = vmatprep.subr.mxu0 0.0
    %4001 = vmatpush1.msra.mxu0 0.0
    %4002 = vmatprep.subr.mxu0 0.0
    %4003 = vmatpush1.msra.mxu0 0.0
    %4004 = vmatprep.subr.mxu0 0.0
    %4005 = vmatpush1.msra.mxu0 0.0
    %4006 = vmatprep.subr.mxu0 0.0
    %4007 = vmatpush1.msra.mxu0 0.0
    %4008 = vmatprep.subr.mxu0 0.0
    %4009 = vmatpush1.msra.mxu0 0.0
    %4010 = vmatprep.subr.mxu0 0.0
    %4011 = vmatpush1.msra.mxu0 0.0
    %4012 = vmatprep.subr.mxu0 0.0
    %4013 = vmatpush1.msra.mxu0 0.0
    %4014 = vmatprep.subr.mxu0 0.0
    %4015 = vmatpush1.msra.mxu0 0.0
    %4016 = vmatprep.mubr.f32.mxu0 0.0
    %v4017 = vand.u32 %v3772, 4294901760
    %v4018 = vsub.f32 %v3772, %v4017
    %4019 = vmatmul.mubr.f32.gmra.mrb[0].mxu0 %v4018
    %v4020 = vpop.f32.mrb[0].mxu0
    %v4021 = vadd.f32 %v3941, %v4020
    %v4022 = vpop.f32.mrb[0].mxu0
    %4023 = vdwg.mxu0
    %4024 = vmatprep.subr.mxu0 0.0
    %v4025 = vand.u32 %v36, 4294901760
    %4026 = vmatpush1.msra.mxu0 %v4025
    %4027 = vmatprep.subr.mxu0 0.0
    %v4028 = vand.u32 %v37, 4294901760
    %4029 = vmatpush1.msra.mxu0 %v4028
    %4030 = vmatprep.subr.mxu0 0.0
    %v4031 = vand.u32 %v38, 4294901760
    %4032 = vmatpush1.msra.mxu0 %v4031
    %4033 = vmatprep.subr.mxu0 0.0
    %v4034 = vand.u32 %v39, 4294901760
    %4035 = vmatpush1.msra.mxu0 %v4034
    %4036 = vmatprep.subr.mxu0 0.0
    %4037 = vmatpush1.msra.mxu0 0.0
    %4038 = vmatprep.subr.mxu0 0.0
    %4039 = vmatpush1.msra.mxu0 0.0
    %4040 = vmatprep.subr.mxu0 0.0
    %4041 = vmatpush1.msra.mxu0 0.0
    %4042 = vmatprep.subr.mxu0 0.0
    %4043 = vmatpush1.msra.mxu0 0.0
    %4044 = vmatprep.subr.mxu0 0.0
    %4045 = vmatpush1.msra.mxu0 0.0
    %4046 = vmatprep.subr.mxu0 0.0
    %4047 = vmatpush1.msra.mxu0 0.0
    %4048 = vmatprep.subr.mxu0 0.0
    %4049 = vmatpush1.msra.mxu0 0.0
    %4050 = vmatprep.subr.mxu0 0.0
    %4051 = vmatpush1.msra.mxu0 0.0
    %4052 = vmatprep.subr.mxu0 0.0
    %4053 = vmatpush1.msra.mxu0 0.0
    %4054 = vmatprep.subr.mxu0 0.0
    %4055 = vmatpush1.msra.mxu0 0.0
    %4056 = vmatprep.subr.mxu0 0.0
    %4057 = vmatpush1.msra.mxu0 0.0
    %4058 = vmatprep.subr.mxu0 0.0
    %4059 = vmatpush1.msra.mxu0 0.0
    %4060 = vmatprep.subr.mxu0 0.0
    %4061 = vmatpush1.msra.mxu0 0.0
    %4062 = vmatprep.subr.mxu0 0.0
    %4063 = vmatpush1.msra.mxu0 0.0
    %4064 = vmatprep.subr.mxu0 0.0
    %4065 = vmatpush1.msra.mxu0 0.0
    %4066 = vmatprep.subr.mxu0 0.0
    %4067 = vmatpush1.msra.mxu0 0.0
    %4068 = vmatprep.subr.mxu0 0.0
    %4069 = vmatpush1.msra.mxu0 0.0
    %4070 = vmatprep.subr.mxu0 0.0
    %4071 = vmatpush1.msra.mxu0 0.0
    %4072 = vmatprep.subr.mxu0 0.0
    %4073 = vmatpush1.msra.mxu0 0.0
    %4074 = vmatprep.subr.mxu0 0.0
    %4075 = vmatpush1.msra.mxu0 0.0
    %4076 = vmatprep.subr.mxu0 0.0
    %4077 = vmatpush1.msra.mxu0 0.0
    %4078 = vmatprep.subr.mxu0 0.0
    %4079 = vmatpush1.msra.mxu0 0.0
    %4080 = vmatprep.subr.mxu0 0.0
    %4081 = vmatpush1.msra.mxu0 0.0
    %4082 = vmatprep.subr.mxu0 0.0
    %4083 = vmatpush1.msra.mxu0 0.0
    %4084 = vmatprep.subr.mxu0 0.0
    %4085 = vmatpush1.msra.mxu0 0.0
    %4086 = vmatprep.subr.mxu0 0.0
    %4087 = vmatpush1.msra.mxu0 0.0
    %4088 = vmatprep.subr.mxu0 0.0
    %4089 = vmatpush1.msra.mxu0 0.0
    %4090 = vmatprep.subr.mxu0 0.0
    %4091 = vmatpush1.msra.mxu0 0.0
    %4092 = vmatprep.mubr.f32.mxu0 0.0
    %v4093 = vand.u32 %v3772, 4294901760
    %v4094 = vsub.f32 %v3772, %v4093
    %v4095 = vand.u32 %v4094, 4294901760
    %4096 = vmatmul.mubr.f32.gmra.mrb[0].mxu0 %v4095
    %v4097 = vpop.f32.mrb[0].mxu0
    %v4098 = vadd.f32 %v4021, %v4097
    %v4099 = vpop.f32.mrb[0].mxu0
    %4100 = vdwg.mxu0
    %4101 = vmatprep.subr.mxu0 0.0
    %v4102 = vand.u32 %v36, 4294901760
    %v4103 = vsub.f32 %v36, %v4102
    %v4104 = vand.u32 %v4103, 4294901760
    %4105 = vmatpush1.msra.mxu0 %v4104
    %4106 = vmatprep.subr.mxu0 0.0
    %v4107 = vand.u32 %v37, 4294901760
    %v4108 = vsub.f32 %v37, %v4107
    %v4109 = vand.u32 %v4108, 4294901760
    %4110 = vmatpush1.msra.mxu0 %v4109
    %4111 = vmatprep.subr.mxu0 0.0
    %v4112 = vand.u32 %v38, 4294901760
    %v4113 = vsub.f32 %v38, %v4112
    %v4114 = vand.u32 %v4113, 4294901760
    %4115 = vmatpush1.msra.mxu0 %v4114
    %4116 = vmatprep.subr.mxu0 0.0
    %v4117 = vand.u32 %v39, 4294901760
    %v4118 = vsub.f32 %v39, %v4117
    %v4119 = vand.u32 %v4118, 4294901760
    %4120 = vmatpush1.msra.mxu0 %v4119
    %4121 = vmatprep.subr.mxu0 0.0
    %4122 = vmatpush1.msra.mxu0 0.0
    %4123 = vmatprep.subr.mxu0 0.0
    %4124 = vmatpush1.msra.mxu0 0.0
    %4125 = vmatprep.subr.mxu0 0.0
    %4126 = vmatpush1.msra.mxu0 0.0
    %4127 = vmatprep.subr.mxu0 0.0
    %4128 = vmatpush1.msra.mxu0 0.0
    %4129 = vmatprep.subr.mxu0 0.0
    %4130 = vmatpush1.msra.mxu0 0.0
    %4131 = vmatprep.subr.mxu0 0.0
    %4132 = vmatpush1.msra.mxu0 0.0
    %4133 = vmatprep.subr.mxu0 0.0
    %4134 = vmatpush1.msra.mxu0 0.0
    %4135 = vmatprep.subr.mxu0 0.0
    %4136 = vmatpush1.msra.mxu0 0.0
    %4137 = vmatprep.subr.mxu0 0.0
    %4138 = vmatpush1.msra.mxu0 0.0
    %4139 = vmatprep.subr.mxu0 0.0
    %4140 = vmatpush1.msra.mxu0 0.0
    %4141 = vmatprep.subr.mxu0 0.0
    %4142 = vmatpush1.msra.mxu0 0.0
    %4143 = vmatprep.subr.mxu0 0.0
    %4144 = vmatpush1.msra.mxu0 0.0
    %4145 = vmatprep.subr.mxu0 0.0
    %4146 = vmatpush1.msra.mxu0 0.0
    %4147 = vmatprep.subr.mxu0 0.0
    %4148 = vmatpush1.msra.mxu0 0.0
    %4149 = vmatprep.subr.mxu0 0.0
    %4150 = vmatpush1.msra.mxu0 0.0
    %4151 = vmatprep.subr.mxu0 0.0
    %4152 = vmatpush1.msra.mxu0 0.0
    %4153 = vmatprep.subr.mxu0 0.0
    %4154 = vmatpush1.msra.mxu0 0.0
    %4155 = vmatprep.subr.mxu0 0.0
    %4156 = vmatpush1.msra.mxu0 0.0
    %4157 = vmatprep.subr.mxu0 0.0
    %4158 = vmatpush1.msra.mxu0 0.0
    %4159 = vmatprep.subr.mxu0 0.0
    %4160 = vmatpush1.msra.mxu0 0.0
    %4161 = vmatprep.subr.mxu0 0.0
    %4162 = vmatpush1.msra.mxu0 0.0
    %4163 = vmatprep.subr.mxu0 0.0
    %4164 = vmatpush1.msra.mxu0 0.0
    %4165 = vmatprep.subr.mxu0 0.0
    %4166 = vmatpush1.msra.mxu0 0.0
    %4167 = vmatprep.subr.mxu0 0.0
    %4168 = vmatpush1.msra.mxu0 0.0
    %4169 = vmatprep.subr.mxu0 0.0
    %4170 = vmatpush1.msra.mxu0 0.0
    %4171 = vmatprep.subr.mxu0 0.0
    %4172 = vmatpush1.msra.mxu0 0.0
    %4173 = vmatprep.subr.mxu0 0.0
    %4174 = vmatpush1.msra.mxu0 0.0
    %4175 = vmatprep.subr.mxu0 0.0
    %4176 = vmatpush1.msra.mxu0 0.0
    %4177 = vmatprep.mubr.f32.mxu0 0.0
    %v4178 = vand.u32 %v3772, 4294901760
    %4179 = vmatmul.mubr.f32.gmra.mrb[0].mxu0 %v4178
    %v4180 = vpop.f32.mrb[0].mxu0
    %v4181 = vadd.f32 %v4098, %v4180
    %v4182 = vpop.f32.mrb[0].mxu0
    %4183 = vdwg.mxu0
    %4184 = vmatprep.subr.mxu0 0.0
    %v4185 = vand.u32 %v36, 4294901760
    %4186 = vmatpush1.msra.mxu0 %v4185
    %4187 = vmatprep.subr.mxu0 0.0
    %v4188 = vand.u32 %v37, 4294901760
    %4189 = vmatpush1.msra.mxu0 %v4188
    %4190 = vmatprep.subr.mxu0 0.0
    %v4191 = vand.u32 %v38, 4294901760
    %4192 = vmatpush1.msra.mxu0 %v4191
    %4193 = vmatprep.subr.mxu0 0.0
    %v4194 = vand.u32 %v39, 4294901760
    %4195 = vmatpush1.msra.mxu0 %v4194
    %4196 = vmatprep.subr.mxu0 0.0
    %4197 = vmatpush1.msra.mxu0 0.0
    %4198 = vmatprep.subr.mxu0 0.0
    %4199 = vmatpush1.msra.mxu0 0.0
    %4200 = vmatprep.subr.mxu0 0.0
    %4201 = vmatpush1.msra.mxu0 0.0
    %4202 = vmatprep.subr.mxu0 0.0
    %4203 = vmatpush1.msra.mxu0 0.0
    %4204 = vmatprep.subr.mxu0 0.0
    %4205 = vmatpush1.msra.mxu0 0.0
    %4206 = vmatprep.subr.mxu0 0.0
    %4207 = vmatpush1.msra.mxu0 0.0
    %4208 = vmatprep.subr.mxu0 0.0
    %4209 = vmatpush1.msra.mxu0 0.0
    %4210 = vmatprep.subr.mxu0 0.0
    %4211 = vmatpush1.msra.mxu0 0.0
    %4212 = vmatprep.subr.mxu0 0.0
    %4213 = vmatpush1.msra.mxu0 0.0
    %4214 = vmatprep.subr.mxu0 0.0
    %4215 = vmatpush1.msra.mxu0 0.0
    %4216 = vmatprep.subr.mxu0 0.0
    %4217 = vmatpush1.msra.mxu0 0.0
    %4218 = vmatprep.subr.mxu0 0.0
    %4219 = vmatpush1.msra.mxu0 0.0
    %4220 = vmatprep.subr.mxu0 0.0
    %4221 = vmatpush1.msra.mxu0 0.0
    %4222 = vmatprep.subr.mxu0 0.0
    %4223 = vmatpush1.msra.mxu0 0.0
    %4224 = vmatprep.subr.mxu0 0.0
    %4225 = vmatpush1.msra.mxu0 0.0
    %4226 = vmatprep.subr.mxu0 0.0
    %4227 = vmatpush1.msra.mxu0 0.0
    %4228 = vmatprep.subr.mxu0 0.0
    %4229 = vmatpush1.msra.mxu0 0.0
    %4230 = vmatprep.subr.mxu0 0.0
    %4231 = vmatpush1.msra.mxu0 0.0
    %4232 = vmatprep.subr.mxu0 0.0
    %4233 = vmatpush1.msra.mxu0 0.0
    %4234 = vmatprep.subr.mxu0 0.0
    %4235 = vmatpush1.msra.mxu0 0.0
    %4236 = vmatprep.subr.mxu0 0.0
    %4237 = vmatpush1.msra.mxu0 0.0
    %4238 = vmatprep.subr.mxu0 0.0
    %4239 = vmatpush1.msra.mxu0 0.0
    %4240 = vmatprep.subr.mxu0 0.0
    %4241 = vmatpush1.msra.mxu0 0.0
    %4242 = vmatprep.subr.mxu0 0.0
    %4243 = vmatpush1.msra.mxu0 0.0
    %4244 = vmatprep.subr.mxu0 0.0
    %4245 = vmatpush1.msra.mxu0 0.0
    %4246 = vmatprep.subr.mxu0 0.0
    %4247 = vmatpush1.msra.mxu0 0.0
    %4248 = vmatprep.subr.mxu0 0.0
    %4249 = vmatpush1.msra.mxu0 0.0
    %4250 = vmatprep.subr.mxu0 0.0
    %4251 = vmatpush1.msra.mxu0 0.0
    %4252 = vmatprep.mubr.f32.mxu0 0.0
    %v4253 = vand.u32 %v3772, 4294901760
    %4254 = vmatmul.mubr.f32.gmra.mrb[0].mxu0 %v4253
    %v4255 = vpop.f32.mrb[0].mxu0
    %v4256 = vadd.f32 %v4181, %v4255
    %v4257 = vpop.f32.mrb[0].mxu0
    %4258 = vdwg.mxu0
    %v4259 = vxor.u32 %v4256, 2147483648
    %v4260 = vmul.f32 %v4259, 1.442695
    %v4261 = vpow.pop %v4260
    %v4262 = vadd.f32 %v4261, 1.0
    %v4263 = vrcp.pop %v4262
    %v4264 = vmul.f32 1.0, %v4263
    %v4265 = vtanh.pop %v4256
    %v4266 = vld [vmem:[#allocation3] sm:$0x3]
    %4268 = vrot.lane.b32.xlu0 %v4266, 32
    %v4269 = vpop.permute.xlu0 %4268
    %v4271 = vmul.f32 %v4264, %v4269
    %4273 = vrot.lane.b32.xlu0 %v4265, 64
    %v4274 = vpop.permute.xlu0 %4273
    %v4276 = vmul.f32 %v4264, %v4274
    %4278 = vrot.lane.b32.xlu0 %v4276, 32
    %v4279 = vpop.permute.xlu0 %4278
    %v4281 = vadd.f32 %v4271, %v4279
    %v4282 = vtanh.pop %v4281
    %4284 = vrot.lane.b32.xlu0 %v4282, 64
    %v4285 = vpop.permute.xlu0 %4284
    %v4287 = vmul.f32 %v4264, %v4285
    %4289 = vrot.lane.b32.xlu0 %v4281, 96
    %v4290 = vpop.permute.xlu0 %4289
    %4292 = vst.msk [vmem:[#allocation3] sm:$0x3] %vm41, %v4290
    %4294 = vrot.lane.b32.xlu0 %v4287, 32
    %v4295 = vpop.permute.xlu0 %4294
    %4297 = vst.msk [vmem:[#allocation2] sm:$0x3] %vm41, %v4295
    %s4298 = scalar_lea.vmem [#allocation4], 14
    %4299 = vst.msk [vmem:[%s4298] sm:$0x3] %vm41, %v4295
    %v4300 = vld [vmem:[#allocation4] sm:$0xff]
    %v4301 = vld [vmem:[#allocation4 + $0x8] sm:$0xff]
    %v4302 = vld [vmem:[%s2] sm:$0xff]
    %v4303 = vld [vmem:[%s2 + $0x8] sm:$0xff]
    %v4304 = vld [vmem:[%s2 + $0x10] sm:$0xff]
    %v4305 = vld [vmem:[%s2 + $0x18] sm:$0xff]
    %v4306 = vld [vmem:[%s3] sm:$0x1]
    %v4308 = vlaneseq
    %v4309 = vshrl.u32 %v4308, 7
    %v4310 = vsub.s32 0, %v4309
    %v4311 = vrot.slane %v4306, %v4310
    %v4314 = vsel %vm47, %v4300, 0
    %v4317 = vsel %vm47, %v4301, 0
    %4319 = vmatprep.subr.mxu0 0.0
    %v4320 = vand.u32 %v4302, 4294901760
    %4321 = vmatpush1.msra.mxu0 %v4320
    %4322 = vmatprep.subr.mxu0 0.0
    %v4323 = vand.u32 %v4303, 4294901760
    %4324 = vmatpush1.msra.mxu0 %v4323
    %4325 = vmatprep.subr.mxu0 0.0
    %v4326 = vand.u32 %v4304, 4294901760
    %4327 = vmatpush1.msra.mxu0 %v4326
    %4328 = vmatprep.subr.mxu0 0.0
    %v4329 = vand.u32 %v4305, 4294901760
    %4330 = vmatpush1.msra.mxu0 %v4329
    %4331 = vmatprep.subr.mxu0 0.0
    %4332 = vmatpush1.msra.mxu0 0.0
    %4333 = vmatprep.subr.mxu0 0.0
    %4334 = vmatpush1.msra.mxu0 0.0
    %4335 = vmatprep.subr.mxu0 0.0
    %4336 = vmatpush1.msra.mxu0 0.0
    %4337 = vmatprep.subr.mxu0 0.0
    %4338 = vmatpush1.msra.mxu0 0.0
    %4339 = vmatprep.subr.mxu0 0.0
    %4340 = vmatpush1.msra.mxu0 0.0
    %4341 = vmatprep.subr.mxu0 0.0
    %4342 = vmatpush1.msra.mxu0 0.0
    %4343 = vmatprep.subr.mxu0 0.0
    %4344 = vmatpush1.msra.mxu0 0.0
    %4345 = vmatprep.subr.mxu0 0.0
    %4346 = vmatpush1.msra.mxu0 0.0
    %4347 = vmatprep.subr.mxu0 0.0
    %4348 = vmatpush1.msra.mxu0 0.0
    %4349 = vmatprep.subr.mxu0 0.0
    %4350 = vmatpush1.msra.mxu0 0.0
    %4351 = vmatprep.subr.mxu0 0.0
    %4352 = vmatpush1.msra.mxu0 0.0
    %4353 = vmatprep.subr.mxu0 0.0
    %4354 = vmatpush1.msra.mxu0 0.0
    %4355 = vmatprep.subr.mxu0 0.0
    %4356 = vmatpush1.msra.mxu0 0.0
    %4357 = vmatprep.subr.mxu0 0.0
    %4358 = vmatpush1.msra.mxu0 0.0
    %4359 = vmatprep.subr.mxu0 0.0
    %4360 = vmatpush1.msra.mxu0 0.0
    %4361 = vmatprep.subr.mxu0 0.0
    %4362 = vmatpush1.msra.mxu0 0.0
    %4363 = vmatprep.subr.mxu0 0.0
    %4364 = vmatpush1.msra.mxu0 0.0
    %4365 = vmatprep.subr.mxu0 0.0
    %4366 = vmatpush1.msra.mxu0 0.0
    %4367 = vmatprep.subr.mxu0 0.0
    %4368 = vmatpush1.msra.mxu0 0.0
    %4369 = vmatprep.subr.mxu0 0.0
    %4370 = vmatpush1.msra.mxu0 0.0
    %4371 = vmatprep.subr.mxu0 0.0
    %4372 = vmatpush1.msra.mxu0 0.0
    %4373 = vmatprep.subr.mxu0 0.0
    %4374 = vmatpush1.msra.mxu0 0.0
    %4375 = vmatprep.subr.mxu0 0.0
    %4376 = vmatpush1.msra.mxu0 0.0
    %4377 = vmatprep.subr.mxu0 0.0
    %4378 = vmatpush1.msra.mxu0 0.0
    %4379 = vmatprep.subr.mxu0 0.0
    %4380 = vmatpush1.msra.mxu0 0.0
    %4381 = vmatprep.subr.mxu0 0.0
    %4382 = vmatpush1.msra.mxu0 0.0
    %4383 = vmatprep.subr.mxu0 0.0
    %4384 = vmatpush1.msra.mxu0 0.0
    %4385 = vmatprep.subr.mxu0 0.0
    %4386 = vmatpush1.msra.mxu0 0.0
    %4387 = vmatprep.mubr.f32.mxu0 0.0
    %v4388 = vand.u32 %v4314, 4294901760
    %v4389 = vsub.f32 %v4314, %v4388
    %v4390 = vand.u32 %v4389, 4294901760
    %v4391 = vsub.f32 %v4389, %v4390
    %v4392 = vand.u32 %v4391, 4294901760
    %4393 = vmatmul.mubr.f32.gmra.mrb[0].mxu0 %v4392
    %v4394 = vpop.f32.mrb[0].mxu0
    %v4395 = vadd.f32 %v4311, %v4394
    %v4396 = vpop.f32.mrb[0].mxu0
    %4397 = vmatprep.mubr.f32.mxu0 0.0
    %v4398 = vand.u32 %v4317, 4294901760
    %v4399 = vsub.f32 %v4317, %v4398
    %v4400 = vand.u32 %v4399, 4294901760
    %v4401 = vsub.f32 %v4399, %v4400
    %v4402 = vand.u32 %v4401, 4294901760
    %4403 = vmatmul.mubr.f32.gmra.mrb[0].mxu0 %v4402
    %v4404 = vpop.f32.mrb[0].mxu0
    %v4405 = vadd.f32 %v4311, %v4404
    %v4406 = vpop.f32.mrb[0].mxu0
    %4407 = vdwg.mxu0
    %4408 = vmatprep.subr.mxu0 0.0
    %v4409 = vand.u32 %v4302, 4294901760
    %v4410 = vsub.f32 %v4302, %v4409
    %v4411 = vand.u32 %v4410, 4294901760
    %v4412 = vsub.f32 %v4410, %v4411
    %v4413 = vand.u32 %v4412, 4294901760
    %4414 = vmatpush1.msra.mxu0 %v4413
    %4415 = vmatprep.subr.mxu0 0.0
    %v4416 = vand.u32 %v4303, 4294901760
    %v4417 = vsub.f32 %v4303, %v4416
    %v4418 = vand.u32 %v4417, 4294901760
    %v4419 = vsub.f32 %v4417, %v4418
    %v4420 = vand.u32 %v4419, 4294901760
    %4421 = vmatpush1.msra.mxu0 %v4420
    %4422 = vmatprep.subr.mxu0 0.0
    %v4423 = vand.u32 %v4304, 4294901760
    %v4424 = vsub.f32 %v4304, %v4423
    %v4425 = vand.u32 %v4424, 4294901760
    %v4426 = vsub.f32 %v4424, %v4425
    %v4427 = vand.u32 %v4426, 4294901760
    %4428 = vmatpush1.msra.mxu0 %v4427
    %4429 = vmatprep.subr.mxu0 0.0
    %v4430 = vand.u32 %v4305, 4294901760
    %v4431 = vsub.f32 %v4305, %v4430
    %v4432 = vand.u32 %v4431, 4294901760
    %v4433 = vsub.f32 %v4431, %v4432
    %v4434 = vand.u32 %v4433, 4294901760
    %4435 = vmatpush1.msra.mxu0 %v4434
    %4436 = vmatprep.subr.mxu0 0.0
    %4437 = vmatpush1.msra.mxu0 0.0
    %4438 = vmatprep.subr.mxu0 0.0
    %4439 = vmatpush1.msra.mxu0 0.0
    %4440 = vmatprep.subr.mxu0 0.0
    %4441 = vmatpush1.msra.mxu0 0.0
    %4442 = vmatprep.subr.mxu0 0.0
    %4443 = vmatpush1.msra.mxu0 0.0
    %4444 = vmatprep.subr.mxu0 0.0
    %4445 = vmatpush1.msra.mxu0 0.0
    %4446 = vmatprep.subr.mxu0 0.0
    %4447 = vmatpush1.msra.mxu0 0.0
    %4448 = vmatprep.subr.mxu0 0.0
    %4449 = vmatpush1.msra.mxu0 0.0
    %4450 = vmatprep.subr.mxu0 0.0
    %4451 = vmatpush1.msra.mxu0 0.0
    %4452 = vmatprep.subr.mxu0 0.0
    %4453 = vmatpush1.msra.mxu0 0.0
    %4454 = vmatprep.subr.mxu0 0.0
    %4455 = vmatpush1.msra.mxu0 0.0
    %4456 = vmatprep.subr.mxu0 0.0
    %4457 = vmatpush1.msra.mxu0 0.0
    %4458 = vmatprep.subr.mxu0 0.0
    %4459 = vmatpush1.msra.mxu0 0.0
    %4460 = vmatprep.subr.mxu0 0.0
    %4461 = vmatpush1.msra.mxu0 0.0
    %4462 = vmatprep.subr.mxu0 0.0
    %4463 = vmatpush1.msra.mxu0 0.0
    %4464 = vmatprep.subr.mxu0 0.0
    %4465 = vmatpush1.msra.mxu0 0.0
    %4466 = vmatprep.subr.mxu0 0.0
    %4467 = vmatpush1.msra.mxu0 0.0
    %4468 = vmatprep.subr.mxu0 0.0
    %4469 = vmatpush1.msra.mxu0 0.0
    %4470 = vmatprep.subr.mxu0 0.0
    %4471 = vmatpush1.msra.mxu0 0.0
    %4472 = vmatprep.subr.mxu0 0.0
    %4473 = vmatpush1.msra.mxu0 0.0
    %4474 = vmatprep.subr.mxu0 0.0
    %4475 = vmatpush1.msra.mxu0 0.0
    %4476 = vmatprep.subr.mxu0 0.0
    %4477 = vmatpush1.msra.mxu0 0.0
    %4478 = vmatprep.subr.mxu0 0.0
    %4479 = vmatpush1.msra.mxu0 0.0
    %4480 = vmatprep.subr.mxu0 0.0
    %4481 = vmatpush1.msra.mxu0 0.0
    %4482 = vmatprep.subr.mxu0 0.0
    %4483 = vmatpush1.msra.mxu0 0.0
    %4484 = vmatprep.subr.mxu0 0.0
    %4485 = vmatpush1.msra.mxu0 0.0
    %4486 = vmatprep.subr.mxu0 0.0
    %4487 = vmatpush1.msra.mxu0 0.0
    %4488 = vmatprep.subr.mxu0 0.0
    %4489 = vmatpush1.msra.mxu0 0.0
    %4490 = vmatprep.subr.mxu0 0.0
    %4491 = vmatpush1.msra.mxu0 0.0
    %4492 = vmatprep.mubr.f32.mxu0 0.0
    %v4493 = vand.u32 %v4314, 4294901760
    %4494 = vmatmul.mubr.f32.gmra.mrb[0].mxu0 %v4493
    %v4495 = vpop.f32.mrb[0].mxu0
    %v4496 = vadd.f32 %v4395, %v4495
    %v4497 = vpop.f32.mrb[0].mxu0
    %4498 = vmatprep.mubr.f32.mxu0 0.0
    %v4499 = vand.u32 %v4317, 4294901760
    %4500 = vmatmul.mubr.f32.gmra.mrb[0].mxu0 %v4499
    %v4501 = vpop.f32.mrb[0].mxu0
    %v4502 = vadd.f32 %v4405, %v4501
    %v4503 = vpop.f32.mrb[0].mxu0
    %4504 = vdwg.mxu0
    %4505 = vmatprep.subr.mxu0 0.0
    %v4506 = vand.u32 %v4302, 4294901760
    %v4507 = vsub.f32 %v4302, %v4506
    %4508 = vmatpush1.msra.mxu0 %v4507
    %4509 = vmatprep.subr.mxu0 0.0
    %v4510 = vand.u32 %v4303, 4294901760
    %v4511 = vsub.f32 %v4303, %v4510
    %4512 = vmatpush1.msra.mxu0 %v4511
    %4513 = vmatprep.subr.mxu0 0.0
    %v4514 = vand.u32 %v4304, 4294901760
    %v4515 = vsub.f32 %v4304, %v4514
    %4516 = vmatpush1.msra.mxu0 %v4515
    %4517 = vmatprep.subr.mxu0 0.0
    %v4518 = vand.u32 %v4305, 4294901760
    %v4519 = vsub.f32 %v4305, %v4518
    %4520 = vmatpush1.msra.mxu0 %v4519
    %4521 = vmatprep.subr.mxu0 0.0
    %4522 = vmatpush1.msra.mxu0 0.0
    %4523 = vmatprep.subr.mxu0 0.0
    %4524 = vmatpush1.msra.mxu0 0.0
    %4525 = vmatprep.subr.mxu0 0.0
    %4526 = vmatpush1.msra.mxu0 0.0
    %4527 = vmatprep.subr.mxu0 0.0
    %4528 = vmatpush1.msra.mxu0 0.0
    %4529 = vmatprep.subr.mxu0 0.0
    %4530 = vmatpush1.msra.mxu0 0.0
    %4531 = vmatprep.subr.mxu0 0.0
    %4532 = vmatpush1.msra.mxu0 0.0
    %4533 = vmatprep.subr.mxu0 0.0
    %4534 = vmatpush1.msra.mxu0 0.0
    %4535 = vmatprep.subr.mxu0 0.0
    %4536 = vmatpush1.msra.mxu0 0.0
    %4537 = vmatprep.subr.mxu0 0.0
    %4538 = vmatpush1.msra.mxu0 0.0
    %4539 = vmatprep.subr.mxu0 0.0
    %4540 = vmatpush1.msra.mxu0 0.0
    %4541 = vmatprep.subr.mxu0 0.0
    %4542 = vmatpush1.msra.mxu0 0.0
    %4543 = vmatprep.subr.mxu0 0.0
    %4544 = vmatpush1.msra.mxu0 0.0
    %4545 = vmatprep.subr.mxu0 0.0
    %4546 = vmatpush1.msra.mxu0 0.0
    %4547 = vmatprep.subr.mxu0 0.0
    %4548 = vmatpush1.msra.mxu0 0.0
    %4549 = vmatprep.subr.mxu0 0.0
    %4550 = vmatpush1.msra.mxu0 0.0
    %4551 = vmatprep.subr.mxu0 0.0
    %4552 = vmatpush1.msra.mxu0 0.0
    %4553 = vmatprep.subr.mxu0 0.0
    %4554 = vmatpush1.msra.mxu0 0.0
    %4555 = vmatprep.subr.mxu0 0.0
    %4556 = vmatpush1.msra.mxu0 0.0
    %4557 = vmatprep.subr.mxu0 0.0
    %4558 = vmatpush1.msra.mxu0 0.0
    %4559 = vmatprep.subr.mxu0 0.0
    %4560 = vmatpush1.msra.mxu0 0.0
    %4561 = vmatprep.subr.mxu0 0.0
    %4562 = vmatpush1.msra.mxu0 0.0
    %4563 = vmatprep.subr.mxu0 0.0
    %4564 = vmatpush1.msra.mxu0 0.0
    %4565 = vmatprep.subr.mxu0 0.0
    %4566 = vmatpush1.msra.mxu0 0.0
    %4567 = vmatprep.subr.mxu0 0.0
    %4568 = vmatpush1.msra.mxu0 0.0
    %4569 = vmatprep.subr.mxu0 0.0
    %4570 = vmatpush1.msra.mxu0 0.0
    %4571 = vmatprep.subr.mxu0 0.0
    %4572 = vmatpush1.msra.mxu0 0.0
    %4573 = vmatprep.subr.mxu0 0.0
    %4574 = vmatpush1.msra.mxu0 0.0
    %4575 = vmatprep.subr.mxu0 0.0
    %4576 = vmatpush1.msra.mxu0 0.0
    %4577 = vmatprep.mubr.f32.mxu0 0.0
    %v4578 = vand.u32 %v4314, 4294901760
    %v4579 = vsub.f32 %v4314, %v4578
    %4580 = vmatmul.mubr.f32.gmra.mrb[0].mxu0 %v4579
    %v4581 = vpop.f32.mrb[0].mxu0
    %v4582 = vadd.f32 %v4496, %v4581
    %v4583 = vpop.f32.mrb[0].mxu0
    %4584 = vmatprep.mubr.f32.mxu0 0.0
    %v4585 = vand.u32 %v4317, 4294901760
    %v4586 = vsub.f32 %v4317, %v4585
    %4587 = vmatmul.mubr.f32.gmra.mrb[0].mxu0 %v4586
    %v4588 = vpop.f32.mrb[0].mxu0
    %v4589 = vadd.f32 %v4502, %v4588
    %v4590 = vpop.f32.mrb[0].mxu0
    %4591 = vdwg.mxu0
    %4592 = vmatprep.subr.mxu0 0.0
    %v4593 = vand.u32 %v4302, 4294901760
    %4594 = vmatpush1.msra.mxu0 %v4593
    %4595 = vmatprep.subr.mxu0 0.0
    %v4596 = vand.u32 %v4303, 4294901760
    %4597 = vmatpush1.msra.mxu0 %v4596
    %4598 = vmatprep.subr.mxu0 0.0
    %v4599 = vand.u32 %v4304, 4294901760
    %4600 = vmatpush1.msra.mxu0 %v4599
    %4601 = vmatprep.subr.mxu0 0.0
    %v4602 = vand.u32 %v4305, 4294901760
    %4603 = vmatpush1.msra.mxu0 %v4602
    %4604 = vmatprep.subr.mxu0 0.0
    %4605 = vmatpush1.msra.mxu0 0.0
    %4606 = vmatprep.subr.mxu0 0.0
    %4607 = vmatpush1.msra.mxu0 0.0
    %4608 = vmatprep.subr.mxu0 0.0
    %4609 = vmatpush1.msra.mxu0 0.0
    %4610 = vmatprep.subr.mxu0 0.0
    %4611 = vmatpush1.msra.mxu0 0.0
    %4612 = vmatprep.subr.mxu0 0.0
    %4613 = vmatpush1.msra.mxu0 0.0
    %4614 = vmatprep.subr.mxu0 0.0
    %4615 = vmatpush1.msra.mxu0 0.0
    %4616 = vmatprep.subr.mxu0 0.0
    %4617 = vmatpush1.msra.mxu0 0.0
    %4618 = vmatprep.subr.mxu0 0.0
    %4619 = vmatpush1.msra.mxu0 0.0
    %4620 = vmatprep.subr.mxu0 0.0
    %4621 = vmatpush1.msra.mxu0 0.0
    %4622 = vmatprep.subr.mxu0 0.0
    %4623 = vmatpush1.msra.mxu0 0.0
    %4624 = vmatprep.subr.mxu0 0.0
    %4625 = vmatpush1.msra.mxu0 0.0
    %4626 = vmatprep.subr.mxu0 0.0
    %4627 = vmatpush1.msra.mxu0 0.0
    %4628 = vmatprep.subr.mxu0 0.0
    %4629 = vmatpush1.msra.mxu0 0.0
    %4630 = vmatprep.subr.mxu0 0.0
    %4631 = vmatpush1.msra.mxu0 0.0
    %4632 = vmatprep.subr.mxu0 0.0
    %4633 = vmatpush1.msra.mxu0 0.0
    %4634 = vmatprep.subr.mxu0 0.0
    %4635 = vmatpush1.msra.mxu0 0.0
    %4636 = vmatprep.subr.mxu0 0.0
    %4637 = vmatpush1.msra.mxu0 0.0
    %4638 = vmatprep.subr.mxu0 0.0
    %4639 = vmatpush1.msra.mxu0 0.0
    %4640 = vmatprep.subr.mxu0 0.0
    %4641 = vmatpush1.msra.mxu0 0.0
    %4642 = vmatprep.subr.mxu0 0.0
    %4643 = vmatpush1.msra.mxu0 0.0
    %4644 = vmatprep.subr.mxu0 0.0
    %4645 = vmatpush1.msra.mxu0 0.0
    %4646 = vmatprep.subr.mxu0 0.0
    %4647 = vmatpush1.msra.mxu0 0.0
    %4648 = vmatprep.subr.mxu0 0.0
    %4649 = vmatpush1.msra.mxu0 0.0
    %4650 = vmatprep.subr.mxu0 0.0
    %4651 = vmatpush1.msra.mxu0 0.0
    %4652 = vmatprep.subr.mxu0 0.0
    %4653 = vmatpush1.msra.mxu0 0.0
    %4654 = vmatprep.subr.mxu0 0.0
    %4655 = vmatpush1.msra.mxu0 0.0
    %4656 = vmatprep.subr.mxu0 0.0
    %4657 = vmatpush1.msra.mxu0 0.0
    %4658 = vmatprep.subr.mxu0 0.0
    %4659 = vmatpush1.msra.mxu0 0.0
    %4660 = vmatprep.mubr.f32.mxu0 0.0
    %v4661 = vand.u32 %v4314, 4294901760
    %v4662 = vsub.f32 %v4314, %v4661
    %v4663 = vand.u32 %v4662, 4294901760
    %4664 = vmatmul.mubr.f32.gmra.mrb[0].mxu0 %v4663
    %v4665 = vpop.f32.mrb[0].mxu0
    %v4666 = vadd.f32 %v4582, %v4665
    %v4667 = vpop.f32.mrb[0].mxu0
    %4668 = vmatprep.mubr.f32.mxu0 0.0
    %v4669 = vand.u32 %v4317, 4294901760
    %v4670 = vsub.f32 %v4317, %v4669
    %v4671 = vand.u32 %v4670, 4294901760
    %4672 = vmatmul.mubr.f32.gmra.mrb[0].mxu0 %v4671
    %v4673 = vpop.f32.mrb[0].mxu0
    %v4674 = vadd.f32 %v4589, %v4673
    %v4675 = vpop.f32.mrb[0].mxu0
    %4676 = vdwg.mxu0
    %4677 = vmatprep.subr.mxu0 0.0
    %v4678 = vand.u32 %v4302, 4294901760
    %v4679 = vsub.f32 %v4302, %v4678
    %v4680 = vand.u32 %v4679, 4294901760
    %4681 = vmatpush1.msra.mxu0 %v4680
    %4682 = vmatprep.subr.mxu0 0.0
    %v4683 = vand.u32 %v4303, 4294901760
    %v4684 = vsub.f32 %v4303, %v4683
    %v4685 = vand.u32 %v4684, 4294901760
    %4686 = vmatpush1.msra.mxu0 %v4685
    %4687 = vmatprep.subr.mxu0 0.0
    %v4688 = vand.u32 %v4304, 4294901760
    %v4689 = vsub.f32 %v4304, %v4688
    %v4690 = vand.u32 %v4689, 4294901760
    %4691 = vmatpush1.msra.mxu0 %v4690
    %4692 = vmatprep.subr.mxu0 0.0
    %v4693 = vand.u32 %v4305, 4294901760
    %v4694 = vsub.f32 %v4305, %v4693
    %v4695 = vand.u32 %v4694, 4294901760
    %4696 = vmatpush1.msra.mxu0 %v4695
    %4697 = vmatprep.subr.mxu0 0.0
    %4698 = vmatpush1.msra.mxu0 0.0
    %4699 = vmatprep.subr.mxu0 0.0
    %4700 = vmatpush1.msra.mxu0 0.0
    %4701 = vmatprep.subr.mxu0 0.0
    %4702 = vmatpush1.msra.mxu0 0.0
    %4703 = vmatprep.subr.mxu0 0.0
    %4704 = vmatpush1.msra.mxu0 0.0
    %4705 = vmatprep.subr.mxu0 0.0
    %4706 = vmatpush1.msra.mxu0 0.0
    %4707 = vmatprep.subr.mxu0 0.0
    %4708 = vmatpush1.msra.mxu0 0.0
    %4709 = vmatprep.subr.mxu0 0.0
    %4710 = vmatpush1.msra.mxu0 0.0
    %4711 = vmatprep.subr.mxu0 0.0
    %4712 = vmatpush1.msra.mxu0 0.0
    %4713 = vmatprep.subr.mxu0 0.0
    %4714 = vmatpush1.msra.mxu0 0.0
    %4715 = vmatprep.subr.mxu0 0.0
    %4716 = vmatpush1.msra.mxu0 0.0
    %4717 = vmatprep.subr.mxu0 0.0
    %4718 = vmatpush1.msra.mxu0 0.0
    %4719 = vmatprep.subr.mxu0 0.0
    %4720 = vmatpush1.msra.mxu0 0.0
    %4721 = vmatprep.subr.mxu0 0.0
    %4722 = vmatpush1.msra.mxu0 0.0
    %4723 = vmatprep.subr.mxu0 0.0
    %4724 = vmatpush1.msra.mxu0 0.0
    %4725 = vmatprep.subr.mxu0 0.0
    %4726 = vmatpush1.msra.mxu0 0.0
    %4727 = vmatprep.subr.mxu0 0.0
    %4728 = vmatpush1.msra.mxu0 0.0
    %4729 = vmatprep.subr.mxu0 0.0
    %4730 = vmatpush1.msra.mxu0 0.0
    %4731 = vmatprep.subr.mxu0 0.0
    %4732 = vmatpush1.msra.mxu0 0.0
    %4733 = vmatprep.subr.mxu0 0.0
    %4734 = vmatpush1.msra.mxu0 0.0
    %4735 = vmatprep.subr.mxu0 0.0
    %4736 = vmatpush1.msra.mxu0 0.0
    %4737 = vmatprep.subr.mxu0 0.0
    %4738 = vmatpush1.msra.mxu0 0.0
    %4739 = vmatprep.subr.mxu0 0.0
    %4740 = vmatpush1.msra.mxu0 0.0
    %4741 = vmatprep.subr.mxu0 0.0
    %4742 = vmatpush1.msra.mxu0 0.0
    %4743 = vmatprep.subr.mxu0 0.0
    %4744 = vmatpush1.msra.mxu0 0.0
    %4745 = vmatprep.subr.mxu0 0.0
    %4746 = vmatpush1.msra.mxu0 0.0
    %4747 = vmatprep.subr.mxu0 0.0
    %4748 = vmatpush1.msra.mxu0 0.0
    %4749 = vmatprep.subr.mxu0 0.0
    %4750 = vmatpush1.msra.mxu0 0.0
    %4751 = vmatprep.subr.mxu0 0.0
    %4752 = vmatpush1.msra.mxu0 0.0
    %4753 = vmatprep.mubr.f32.mxu0 0.0
    %v4754 = vand.u32 %v4314, 4294901760
    %4755 = vmatmul.mubr.f32.gmra.mrb[0].mxu0 %v4754
    %v4756 = vpop.f32.mrb[0].mxu0
    %v4757 = vadd.f32 %v4666, %v4756
    %v4758 = vpop.f32.mrb[0].mxu0
    %4759 = vmatprep.mubr.f32.mxu0 0.0
    %v4760 = vand.u32 %v4317, 4294901760
    %4761 = vmatmul.mubr.f32.gmra.mrb[0].mxu0 %v4760
    %v4762 = vpop.f32.mrb[0].mxu0
    %v4763 = vadd.f32 %v4674, %v4762
    %v4764 = vpop.f32.mrb[0].mxu0
    %4765 = vdwg.mxu0
    %4766 = vmatprep.subr.mxu0 0.0
    %v4767 = vand.u32 %v4302, 4294901760
    %4768 = vmatpush1.msra.mxu0 %v4767
    %4769 = vmatprep.subr.mxu0 0.0
    %v4770 = vand.u32 %v4303, 4294901760
    %4771 = vmatpush1.msra.mxu0 %v4770
    %4772 = vmatprep.subr.mxu0 0.0
    %v4773 = vand.u32 %v4304, 4294901760
    %4774 = vmatpush1.msra.mxu0 %v4773
    %4775 = vmatprep.subr.mxu0 0.0
    %v4776 = vand.u32 %v4305, 4294901760
    %4777 = vmatpush1.msra.mxu0 %v4776
    %4778 = vmatprep.subr.mxu0 0.0
    %4779 = vmatpush1.msra.mxu0 0.0
    %4780 = vmatprep.subr.mxu0 0.0
    %4781 = vmatpush1.msra.mxu0 0.0
    %4782 = vmatprep.subr.mxu0 0.0
    %4783 = vmatpush1.msra.mxu0 0.0
    %4784 = vmatprep.subr.mxu0 0.0
    %4785 = vmatpush1.msra.mxu0 0.0
    %4786 = vmatprep.subr.mxu0 0.0
    %4787 = vmatpush1.msra.mxu0 0.0
    %4788 = vmatprep.subr.mxu0 0.0
    %4789 = vmatpush1.msra.mxu0 0.0
    %4790 = vmatprep.subr.mxu0 0.0
    %4791 = vmatpush1.msra.mxu0 0.0
    %4792 = vmatprep.subr.mxu0 0.0
    %4793 = vmatpush1.msra.mxu0 0.0
    %4794 = vmatprep.subr.mxu0 0.0
    %4795 = vmatpush1.msra.mxu0 0.0
    %4796 = vmatprep.subr.mxu0 0.0
    %4797 = vmatpush1.msra.mxu0 0.0
    %4798 = vmatprep.subr.mxu0 0.0
    %4799 = vmatpush1.msra.mxu0 0.0
    %4800 = vmatprep.subr.mxu0 0.0
    %4801 = vmatpush1.msra.mxu0 0.0
    %4802 = vmatprep.subr.mxu0 0.0
    %4803 = vmatpush1.msra.mxu0 0.0
    %4804 = vmatprep.subr.mxu0 0.0
    %4805 = vmatpush1.msra.mxu0 0.0
    %4806 = vmatprep.subr.mxu0 0.0
    %4807 = vmatpush1.msra.mxu0 0.0
    %4808 = vmatprep.subr.mxu0 0.0
    %4809 = vmatpush1.msra.mxu0 0.0
    %4810 = vmatprep.subr.mxu0 0.0
    %4811 = vmatpush1.msra.mxu0 0.0
    %4812 = vmatprep.subr.mxu0 0.0
    %4813 = vmatpush1.msra.mxu0 0.0
    %4814 = vmatprep.subr.mxu0 0.0
    %4815 = vmatpush1.msra.mxu0 0.0
    %4816 = vmatprep.subr.mxu0 0.0
    %4817 = vmatpush1.msra.mxu0 0.0
    %4818 = vmatprep.subr.mxu0 0.0
    %4819 = vmatpush1.msra.mxu0 0.0
    %4820 = vmatprep.subr.mxu0 0.0
    %4821 = vmatpush1.msra.mxu0 0.0
    %4822 = vmatprep.subr.mxu0 0.0
    %4823 = vmatpush1.msra.mxu0 0.0
    %4824 = vmatprep.subr.mxu0 0.0
    %4825 = vmatpush1.msra.mxu0 0.0
    %4826 = vmatprep.subr.mxu0 0.0
    %4827 = vmatpush1.msra.mxu0 0.0
    %4828 = vmatprep.subr.mxu0 0.0
    %4829 = vmatpush1.msra.mxu0 0.0
    %4830 = vmatprep.subr.mxu0 0.0
    %4831 = vmatpush1.msra.mxu0 0.0
    %4832 = vmatprep.subr.mxu0 0.0
    %4833 = vmatpush1.msra.mxu0 0.0
    %4834 = vmatprep.mubr.f32.mxu0 0.0
    %v4835 = vand.u32 %v4314, 4294901760
    %4836 = vmatmul.mubr.f32.gmra.mrb[0].mxu0 %v4835
    %v4837 = vpop.f32.mrb[0].mxu0
    %v4838 = vadd.f32 %v4757, %v4837
    %v4839 = vpop.f32.mrb[0].mxu0
    %4840 = vmatprep.mubr.f32.mxu0 0.0
    %v4841 = vand.u32 %v4317, 4294901760
    %4842 = vmatmul.mubr.f32.gmra.mrb[0].mxu0 %v4841
    %v4843 = vpop.f32.mrb[0].mxu0
    %v4844 = vadd.f32 %v4763, %v4843
    %v4845 = vpop.f32.mrb[0].mxu0
    %4846 = vdwg.mxu0
    %vm4847 = vcmask 130048
    %4848 = vst.msk [vmem:[#allocation5] sm:$0xff] %vm4847, %v4838
    %4849 = vst.msk [vmem:[#allocation5 + $0x8] sm:$0xff] %vm4847, %v4844
    %v4850 = vld [vmem:[#allocation2] sm:$0x3]
    %v4851 = vld [vmem:[%s4] sm:$0xff]
    %v4852 = vld [vmem:[%s4 + $0x8] sm:$0xff]
    %v4853 = vld [vmem:[%s4 + $0x10] sm:$0xff]
    %v4854 = vld [vmem:[%s4 + $0x18] sm:$0xff]
    %v4855 = vld [vmem:[%s5] sm:$0x1]
    %v4857 = vlaneseq
    %v4858 = vshrl.u32 %v4857, 7
    %v4859 = vsub.s32 0, %v4858
    %v4860 = vrot.slane %v4855, %v4859
    %v4863 = vsel %vm47, %v4850, 0
    %4865 = vmatprep.subr.mxu0 0.0
    %v4866 = vand.u32 %v4851, 4294901760
    %4867 = vmatpush1.msra.mxu0 %v4866
    %4868 = vmatprep.subr.mxu0 0.0
    %v4869 = vand.u32 %v4852, 4294901760
    %4870 = vmatpush1.msra.mxu0 %v4869
    %4871 = vmatprep.subr.mxu0 0.0
    %v4872 = vand.u32 %v4853, 4294901760
    %4873 = vmatpush1.msra.mxu0 %v4872
    %4874 = vmatprep.subr.mxu0 0.0
    %v4875 = vand.u32 %v4854, 4294901760
    %4876 = vmatpush1.msra.mxu0 %v4875
    %4877 = vmatprep.subr.mxu0 0.0
    %4878 = vmatpush1.msra.mxu0 0.0
    %4879 = vmatprep.subr.mxu0 0.0
    %4880 = vmatpush1.msra.mxu0 0.0
    %4881 = vmatprep.subr.mxu0 0.0
    %4882 = vmatpush1.msra.mxu0 0.0
    %4883 = vmatprep.subr.mxu0 0.0
    %4884 = vmatpush1.msra.mxu0 0.0
    %4885 = vmatprep.subr.mxu0 0.0
    %4886 = vmatpush1.msra.mxu0 0.0
    %4887 = vmatprep.subr.mxu0 0.0
    %4888 = vmatpush1.msra.mxu0 0.0
    %4889 = vmatprep.subr.mxu0 0.0
    %4890 = vmatpush1.msra.mxu0 0.0
    %4891 = vmatprep.subr.mxu0 0.0
    %4892 = vmatpush1.msra.mxu0 0.0
    %4893 = vmatprep.subr.mxu0 0.0
    %4894 = vmatpush1.msra.mxu0 0.0
    %4895 = vmatprep.subr.mxu0 0.0
    %4896 = vmatpush1.msra.mxu0 0.0
    %4897 = vmatprep.subr.mxu0 0.0
    %4898 = vmatpush1.msra.mxu0 0.0
    %4899 = vmatprep.subr.mxu0 0.0
    %4900 = vmatpush1.msra.mxu0 0.0
    %4901 = vmatprep.subr.mxu0 0.0
    %4902 = vmatpush1.msra.mxu0 0.0
    %4903 = vmatprep.subr.mxu0 0.0
    %4904 = vmatpush1.msra.mxu0 0.0
    %4905 = vmatprep.subr.mxu0 0.0
    %4906 = vmatpush1.msra.mxu0 0.0
    %4907 = vmatprep.subr.mxu0 0.0
    %4908 = vmatpush1.msra.mxu0 0.0
    %4909 = vmatprep.subr.mxu0 0.0
    %4910 = vmatpush1.msra.mxu0 0.0
    %4911 = vmatprep.subr.mxu0 0.0
    %4912 = vmatpush1.msra.mxu0 0.0
    %4913 = vmatprep.subr.mxu0 0.0
    %4914 = vmatpush1.msra.mxu0 0.0
    %4915 = vmatprep.subr.mxu0 0.0
    %4916 = vmatpush1.msra.mxu0 0.0
    %4917 = vmatprep.subr.mxu0 0.0
    %4918 = vmatpush1.msra.mxu0 0.0
    %4919 = vmatprep.subr.mxu0 0.0
    %4920 = vmatpush1.msra.mxu0 0.0
    %4921 = vmatprep.subr.mxu0 0.0
    %4922 = vmatpush1.msra.mxu0 0.0
    %4923 = vmatprep.subr.mxu0 0.0
    %4924 = vmatpush1.msra.mxu0 0.0
    %4925 = vmatprep.subr.mxu0 0.0
    %4926 = vmatpush1.msra.mxu0 0.0
    %4927 = vmatprep.subr.mxu0 0.0
    %4928 = vmatpush1.msra.mxu0 0.0
    %4929 = vmatprep.subr.mxu0 0.0
    %4930 = vmatpush1.msra.mxu0 0.0
    %4931 = vmatprep.subr.mxu0 0.0
    %4932 = vmatpush1.msra.mxu0 0.0
    %4933 = vmatprep.mubr.f32.mxu0 0.0
    %v4934 = vand.u32 %v4863, 4294901760
    %v4935 = vsub.f32 %v4863, %v4934
    %v4936 = vand.u32 %v4935, 4294901760
    %v4937 = vsub.f32 %v4935, %v4936
    %v4938 = vand.u32 %v4937, 4294901760
    %4939 = vmatmul.mubr.f32.gmra.mrb[0].mxu0 %v4938
    %v4940 = vpop.f32.mrb[0].mxu0
    %v4941 = vadd.f32 %v4860, %v4940
    %v4942 = vpop.f32.mrb[0].mxu0
    %4943 = vdwg.mxu0
    %4944 = vmatprep.subr.mxu0 0.0
    %v4945 = vand.u32 %v4851, 4294901760
    %v4946 = vsub.f32 %v4851, %v4945
    %v4947 = vand.u32 %v4946, 4294901760
    %v4948 = vsub.f32 %v4946, %v4947
    %v4949 = vand.u32 %v4948, 4294901760
    %4950 = vmatpush1.msra.mxu0 %v4949
    %4951 = vmatprep.subr.mxu0 0.0
    %v4952 = vand.u32 %v4852, 4294901760
    %v4953 = vsub.f32 %v4852, %v4952
    %v4954 = vand.u32 %v4953, 4294901760
    %v4955 = vsub.f32 %v4953, %v4954
    %v4956 = vand.u32 %v4955, 4294901760
    %4957 = vmatpush1.msra.mxu0 %v4956
    %4958 = vmatprep.subr.mxu0 0.0
    %v4959 = vand.u32 %v4853, 4294901760
    %v4960 = vsub.f32 %v4853, %v4959
    %v4961 = vand.u32 %v4960, 4294901760
    %v4962 = vsub.f32 %v4960, %v4961
    %v4963 = vand.u32 %v4962, 4294901760
    %4964 = vmatpush1.msra.mxu0 %v4963
    %4965 = vmatprep.subr.mxu0 0.0
    %v4966 = vand.u32 %v4854, 4294901760
    %v4967 = vsub.f32 %v4854, %v4966
    %v4968 = vand.u32 %v4967, 4294901760
    %v4969 = vsub.f32 %v4967, %v4968
    %v4970 = vand.u32 %v4969, 4294901760
    %4971 = vmatpush1.msra.mxu0 %v4970
    %4972 = vmatprep.subr.mxu0 0.0
    %4973 = vmatpush1.msra.mxu0 0.0
    %4974 = vmatprep.subr.mxu0 0.0
    %4975 = vmatpush1.msra.mxu0 0.0
    %4976 = vmatprep.subr.mxu0 0.0
    %4977 = vmatpush1.msra.mxu0 0.0
    %4978 = vmatprep.subr.mxu0 0.0
    %4979 = vmatpush1.msra.mxu0 0.0
    %4980 = vmatprep.subr.mxu0 0.0
    %4981 = vmatpush1.msra.mxu0 0.0
    %4982 = vmatprep.subr.mxu0 0.0
    %4983 = vmatpush1.msra.mxu0 0.0
    %4984 = vmatprep.subr.mxu0 0.0
    %4985 = vmatpush1.msra.mxu0 0.0
    %4986 = vmatprep.subr.mxu0 0.0
    %4987 = vmatpush1.msra.mxu0 0.0
    %4988 = vmatprep.subr.mxu0 0.0
    %4989 = vmatpush1.msra.mxu0 0.0
    %4990 = vmatprep.subr.mxu0 0.0
    %4991 = vmatpush1.msra.mxu0 0.0
    %4992 = vmatprep.subr.mxu0 0.0
    %4993 = vmatpush1.msra.mxu0 0.0
    %4994 = vmatprep.subr.mxu0 0.0
    %4995 = vmatpush1.msra.mxu0 0.0
    %4996 = vmatprep.subr.mxu0 0.0
    %4997 = vmatpush1.msra.mxu0 0.0
    %4998 = vmatprep.subr.mxu0 0.0
    %4999 = vmatpush1.msra.mxu0 0.0
    %5000 = vmatprep.subr.mxu0 0.0
    %5001 = vmatpush1.msra.mxu0 0.0
    %5002 = vmatprep.subr.mxu0 0.0
    %5003 = vmatpush1.msra.mxu0 0.0
    %5004 = vmatprep.subr.mxu0 0.0
    %5005 = vmatpush1.msra.mxu0 0.0
    %5006 = vmatprep.subr.mxu0 0.0
    %5007 = vmatpush1.msra.mxu0 0.0
    %5008 = vmatprep.subr.mxu0 0.0
    %5009 = vmatpush1.msra.mxu0 0.0
    %5010 = vmatprep.subr.mxu0 0.0
    %5011 = vmatpush1.msra.mxu0 0.0
    %5012 = vmatprep.subr.mxu0 0.0
    %5013 = vmatpush1.msra.mxu0 0.0
    %5014 = vmatprep.subr.mxu0 0.0
    %5015 = vmatpush1.msra.mxu0 0.0
    %5016 = vmatprep.subr.mxu0 0.0
    %5017 = vmatpush1.msra.mxu0 0.0
    %5018 = vmatprep.subr.mxu0 0.0
    %5019 = vmatpush1.msra.mxu0 0.0
    %5020 = vmatprep.subr.mxu0 0.0
    %5021 = vmatpush1.msra.mxu0 0.0
    %5022 = vmatprep.subr.mxu0 0.0
    %5023 = vmatpush1.msra.mxu0 0.0
    %5024 = vmatprep.subr.mxu0 0.0
    %5025 = vmatpush1.msra.mxu0 0.0
    %5026 = vmatprep.subr.mxu0 0.0
    %5027 = vmatpush1.msra.mxu0 0.0
    %5028 = vmatprep.mubr.f32.mxu0 0.0
    %v5029 = vand.u32 %v4863, 4294901760
    %5030 = vmatmul.mubr.f32.gmra.mrb[0].mxu0 %v5029
    %v5031 = vpop.f32.mrb[0].mxu0
    %v5032 = vadd.f32 %v4941, %v5031
    %v5033 = vpop.f32.mrb[0].mxu0
    %5034 = vdwg.mxu0
    %5035 = vmatprep.subr.mxu0 0.0
    %v5036 = vand.u32 %v4851, 4294901760
    %v5037 = vsub.f32 %v4851, %v5036
    %5038 = vmatpush1.msra.mxu0 %v5037
    %5039 = vmatprep.subr.mxu0 0.0
    %v5040 = vand.u32 %v4852, 4294901760
    %v5041 = vsub.f32 %v4852, %v5040
    %5042 = vmatpush1.msra.mxu0 %v5041
    %5043 = vmatprep.subr.mxu0 0.0
    %v5044 = vand.u32 %v4853, 4294901760
    %v5045 = vsub.f32 %v4853, %v5044
    %5046 = vmatpush1.msra.mxu0 %v5045
    %5047 = vmatprep.subr.mxu0 0.0
    %v5048 = vand.u32 %v4854, 4294901760
    %v5049 = vsub.f32 %v4854, %v5048
    %5050 = vmatpush1.msra.mxu0 %v5049
    %5051 = vmatprep.subr.mxu0 0.0
    %5052 = vmatpush1.msra.mxu0 0.0
    %5053 = vmatprep.subr.mxu0 0.0
    %5054 = vmatpush1.msra.mxu0 0.0
    %5055 = vmatprep.subr.mxu0 0.0
    %5056 = vmatpush1.msra.mxu0 0.0
    %5057 = vmatprep.subr.mxu0 0.0
    %5058 = vmatpush1.msra.mxu0 0.0
    %5059 = vmatprep.subr.mxu0 0.0
    %5060 = vmatpush1.msra.mxu0 0.0
    %5061 = vmatprep.subr.mxu0 0.0
    %5062 = vmatpush1.msra.mxu0 0.0
    %5063 = vmatprep.subr.mxu0 0.0
    %5064 = vmatpush1.msra.mxu0 0.0
    %5065 = vmatprep.subr.mxu0 0.0
    %5066 = vmatpush1.msra.mxu0 0.0
    %5067 = vmatprep.subr.mxu0 0.0
    %5068 = vmatpush1.msra.mxu0 0.0
    %5069 = vmatprep.subr.mxu0 0.0
    %5070 = vmatpush1.msra.mxu0 0.0
    %5071 = vmatprep.subr.mxu0 0.0
    %5072 = vmatpush1.msra.mxu0 0.0
    %5073 = vmatprep.subr.mxu0 0.0
    %5074 = vmatpush1.msra.mxu0 0.0
    %5075 = vmatprep.subr.mxu0 0.0
    %5076 = vmatpush1.msra.mxu0 0.0
    %5077 = vmatprep.subr.mxu0 0.0
    %5078 = vmatpush1.msra.mxu0 0.0
    %5079 = vmatprep.subr.mxu0 0.0
    %5080 = vmatpush1.msra.mxu0 0.0
    %5081 = vmatprep.subr.mxu0 0.0
    %5082 = vmatpush1.msra.mxu0 0.0
    %5083 = vmatprep.subr.mxu0 0.0
    %5084 = vmatpush1.msra.mxu0 0.0
    %5085 = vmatprep.subr.mxu0 0.0
    %5086 = vmatpush1.msra.mxu0 0.0
    %5087 = vmatprep.subr.mxu0 0.0
    %5088 = vmatpush1.msra.mxu0 0.0
    %5089 = vmatprep.subr.mxu0 0.0
    %5090 = vmatpush1.msra.mxu0 0.0
    %5091 = vmatprep.subr.mxu0 0.0
    %5092 = vmatpush1.msra.mxu0 0.0
    %5093 = vmatprep.subr.mxu0 0.0
    %5094 = vmatpush1.msra.mxu0 0.0
    %5095 = vmatprep.subr.mxu0 0.0
    %5096 = vmatpush1.msra.mxu0 0.0
    %5097 = vmatprep.subr.mxu0 0.0
    %5098 = vmatpush1.msra.mxu0 0.0
    %5099 = vmatprep.subr.mxu0 0.0
    %5100 = vmatpush1.msra.mxu0 0.0
    %5101 = vmatprep.subr.mxu0 0.0
    %5102 = vmatpush1.msra.mxu0 0.0
    %5103 = vmatprep.subr.mxu0 0.0
    %5104 = vmatpush1.msra.mxu0 0.0
    %5105 = vmatprep.subr.mxu0 0.0
    %5106 = vmatpush1.msra.mxu0 0.0
    %5107 = vmatprep.mubr.f32.mxu0 0.0
    %v5108 = vand.u32 %v4863, 4294901760
    %v5109 = vsub.f32 %v4863, %v5108
    %5110 = vmatmul.mubr.f32.gmra.mrb[0].mxu0 %v5109
    %v5111 = vpop.f32.mrb[0].mxu0
    %v5112 = vadd.f32 %v5032, %v5111
    %v5113 = vpop.f32.mrb[0].mxu0
    %5114 = vdwg.mxu0
    %5115 = vmatprep.subr.mxu0 0.0
    %v5116 = vand.u32 %v4851, 4294901760
    %5117 = vmatpush1.msra.mxu0 %v5116
    %5118 = vmatprep.subr.mxu0 0.0
    %v5119 = vand.u32 %v4852, 4294901760
    %5120 = vmatpush1.msra.mxu0 %v5119
    %5121 = vmatprep.subr.mxu0 0.0
    %v5122 = vand.u32 %v4853, 4294901760
    %5123 = vmatpush1.msra.mxu0 %v5122
    %5124 = vmatprep.subr.mxu0 0.0
    %v5125 = vand.u32 %v4854, 4294901760
    %5126 = vmatpush1.msra.mxu0 %v5125
    %5127 = vmatprep.subr.mxu0 0.0
    %5128 = vmatpush1.msra.mxu0 0.0
    %5129 = vmatprep.subr.mxu0 0.0
    %5130 = vmatpush1.msra.mxu0 0.0
    %5131 = vmatprep.subr.mxu0 0.0
    %5132 = vmatpush1.msra.mxu0 0.0
    %5133 = vmatprep.subr.mxu0 0.0
    %5134 = vmatpush1.msra.mxu0 0.0
    %5135 = vmatprep.subr.mxu0 0.0
    %5136 = vmatpush1.msra.mxu0 0.0
    %5137 = vmatprep.subr.mxu0 0.0
    %5138 = vmatpush1.msra.mxu0 0.0
    %5139 = vmatprep.subr.mxu0 0.0
    %5140 = vmatpush1.msra.mxu0 0.0
    %5141 = vmatprep.subr.mxu0 0.0
    %5142 = vmatpush1.msra.mxu0 0.0
    %5143 = vmatprep.subr.mxu0 0.0
    %5144 = vmatpush1.msra.mxu0 0.0
    %5145 = vmatprep.subr.mxu0 0.0
    %5146 = vmatpush1.msra.mxu0 0.0
    %5147 = vmatprep.subr.mxu0 0.0
    %5148 = vmatpush1.msra.mxu0 0.0
    %5149 = vmatprep.subr.mxu0 0.0
    %5150 = vmatpush1.msra.mxu0 0.0
    %5151 = vmatprep.subr.mxu0 0.0
    %5152 = vmatpush1.msra.mxu0 0.0
    %5153 = vmatprep.subr.mxu0 0.0
    %5154 = vmatpush1.msra.mxu0 0.0
    %5155 = vmatprep.subr.mxu0 0.0
    %5156 = vmatpush1.msra.mxu0 0.0
    %5157 = vmatprep.subr.mxu0 0.0
    %5158 = vmatpush1.msra.mxu0 0.0
    %5159 = vmatprep.subr.mxu0 0.0
    %5160 = vmatpush1.msra.mxu0 0.0
    %5161 = vmatprep.subr.mxu0 0.0
    %5162 = vmatpush1.msra.mxu0 0.0
    %5163 = vmatprep.subr.mxu0 0.0
    %5164 = vmatpush1.msra.mxu0 0.0
    %5165 = vmatprep.subr.mxu0 0.0
    %5166 = vmatpush1.msra.mxu0 0.0
    %5167 = vmatprep.subr.mxu0 0.0
    %5168 = vmatpush1.msra.mxu0 0.0
    %5169 = vmatprep.subr.mxu0 0.0
    %5170 = vmatpush1.msra.mxu0 0.0
    %5171 = vmatprep.subr.mxu0 0.0
    %5172 = vmatpush1.msra.mxu0 0.0
    %5173 = vmatprep.subr.mxu0 0.0
    %5174 = vmatpush1.msra.mxu0 0.0
    %5175 = vmatprep.subr.mxu0 0.0
    %5176 = vmatpush1.msra.mxu0 0.0
    %5177 = vmatprep.subr.mxu0 0.0
    %5178 = vmatpush1.msra.mxu0 0.0
    %5179 = vmatprep.subr.mxu0 0.0
    %5180 = vmatpush1.msra.mxu0 0.0
    %5181 = vmatprep.subr.mxu0 0.0
    %5182 = vmatpush1.msra.mxu0 0.0
    %5183 = vmatprep.mubr.f32.mxu0 0.0
    %v5184 = vand.u32 %v4863, 4294901760
    %v5185 = vsub.f32 %v4863, %v5184
    %v5186 = vand.u32 %v5185, 4294901760
    %5187 = vmatmul.mubr.f32.gmra.mrb[0].mxu0 %v5186
    %v5188 = vpop.f32.mrb[0].mxu0
    %v5189 = vadd.f32 %v5112, %v5188
    %v5190 = vpop.f32.mrb[0].mxu0
    %5191 = vdwg.mxu0
    %5192 = vmatprep.subr.mxu0 0.0
    %v5193 = vand.u32 %v4851, 4294901760
    %v5194 = vsub.f32 %v4851, %v5193
    %v5195 = vand.u32 %v5194, 4294901760
    %5196 = vmatpush1.msra.mxu0 %v5195
    %5197 = vmatprep.subr.mxu0 0.0
    %v5198 = vand.u32 %v4852, 4294901760
    %v5199 = vsub.f32 %v4852, %v5198
    %v5200 = vand.u32 %v5199, 4294901760
    %5201 = vmatpush1.msra.mxu0 %v5200
    %5202 = vmatprep.subr.mxu0 0.0
    %v5203 = vand.u32 %v4853, 4294901760
    %v5204 = vsub.f32 %v4853, %v5203
    %v5205 = vand.u32 %v5204, 4294901760
    %5206 = vmatpush1.msra.mxu0 %v5205
    %5207 = vmatprep.subr.mxu0 0.0
    %v5208 = vand.u32 %v4854, 4294901760
    %v5209 = vsub.f32 %v4854, %v5208
    %v5210 = vand.u32 %v5209, 4294901760
    %5211 = vmatpush1.msra.mxu0 %v5210
    %5212 = vmatprep.subr.mxu0 0.0
    %5213 = vmatpush1.msra.mxu0 0.0
    %5214 = vmatprep.subr.mxu0 0.0
    %5215 = vmatpush1.msra.mxu0 0.0
    %5216 = vmatprep.subr.mxu0 0.0
    %5217 = vmatpush1.msra.mxu0 0.0
    %5218 = vmatprep.subr.mxu0 0.0
    %5219 = vmatpush1.msra.mxu0 0.0
    %5220 = vmatprep.subr.mxu0 0.0
    %5221 = vmatpush1.msra.mxu0 0.0
    %5222 = vmatprep.subr.mxu0 0.0
    %5223 = vmatpush1.msra.mxu0 0.0
    %5224 = vmatprep.subr.mxu0 0.0
    %5225 = vmatpush1.msra.mxu0 0.0
    %5226 = vmatprep.subr.mxu0 0.0
    %5227 = vmatpush1.msra.mxu0 0.0
    %5228 = vmatprep.subr.mxu0 0.0
    %5229 = vmatpush1.msra.mxu0 0.0
    %5230 = vmatprep.subr.mxu0 0.0
    %5231 = vmatpush1.msra.mxu0 0.0
    %5232 = vmatprep.subr.mxu0 0.0
    %5233 = vmatpush1.msra.mxu0 0.0
    %5234 = vmatprep.subr.mxu0 0.0
    %5235 = vmatpush1.msra.mxu0 0.0
    %5236 = vmatprep.subr.mxu0 0.0
    %5237 = vmatpush1.msra.mxu0 0.0
    %5238 = vmatprep.subr.mxu0 0.0
    %5239 = vmatpush1.msra.mxu0 0.0
    %5240 = vmatprep.subr.mxu0 0.0
    %5241 = vmatpush1.msra.mxu0 0.0
    %5242 = vmatprep.subr.mxu0 0.0
    %5243 = vmatpush1.msra.mxu0 0.0
    %5244 = vmatprep.subr.mxu0 0.0
    %5245 = vmatpush1.msra.mxu0 0.0
    %5246 = vmatprep.subr.mxu0 0.0
    %5247 = vmatpush1.msra.mxu0 0.0
    %5248 = vmatprep.subr.mxu0 0.0
    %5249 = vmatpush1.msra.mxu0 0.0
    %5250 = vmatprep.subr.mxu0 0.0
    %5251 = vmatpush1.msra.mxu0 0.0
    %5252 = vmatprep.subr.mxu0 0.0
    %5253 = vmatpush1.msra.mxu0 0.0
    %5254 = vmatprep.subr.mxu0 0.0
    %5255 = vmatpush1.msra.mxu0 0.0
    %5256 = vmatprep.subr.mxu0 0.0
    %5257 = vmatpush1.msra.mxu0 0.0
    %5258 = vmatprep.subr.mxu0 0.0
    %5259 = vmatpush1.msra.mxu0 0.0
    %5260 = vmatprep.subr.mxu0 0.0
    %5261 = vmatpush1.msra.mxu0 0.0
    %5262 = vmatprep.subr.mxu0 0.0
    %5263 = vmatpush1.msra.mxu0 0.0
    %5264 = vmatprep.subr.mxu0 0.0
    %5265 = vmatpush1.msra.mxu0 0.0
    %5266 = vmatprep.subr.mxu0 0.0
    %5267 = vmatpush1.msra.mxu0 0.0
    %5268 = vmatprep.mubr.f32.mxu0 0.0
    %v5269 = vand.u32 %v4863, 4294901760
    %5270 = vmatmul.mubr.f32.gmra.mrb[0].mxu0 %v5269
    %v5271 = vpop.f32.mrb[0].mxu0
    %v5272 = vadd.f32 %v5189, %v5271
    %v5273 = vpop.f32.mrb[0].mxu0
    %5274 = vdwg.mxu0
    %5275 = vmatprep.subr.mxu0 0.0
    %v5276 = vand.u32 %v4851, 4294901760
    %5277 = vmatpush1.msra.mxu0 %v5276
    %5278 = vmatprep.subr.mxu0 0.0
    %v5279 = vand.u32 %v4852, 4294901760
    %5280 = vmatpush1.msra.mxu0 %v5279
    %5281 = vmatprep.subr.mxu0 0.0
    %v5282 = vand.u32 %v4853, 4294901760
    %5283 = vmatpush1.msra.mxu0 %v5282
    %5284 = vmatprep.subr.mxu0 0.0
    %v5285 = vand.u32 %v4854, 4294901760
    %5286 = vmatpush1.msra.mxu0 %v5285
    %5287 = vmatprep.subr.mxu0 0.0
    %5288 = vmatpush1.msra.mxu0 0.0
    %5289 = vmatprep.subr.mxu0 0.0
    %5290 = vmatpush1.msra.mxu0 0.0
    %5291 = vmatprep.subr.mxu0 0.0
    %5292 = vmatpush1.msra.mxu0 0.0
    %5293 = vmatprep.subr.mxu0 0.0
    %5294 = vmatpush1.msra.mxu0 0.0
    %5295 = vmatprep.subr.mxu0 0.0
    %5296 = vmatpush1.msra.mxu0 0.0
    %5297 = vmatprep.subr.mxu0 0.0
    %5298 = vmatpush1.msra.mxu0 0.0
    %5299 = vmatprep.subr.mxu0 0.0
    %5300 = vmatpush1.msra.mxu0 0.0
    %5301 = vmatprep.subr.mxu0 0.0
    %5302 = vmatpush1.msra.mxu0 0.0
    %5303 = vmatprep.subr.mxu0 0.0
    %5304 = vmatpush1.msra.mxu0 0.0
    %5305 = vmatprep.subr.mxu0 0.0
    %5306 = vmatpush1.msra.mxu0 0.0
    %5307 = vmatprep.subr.mxu0 0.0
    %5308 = vmatpush1.msra.mxu0 0.0
    %5309 = vmatprep.subr.mxu0 0.0
    %5310 = vmatpush1.msra.mxu0 0.0
    %5311 = vmatprep.subr.mxu0 0.0
    %5312 = vmatpush1.msra.mxu0 0.0
    %5313 = vmatprep.subr.mxu0 0.0
    %5314 = vmatpush1.msra.mxu0 0.0
    %5315 = vmatprep.subr.mxu0 0.0
    %5316 = vmatpush1.msra.mxu0 0.0
    %5317 = vmatprep.subr.mxu0 0.0
    %5318 = vmatpush1.msra.mxu0 0.0
    %5319 = vmatprep.subr.mxu0 0.0
    %5320 = vmatpush1.msra.mxu0 0.0
    %5321 = vmatprep.subr.mxu0 0.0
    %5322 = vmatpush1.msra.mxu0 0.0
    %5323 = vmatprep.subr.mxu0 0.0
    %5324 = vmatpush1.msra.mxu0 0.0
    %5325 = vmatprep.subr.mxu0 0.0
    %5326 = vmatpush1.msra.mxu0 0.0
    %5327 = vmatprep.subr.mxu0 0.0
    %5328 = vmatpush1.msra.mxu0 0.0
    %5329 = vmatprep.subr.mxu0 0.0
    %5330 = vmatpush1.msra.mxu0 0.0
    %5331 = vmatprep.subr.mxu0 0.0
    %5332 = vmatpush1.msra.mxu0 0.0
    %5333 = vmatprep.subr.mxu0 0.0
    %5334 = vmatpush1.msra.mxu0 0.0
    %5335 = vmatprep.subr.mxu0 0.0
    %5336 = vmatpush1.msra.mxu0 0.0
    %5337 = vmatprep.subr.mxu0 0.0
    %5338 = vmatpush1.msra.mxu0 0.0
    %5339 = vmatprep.subr.mxu0 0.0
    %5340 = vmatpush1.msra.mxu0 0.0
    %5341 = vmatprep.subr.mxu0 0.0
    %5342 = vmatpush1.msra.mxu0 0.0
    %5343 = vmatprep.mubr.f32.mxu0 0.0
    %v5344 = vand.u32 %v4863, 4294901760
    %5345 = vmatmul.mubr.f32.gmra.mrb[0].mxu0 %v5344
    %v5346 = vpop.f32.mrb[0].mxu0
    %v5347 = vadd.f32 %v5272, %v5346
    %v5348 = vpop.f32.mrb[0].mxu0
    %5349 = vdwg.mxu0
    %vm5350 = vcmask 25600
    %5351 = vst.msk [vmem:[#allocation7] sm:$0x3] %vm5350, %v5347
    %5352 = vst.msk [vmem:[#allocation9] sm:$0x3] %vm41, %v4850
    %v5353 = vld [vmem:[#allocation3] sm:$0x3]
    %5354 = vst.msk [vmem:[#allocation10] sm:$0x3] %vm41, %v5353
    // Predicated region
    $region34: #{tpu_custom_call.1} parent=1 // pred_check
      _
    $region35: #{tpu_custom_call.1} parent=1 // pred_check_branch
      %5356 = sbr.rel (0) target = $region37
    $region36: #{tpu_custom_call.1} parent=1 // pred_region
      %s5358 = ssub.s32 256, 256
      %5359 = vsyncadd [#allocation6], %s5358
      %s5360 = sshll.u32 [#allocation5], 4
      %s5361 = int_to_ptr.vmem [resolvable:$true] %s5360
      %5366 = dma.vmem_to_hbm [thread:$0]  %s5361, 256, %s8, [#allocation6], 128, 128, 8
    $region37: #{tpu_custom_call.1} parent=1 // pred_fallthru
      _
    // Predicated region
    $region38: #{tpu_custom_call.1} parent=1 // pred_check
      _
    $region39: #{tpu_custom_call.1} parent=1 // pred_check_branch
      %5368 = sbr.rel (0) target = $region41
    $region40: #{tpu_custom_call.1} parent=1 // pred_region
      %s5370 = ssub.s32 32, 32
      %5371 = vsyncadd [#allocation8], %s5370
      %s5373 = sshll.u32 [#allocation7], 4
      %s5374 = int_to_ptr.vmem [resolvable:$true] %s5373
      %5376 = dma.vmem_to_hbm [thread:$0]  %s5374, 32, %s9, [#allocation8]
    $region41: #{tpu_custom_call.1} parent=1 // pred_fallthru
      _
    // Predicated region
    $region42: #{tpu_custom_call.1} parent=1 // pred_check
      _
    $region43: #{tpu_custom_call.1} parent=1 // pred_check_branch
      %5378 = sbr.rel (0) target = $region45
    $region44: #{tpu_custom_call.1} parent=1 // pred_region
      %s5380 = ssub.s32 32, 32
      %5381 = vsyncadd [#allocation8], %s5380
      %s5383 = sshll.u32 [#allocation9], 4
      %s5384 = int_to_ptr.vmem [resolvable:$true] %s5383
      %5386 = dma.vmem_to_hbm [thread:$0]  %s5384, 32, %s10, [#allocation8]
    $region45: #{tpu_custom_call.1} parent=1 // pred_fallthru
      _
    // Predicated region
    $region46: #{tpu_custom_call.1} parent=1 // pred_check
      _
    $region47: #{tpu_custom_call.1} parent=1 // pred_check_branch
      %5388 = sbr.rel (0) target = $region49
    $region48: #{tpu_custom_call.1} parent=1 // pred_region
      %s5390 = ssub.s32 32, 32
      %5391 = vsyncadd [#allocation11], %s5390
      %s5393 = sshll.u32 [#allocation10], 4
      %s5394 = int_to_ptr.vmem [resolvable:$true] %s5393
      %5396 = dma.vmem_to_hbm [thread:$0]  %s5394, 32, %s11, [#allocation11]
    $region49: #{tpu_custom_call.1} parent=1 // pred_fallthru
      _
    // Predicated region
    $region50: #{tpu_custom_call.1} parent=1 // pred_check
      _
    $region51: #{tpu_custom_call.1} parent=1 // pred_check_branch
      %5398 = sbr.rel (0) target = $region53
    $region52: #{tpu_custom_call.1} parent=1 // pred_region
      %5399 = dma.done [#allocation6], 256
    $region53: #{tpu_custom_call.1} parent=1 // pred_fallthru
      _
    // Predicated region
    $region54: #{tpu_custom_call.1} parent=1 // pred_check
      _
    $region55: #{tpu_custom_call.1} parent=1 // pred_check_branch
      %5401 = sbr.rel (0) target = $region57
    $region56: #{tpu_custom_call.1} parent=1 // pred_region
      %5402 = dma.done [#allocation8], 32
    $region57: #{tpu_custom_call.1} parent=1 // pred_fallthru
      _
    // Predicated region
    $region58: #{tpu_custom_call.1} parent=1 // pred_check
      _
    $region59: #{tpu_custom_call.1} parent=1 // pred_check_branch
      %5404 = sbr.rel (0) target = $region61
    $region60: #{tpu_custom_call.1} parent=1 // pred_region
      %5405 = dma.done [#allocation8], 32
    $region61: #{tpu_custom_call.1} parent=1 // pred_fallthru
      _
    // Predicated region
    $region62: #{tpu_custom_call.1} parent=1 // pred_check
      _
    $region63: #{tpu_custom_call.1} parent=1 // pred_check_branch
      %5407 = sbr.rel (0) target = $region65
    $region64: #{tpu_custom_call.1} parent=1 // pred_region
      %5408 = dma.done [#allocation11], 32
    $region65: #{tpu_custom_call.1} parent=1 // pred_fallthru
      _
    %5409 = vsyncpa [#allocation6], 1
    %5410 = vsyncpa [#allocation8], 1
    %5411 = vsyncpa [#allocation11], 1

</llo_original>
